<compile_context>
chip_gen: v7x
topology: tpu7x:2x2x1
jax: 0.10.0
libtpu: 0.0.40
codegen_flags: <defaults>
</compile_context>

<pallas_src>
import functools

import jax
import jax.numpy as jnp
from jax import lax
from jax.experimental import pallas as pl
from jax.experimental.pallas import tpu as pltpu

_LANE = 128
_LN_EPS = 1e-5


# ----------------------------------------------------------------------------
# helpers
# ----------------------------------------------------------------------------
def _layernorm(x, g, b, eps=_LN_EPS):
    mu = jnp.mean(x, axis=-1, keepdims=True)
    var = jnp.mean((x - mu) ** 2, axis=-1, keepdims=True)
    return (x - mu) * lax.rsqrt(var + eps) * g + b


def _bf16(x):
    return x.astype(jnp.bfloat16)


# ----------------------------------------------------------------------------
# Kernel 1: stand-in backbone (global avg pool + FOLDED linear as VPU FMAs)
# ----------------------------------------------------------------------------
def _feature_kernel(img_ref, w_ref, b_ref, o_ref):
    # img: (BN, C, HW) f32 -> spatial mean along the lane axis -> (BN, C)
    pooled = jnp.mean(img_ref[...], axis=-1)               # (BN, C) f32
    w = w_ref[...]                                          # (C, E) f32
    out = b_ref[...]                                        # (1, E) f32
    # K = C = 3 contraction is MXU-hostile -> 3 broadcast FMAs on the VPU.
    for c in range(pooled.shape[1]):
        out = out + pooled[:, c:c + 1] * w[c:c + 1, :]
    o_ref[...] = out                                        # (BN, E)


def extract_features(imgs, kp):
    BN = imgs.shape[0]
    E = kp["w_feat"].shape[1]
    # Whole arrays fit VMEM comfortably at these shapes; no grid needed.
    return pl.pallas_call(
        _feature_kernel,
        out_shape=jax.ShapeDtypeStruct((BN, E), jnp.float32),
    )(imgs, kp["w_feat"], kp["b_feat"])


# ----------------------------------------------------------------------------
# Kernel 2: fused CLS/pos assembly + transformer encoder (shared-weight layers)
#           + final LayerNorm + classifier
# ----------------------------------------------------------------------------
def _transformer_kernel(num_layers, nhead,
                        feats_ref, cls_ref, pos_ref,
                        wqkv_ref, bqkv_ref, wo_ref, bo_ref,
                        w1_ref, b1_ref, w2_ref, b2_ref,
                        g1_ref, bt1_ref, g2_ref, bt2_ref,
                        gf_ref, bf_ref, wc_ref, bc_ref,
                        logits_ref, attn_ref,
                        row_scr):
    Bb, N, E = feats_ref.shape        # batch block, album length, d_model
    S = N + 1
    H = nhead
    dh = E // H

    # ---- assemble x = [CLS; feats] + pos_embed directly in a (Bb*S, E) scratch
    pos = pos_ref[0]                                  # (S, E)
    cls_row = cls_ref[0] + pos[0:1, :]                # (1, E)
    feat_pos = pos[1:S, :]                            # (N, E)
    for b in range(Bb):
        row_scr[b * S: b * S + 1, :] = cls_row
        row_scr[b * S + 1: (b + 1) * S, :] = feats_ref[b] + feat_pos
    xf = row_scr[...]                                 # (M, E) f32, M = Bb*S

    # ---- shared layer weights: load once, reuse every layer -----------------
    wqkv = wqkv_ref[...]; bqkv = bqkv_ref[...]        # (E, 3E) bf16, (1, 3E) f32
    wo = wo_ref[...]; bo = bo_ref[...]                # (E, E)  bf16, (1, E)  f32
    w1 = w1_ref[...]; b1 = b1_ref[...]                # (E, dff) bf16, (1, dff)
    w2 = w2_ref[...]; b2 = b2_ref[...]                # (dff, E) bf16, (1, E)
    g1 = g1_ref[...]; bt1 = bt1_ref[...]
    g2 = g2_ref[...]; bt2 = bt2_ref[...]

    for l in range(num_layers):       # layers share one weight set (ModuleList reuse)
        # ---- fused QKV projection: ONE (M, 3E) MXU op; scale folded into q --
        qkv = jnp.dot(_bf16(xf), wqkv, preferred_element_type=jnp.float32) + bqkv
        qkv = _bf16(qkv)

        # ---- per-(batch, head) attention: scores / exact softmax / context --
        for b in range(Bb):
            r0, r1 = b * S, (b + 1) * S
            for h in range(H):
                c0, c1 = h * dh, (h + 1) * dh
                q_bh = qkv[r0:r1, c0:c1]                       # (S, dh) bf16
                k_bh = qkv[r0:r1, E + c0:E + c1]
                v_bh = qkv[r0:r1, 2 * E + c0:2 * E + c1]
                s = lax.dot_general(q_bh, k_bh, (((1,), (1,)), ((), ())),
                                    preferred_element_type=jnp.float32)  # (S,S)
                s = s - jnp.max(s, axis=-1, keepdims=True)
                e = jnp.exp(s)
                p = e / jnp.sum(e, axis=-1, keepdims=True)     # exact softmax
                attn_ref[l, b, h] = p                          # returned maps (f32)
                ctx = jnp.dot(_bf16(p), v_bh,
                              preferred_element_type=jnp.float32)        # (S,dh)
                row_scr[r0:r1, c0:c1] = ctx                    # head-concat layout

        # ---- fused output projection over concatenated heads: ONE K=E matmul
        attn_out = jnp.dot(_bf16(row_scr[...]), wo,
                           preferred_element_type=jnp.float32) + bo      # (M, E)

        # ---- residual + norm1 ----
        x1 = _layernorm(xf + attn_out, g1, bt1)

        # ---- feed forward (relu), residual + norm2 ----
        h1 = jnp.maximum(
            jnp.dot(_bf16(x1), w1, preferred_element_type=jnp.float32) + b1, 0.0)
        h2 = jnp.dot(_bf16(h1), w2, preferred_element_type=jnp.float32) + b2
        xf = _layernorm(x1 + h2, g2, bt2)

    # ---- CLS rows -> final LayerNorm -> classifier (dropout = identity) -----
    cls_rows = jnp.concatenate([xf[b * S: b * S + 1, :] for b in range(Bb)],
                               axis=0)                          # (Bb, E)
    cls_rows = _layernorm(cls_rows, gf_ref[...], bf_ref[...])
    logits_ref[...] = (jnp.dot(_bf16(cls_rows), wc_ref[...],
                               preferred_element_type=jnp.float32)
                       + bc_ref[...])


def transformer_classifier(feats, kp, *, nhead, num_layers, batch_blocks=1):
    """feats: (B, N, E) f32.  batch_blocks=1 folds the whole batch into one
    kernel step (best on single-TC v5e/v6e); use 2 on v7x to feed both cores."""
    B, N, E = feats.shape
    S = N + 1
    dff = kp["w1_T"].shape[1]
    L_pad = kp["w_cls_T"].shape[1]
    assert B % batch_blocks == 0
    Bb = B // batch_blocks
    pos = kp["pos_embed"][:, :S, :]          # static host-side slice

    def full(shape):
        n = len(shape)
        return pl.BlockSpec(shape, lambda i, n=n: (0,) * n)

    # TODO(synk): at production d_model/dff, single-buffer the constant-index
    #             weight specs and set vmem_limit_bytes (v7x: 64 MiB VMEM).
    logits, attn = pl.pallas_call(
        functools.partial(_transformer_kernel, num_layers, nhead),
        grid=(batch_blocks,),
        in_specs=[
            pl.BlockSpec((Bb, N, E), lambda i: (i, 0, 0)),     # feats
            full((1, 1, E)),                                   # cls_token
            full((1, S, E)),                                   # pos_embed
            full((E, 3 * E)), full((1, 3 * E)),                # fused qkv
            full((E, E)), full((1, E)),                        # out proj
            full((E, dff)), full((1, dff)),                    # ffn 1
            full((dff, E)), full((1, E)),                      # ffn 2
            full((1, E)), full((1, E)), full((1, E)), full((1, E)),   # norms 1/2
            full((1, E)), full((1, E)),                        # final norm
            full((E, L_pad)), full((1, L_pad)),                # classifier
        ],
        out_specs=[
            pl.BlockSpec((Bb, L_pad), lambda i: (i, 0)),
            pl.BlockSpec((num_layers, Bb, nhead, S, S),
                         lambda i: (0, i, 0, 0, 0)),
        ],
        out_shape=[
            jax.ShapeDtypeStruct((B, L_pad), jnp.float32),
            jax.ShapeDtypeStruct((num_layers, B, nhead, S, S), jnp.float32),
        ],
        scratch_shapes=[pltpu.VMEM((Bb * S, E), jnp.float32)],
        compiler_params=pltpu.CompilerParams(
            dimension_semantics=("parallel",)),
    )(feats, kp["cls_token"], pos,
      kp["wqkv_T"], kp["bqkv"], kp["wo_T"], kp["bo"],
      kp["w1_T"], kp["b1"], kp["w2_T"], kp["b2"],
      kp["g1"], kp["bt1"], kp["g2"], kp["bt2"],
      kp["g_f"], kp["b_f"], kp["w_cls_T"], kp["b_cls"])
    return logits, attn


# ----------------------------------------------------------------------------
# EventLens forward (glue in plain JAX, hot paths in Pallas)
# ----------------------------------------------------------------------------
def event_lens_forward(images, kp, *, nhead, num_layers, num_labels,
                       batch_blocks=1):
    b, n, c, h, w = images.shape
    imgs = images.reshape(b * n, c, h * w)

    # TODO(synk): stand-in for the ResNet-50 backbone (pool + folded linear)
    feats = extract_features(imgs, kp)                       # (b*n, d_model)
    feats = feats.reshape(b, n, -1)

    logits_pad, attn_all = transformer_classifier(
        feats, kp, nhead=nhead, num_layers=num_layers, batch_blocks=batch_blocks)
    logits = logits_pad[:, :num_labels]
    attentions = [attn_all[l] for l in range(num_layers)]    # (B,nhead,S,S) each
    return logits, attentions


# ----------------------------------------------------------------------------
# Parameter construction (torch layout) + one-time kernel-layout preparation
# ----------------------------------------------------------------------------
def make_params(key, *, d_model, nhead, dff, feat_dim, max_images, num_labels):
    ks = iter(jax.random.split(key, 32))
    nrm = lambda shape, std=0.02: std * jax.random.normal(next(ks), shape, jnp.float32)
    return {
        "w_bb": nrm((feat_dim, 3)), "b_bb": nrm((feat_dim,)),
        "w_proj": nrm((d_model, feat_dim)), "b_proj": nrm((d_model,)),
        "cls_token": nrm((1, 1, d_model)),
        "pos_embed": nrm((1, max_images + 1, d_model)),
        "layer": {
            "wqkv": nrm((3 * d_model, d_model)), "bqkv": nrm((3 * d_model,)),
            "wo": nrm((d_model, d_model)), "bo": nrm((d_model,)),
            "w1": nrm((dff, d_model)), "b1": nrm((dff,)),
            "w2": nrm((d_model, dff)), "b2": nrm((d_model,)),
            "g1": jnp.ones((d_model,), jnp.float32),
            "bt1": jnp.zeros((d_model,), jnp.float32),
            "g2": jnp.ones((d_model,), jnp.float32),
            "bt2": jnp.zeros((d_model,), jnp.float32),
        },
        "g_f": jnp.ones((d_model,), jnp.float32),
        "b_f": jnp.zeros((d_model,), jnp.float32),
        "w_cls": nrm((num_labels, d_model)), "b_cls": nrm((num_labels,)),
    }


def prepare_kernel_params(p, *, nhead, num_labels):
    """One-time host-side re-layout:
       * fold the two stand-in backbone linears into one (3, E) weight,
       * fuse Q/K/V into a single (E, 3E) matrix with the 1/sqrt(dh) scale
         folded into the q columns/bias,
       * pre-transpose Wo / FFN / classifier weights, pad the classifier to a
         lane-dense width, cast MXU operands to bf16."""
    E = p["w_proj"].shape[0]
    dh = E // nhead
    scale = 1.0 / float(dh) ** 0.5
    L = p["layer"]

    # folded stand-in backbone: pooled @ (W_bb^T W_proj^T) + (b_bb W_proj^T + b_proj)
    w_feat = (p["w_bb"].T @ p["w_proj"].T).astype(jnp.float32)            # (3, E)
    b_feat = (p["b_bb"][None, :] @ p["w_proj"].T
              + p["b_proj"][None, :]).astype(jnp.float32)                 # (1, E)

    # fused QKV (torch in_proj layout: rows [Wq; Wk; Wv], applied as x @ W^T)
    wqkv_T = L["wqkv"].T                                                  # (E, 3E)
    col_scale = jnp.concatenate([jnp.full((E,), scale, jnp.float32),
                                 jnp.ones((2 * E,), jnp.float32)])
    wqkv_T = wqkv_T * col_scale[None, :]
    bqkv = (L["bqkv"] * col_scale).reshape(1, -1).astype(jnp.float32)

    L_pad = max(_LANE, -(-num_labels // _LANE) * _LANE)
    w_cls_T = jnp.zeros((E, L_pad), jnp.float32).at[:, :num_labels].set(p["w_cls"].T)
    b_cls = jnp.zeros((1, L_pad), jnp.float32).at[0, :num_labels].set(p["b_cls"])

    return {
        "w_feat": w_feat, "b_feat": b_feat,
        "cls_token": p["cls_token"], "pos_embed": p["pos_embed"],
        "wqkv_T": _bf16(wqkv_T), "bqkv": bqkv,
        "wo_T": _bf16(L["wo"].T), "bo": L["bo"].reshape(1, -1),
        "w1_T": _bf16(L["w1"].T), "b1": L["b1"].reshape(1, -1),
        "w2_T": _bf16(L["w2"].T), "b2": L["b2"].reshape(1, -1),
        "g1": L["g1"].reshape(1, -1), "bt1": L["bt1"].reshape(1, -1),
        "g2": L["g2"].reshape(1, -1), "bt2": L["bt2"].reshape(1, -1),
        "g_f": p["g_f"].reshape(1, -1), "b_f": p["b_f"].reshape(1, -1),
        "w_cls_T": _bf16(w_cls_T), "b_cls": b_cls,
    }


# ----------------------------------------------------------------------------
# demo
# ----------------------------------------------------------------------------
if __name__ == "__main__":
    # small shapes consistent with the module
    B, N, C, H, W = 2, 4, 3, 16, 16
    d_model, nhead, num_layers = 64, 4, 2
    dff, feat_dim, max_images, num_labels = 128, 128, 8, 10

    key = jax.random.PRNGKey(0)
    k_img, k_par = jax.random.split(key)
    images = jax.random.normal(k_img, (B, N, C, H, W), jnp.float32)
    params = make_params(k_par, d_model=d_model, nhead=nhead, dff=dff,
                         feat_dim=feat_dim, max_images=max_images,
                         num_labels=num_labels)
    kparams = prepare_kernel_params(params, nhead=nhead, num_labels=num_labels)

    fwd = jax.jit(functools.partial(event_lens_forward, nhead=nhead,
                                    num_layers=num_layers,
                                    num_labels=num_labels,
                                    batch_blocks=1))
    logits, attentions = fwd(images, kparams)
    jax.block_until_ready(logits)
    for a in attentions:
        jax.block_until_ready(a)

    assert logits.shape == (B, num_labels)
    assert len(attentions) == num_layers
    assert attentions[0].shape == (B, nhead, N + 1, N + 1)
    print("KERNEL_OK")
</pallas_src>

<mosaic_0001>
module attributes {stable_mosaic.version = 11 : i64} {
  func.func @_feature_kernel(%arg0: memref<8x3x256xf32, #tpu.memory_space<vmem>>, %arg1: memref<3x64xf32, #tpu.memory_space<vmem>>, %arg2: memref<1x64xf32, #tpu.memory_space<vmem>>, %arg3: memref<8x64xf32, #tpu.memory_space<vmem>>) attributes {dimension_semantics = [], scalar_prefetch = 0 : i64, scratch_operands = 0 : i64, tpu.core_type = #tpu.core_type<tc>} {
    %c0 = arith.constant 0 : index
    %c0_0 = arith.constant 0 : index
    %c0_1 = arith.constant 0 : index
    %0 = vector.load %arg0[%c0, %c0_0, %c0_1] : memref<8x3x256xf32, #tpu.memory_space<vmem>>, vector<8x3x256xf32>
    %cst = arith.constant dense<0.000000e+00> : vector<8x3xf32>
    %1 = vector.multi_reduction <add>, %0, %cst [2] : vector<8x3x256xf32> to vector<8x3xf32>
    %cst_2 = arith.constant 2.560000e+02 : f32
    %2 = vector.broadcast %cst_2 : f32 to vector<8x3xf32>
    %3 = arith.divf %1, %2 : vector<8x3xf32>
    %c0_3 = arith.constant 0 : index
    %c0_4 = arith.constant 0 : index
    %4 = vector.load %arg1[%c0_3, %c0_4] : memref<3x64xf32, #tpu.memory_space<vmem>>, vector<3x64xf32>
    %c0_5 = arith.constant 0 : index
    %c0_6 = arith.constant 0 : index
    %5 = vector.load %arg2[%c0_5, %c0_6] : memref<1x64xf32, #tpu.memory_space<vmem>>, vector<1x64xf32>
    %6 = vector.extract_strided_slice %3 {offsets = [0, 0], sizes = [8, 1], strides = [1, 1]} : vector<8x3xf32> to vector<8x1xf32>
    %7 = vector.extract_strided_slice %4 {offsets = [0, 0], sizes = [1, 64], strides = [1, 1]} : vector<3x64xf32> to vector<1x64xf32>
    %8 = vector.broadcast %6 : vector<8x1xf32> to vector<8x64xf32>
    %9 = vector.broadcast %7 : vector<1x64xf32> to vector<8x64xf32>
    %10 = arith.mulf %8, %9 : vector<8x64xf32>
    %11 = vector.broadcast %5 : vector<1x64xf32> to vector<8x64xf32>
    %12 = arith.addf %11, %10 : vector<8x64xf32>
    %13 = vector.extract_strided_slice %3 {offsets = [0, 1], sizes = [8, 1], strides = [1, 1]} : vector<8x3xf32> to vector<8x1xf32>
    %14 = vector.extract_strided_slice %4 {offsets = [1, 0], sizes = [1, 64], strides = [1, 1]} : vector<3x64xf32> to vector<1x64xf32>
    %15 = vector.broadcast %13 : vector<8x1xf32> to vector<8x64xf32>
    %16 = vector.broadcast %14 : vector<1x64xf32> to vector<8x64xf32>
    %17 = arith.mulf %15, %16 : vector<8x64xf32>
    %18 = arith.addf %12, %17 : vector<8x64xf32>
    %19 = vector.extract_strided_slice %3 {offsets = [0, 2], sizes = [8, 1], strides = [1, 1]} : vector<8x3xf32> to vector<8x1xf32>
    %20 = vector.extract_strided_slice %4 {offsets = [2, 0], sizes = [1, 64], strides = [1, 1]} : vector<3x64xf32> to vector<1x64xf32>
    %21 = vector.broadcast %19 : vector<8x1xf32> to vector<8x64xf32>
    %22 = vector.broadcast %20 : vector<1x64xf32> to vector<8x64xf32>
    %23 = arith.mulf %21, %22 : vector<8x64xf32>
    %24 = arith.addf %18, %23 : vector<8x64xf32>
    %c0_7 = arith.constant 0 : index
    %c0_8 = arith.constant 0 : index
    %25 = vector.load %arg3[%c0_7, %c0_8] : memref<8x64xf32, #tpu.memory_space<vmem>>, vector<8x64xf32>
    tpu.vector_store %arg3[%c0_7, %c0_8], %24 {strides = array<i32>} : memref<8x64xf32, #tpu.memory_space<vmem>>, vector<8x64xf32>,
    return
  }
}

module attributes {stable_mosaic.version = 11 : i64} {
  func.func @_transformer_kernel(%arg0: i32, %arg1: memref<2x4x64xf32, #tpu.memory_space<vmem>>, %arg2: memref<1x1x64xf32, #tpu.memory_space<vmem>>, %arg3: memref<1x5x64xf32, #tpu.memory_space<vmem>>, %arg4: memref<64x192xbf16, #tpu.memory_space<vmem>>, %arg5: memref<1x192xf32, #tpu.memory_space<vmem>>, %arg6: memref<64x64xbf16, #tpu.memory_space<vmem>>, %arg7: memref<1x64xf32, #tpu.memory_space<vmem>>, %arg8: memref<64x128xbf16, #tpu.memory_space<vmem>>, %arg9: memref<1x128xf32, #tpu.memory_space<vmem>>, %arg10: memref<128x64xbf16, #tpu.memory_space<vmem>>, %arg11: memref<1x64xf32, #tpu.memory_space<vmem>>, %arg12: memref<1x64xf32, #tpu.memory_space<vmem>>, %arg13: memref<1x64xf32, #tpu.memory_space<vmem>>, %arg14: memref<1x64xf32, #tpu.memory_space<vmem>>, %arg15: memref<1x64xf32, #tpu.memory_space<vmem>>, %arg16: memref<1x64xf32, #tpu.memory_space<vmem>>, %arg17: memref<1x64xf32, #tpu.memory_space<vmem>>, %arg18: memref<64x128xbf16, #tpu.memory_space<vmem>>, %arg19: memref<1x128xf32, #tpu.memory_space<vmem>>, %arg20: memref<2x128xf32, #tpu.memory_space<vmem>>, %arg21: memref<2x2x4x5x5xf32, #tpu.memory_space<vmem>>, %arg22: memref<10x64xf32, #tpu.memory_space<vmem>>) attributes {dimension_semantics = [#tpu.dimension_semantics<parallel>], iteration_bounds = array<i64: 1>, scalar_prefetch = 0 : i64, scratch_operands = 1 : i64, tpu.core_type = #tpu.core_type<tc>, window_params = [{transform_indices = @transform_0, window_bounds = array<i64: 2, 4, 64>}, {pipeline_mode = #tpu.pipeline_mode<synchronous>, transform_indices = @transform_1, window_bounds = array<i64: 1, 1, 64>}, {pipeline_mode = #tpu.pipeline_mode<synchronous>, transform_indices = @transform_2, window_bounds = array<i64: 1, 5, 64>}, {pipeline_mode = #tpu.pipeline_mode<synchronous>, transform_indices = @transform_3, window_bounds = array<i64: 64, 192>}, {pipeline_mode = #tpu.pipeline_mode<synchronous>, transform_indices = @transform_4, window_bounds = array<i64: 1, 192>}, {pipeline_mode = #tpu.pipeline_mode<synchronous>, transform_indices = @transform_5, window_bounds = array<i64: 64, 64>}, {pipeline_mode = #tpu.pipeline_mode<synchronous>, transform_indices = @transform_6, window_bounds = array<i64: 1, 64>}, {pipeline_mode = #tpu.pipeline_mode<synchronous>, transform_indices = @transform_7, window_bounds = array<i64: 64, 128>}, {pipeline_mode = #tpu.pipeline_mode<synchronous>, transform_indices = @transform_8, window_bounds = array<i64: 1, 128>}, {pipeline_mode = #tpu.pipeline_mode<synchronous>, transform_indices = @transform_9, window_bounds = array<i64: 128, 64>}, {pipeline_mode = #tpu.pipeline_mode<synchronous>, transform_indices = @transform_10, window_bounds = array<i64: 1, 64>}, {pipeline_mode = #tpu.pipeline_mode<synchronous>, transform_indices = @transform_11, window_bounds = array<i64: 1, 64>}, {pipeline_mode = #tpu.pipeline_mode<synchronous>, transform_indices = @transform_12, window_bounds = array<i64: 1, 64>}, {pipeline_mode = #tpu.pipeline_mode<synchronous>, transform_indices = @transform_13, window_bounds = array<i64: 1, 64>}, {pipeline_mode = #tpu.pipeline_mode<synchronous>, transform_indices = @transform_14, window_bounds = array<i64: 1, 64>}, {pipeline_mode = #tpu.pipeline_mode<synchronous>, transform_indices = @transform_15, window_bounds = array<i64: 1, 64>}, {pipeline_mode = #tpu.pipeline_mode<synchronous>, transform_indices = @transform_16, window_bounds = array<i64: 1, 64>}, {pipeline_mode = #tpu.pipeline_mode<synchronous>, transform_indices = @transform_17, window_bounds = array<i64: 64, 128>}, {pipeline_mode = #tpu.pipeline_mode<synchronous>, transform_indices = @transform_18, window_bounds = array<i64: 1, 128>}, {transform_indices = @transform_19, window_bounds = array<i64: 2, 128>}, {transform_indices = @transform_20, window_bounds = array<i64: 2, 2, 4, 5, 5>}]} {
    %c0 = arith.constant 0 : index
    %c0_0 = arith.constant 0 : index
    %c0_1 = arith.constant 0 : index
    %0 = vector.load %arg3[%c0, %c0_0, %c0_1] : memref<1x5x64xf32, #tpu.memory_space<vmem>>, vector<1x5x64xf32>
    %1 = vector.shape_cast %0 : vector<1x5x64xf32> to vector<5x64xf32>
    %c0_2 = arith.constant 0 : index
    %c0_3 = arith.constant 0 : index
    %c0_4 = arith.constant 0 : index
    %2 = vector.load %arg2[%c0_2, %c0_3, %c0_4] : memref<1x1x64xf32, #tpu.memory_space<vmem>>, vector<1x1x64xf32>
    %3 = vector.shape_cast %2 : vector<1x1x64xf32> to vector<1x64xf32>
    %4 = vector.extract_strided_slice %1 {offsets = [0, 0], sizes = [1, 64], strides = [1, 1]} : vector<5x64xf32> to vector<1x64xf32>
    %5 = arith.addf %3, %4 : vector<1x64xf32>
    %6 = vector.extract_strided_slice %1 {offsets = [1, 0], sizes = [4, 64], strides = [1, 1]} : vector<5x64xf32> to vector<4x64xf32>
    %c0_5 = arith.constant 0 : index
    %c0_6 = arith.constant 0 : index
    %7 = vector.load %arg22[%c0_5, %c0_6] : memref<10x64xf32, #tpu.memory_space<vmem>>, vector<1x64xf32>
    tpu.vector_store %arg22[%c0_5, %c0_6], %5 {strides = array<i32>} : memref<10x64xf32, #tpu.memory_space<vmem>>, vector<1x64xf32>,
    %c0_7 = arith.constant 0 : index
    %c0_8 = arith.constant 0 : index
    %c0_9 = arith.constant 0 : index
    %8 = vector.load %arg1[%c0_7, %c0_8, %c0_9] : memref<2x4x64xf32, #tpu.memory_space<vmem>>, vector<1x4x64xf32>
    %9 = vector.shape_cast %8 : vector<1x4x64xf32> to vector<4x64xf32>
    %10 = arith.addf %9, %6 : vector<4x64xf32>
    %c1 = arith.constant 1 : index
    %c0_10 = arith.constant 0 : index
    %11 = vector.load %arg22[%c1, %c0_10] : memref<10x64xf32, #tpu.memory_space<vmem>>, vector<4x64xf32>
    tpu.vector_store %arg22[%c1, %c0_10], %10 {strides = array<i32>} : memref<10x64xf32, #tpu.memory_space<vmem>>, vector<4x64xf32>,
    %c5 = arith.constant 5 : index
    %c0_11 = arith.constant 0 : index
    %12 = vector.load %arg22[%c5, %c0_11] : memref<10x64xf32, #tpu.memory_space<vmem>>, vector<1x64xf32>
    tpu.vector_store %arg22[%c5, %c0_11], %5 {strides = array<i32>} : memref<10x64xf32, #tpu.memory_space<vmem>>, vector<1x64xf32>,
    %c1_12 = arith.constant 1 : index
    %c0_13 = arith.constant 0 : index
    %c0_14 = arith.constant 0 : index
    %13 = vector.load %arg1[%c1_12, %c0_13, %c0_14] : memref<2x4x64xf32, #tpu.memory_space<vmem>>, vector<1x4x64xf32>
    %14 = vector.shape_cast %13 : vector<1x4x64xf32> to vector<4x64xf32>
    %15 = arith.addf %14, %6 : vector<4x64xf32>
    %c6 = arith.constant 6 : index
    %c0_15 = arith.constant 0 : index
    %16 = vector.load %arg22[%c6, %c0_15] : memref<10x64xf32, #tpu.memory_space<vmem>>, vector<4x64xf32>
    tpu.vector_store %arg22[%c6, %c0_15], %15 {strides = array<i32>} : memref<10x64xf32, #tpu.memory_space<vmem>>, vector<4x64xf32>,
    %c0_16 = arith.constant 0 : index
    %c0_17 = arith.constant 0 : index
    %17 = vector.load %arg22[%c0_16, %c0_17] : memref<10x64xf32, #tpu.memory_space<vmem>>, vector<10x64xf32>
    %c0_18 = arith.constant 0 : index
    %c0_19 = arith.constant 0 : index
    %18 = vector.load %arg4[%c0_18, %c0_19] : memref<64x192xbf16, #tpu.memory_space<vmem>>, vector<64x192xbf16>
    %c0_20 = arith.constant 0 : index
    %c0_21 = arith.constant 0 : index
    %19 = vector.load %arg5[%c0_20, %c0_21] : memref<1x192xf32, #tpu.memory_space<vmem>>, vector<1x192xf32>
    %c0_22 = arith.constant 0 : index
    %c0_23 = arith.constant 0 : index
    %20 = vector.load %arg6[%c0_22, %c0_23] : memref<64x64xbf16, #tpu.memory_space<vmem>>, vector<64x64xbf16>
    %c0_24 = arith.constant 0 : index
    %c0_25 = arith.constant 0 : index
    %21 = vector.load %arg7[%c0_24, %c0_25] : memref<1x64xf32, #tpu.memory_space<vmem>>, vector<1x64xf32>
    %c0_26 = arith.constant 0 : index
    %c0_27 = arith.constant 0 : index
    %22 = vector.load %arg8[%c0_26, %c0_27] : memref<64x128xbf16, #tpu.memory_space<vmem>>, vector<64x128xbf16>
    %c0_28 = arith.constant 0 : index
    %c0_29 = arith.constant 0 : index
    %23 = vector.load %arg9[%c0_28, %c0_29] : memref<1x128xf32, #tpu.memory_space<vmem>>, vector<1x128xf32>
    %c0_30 = arith.constant 0 : index
    %c0_31 = arith.constant 0 : index
    %24 = vector.load %arg10[%c0_30, %c0_31] : memref<128x64xbf16, #tpu.memory_space<vmem>>, vector<128x64xbf16>
    %c0_32 = arith.constant 0 : index
    %c0_33 = arith.constant 0 : index
    %25 = vector.load %arg11[%c0_32, %c0_33] : memref<1x64xf32, #tpu.memory_space<vmem>>, vector<1x64xf32>
    %c0_34 = arith.constant 0 : index
    %c0_35 = arith.constant 0 : index
    %26 = vector.load %arg12[%c0_34, %c0_35] : memref<1x64xf32, #tpu.memory_space<vmem>>, vector<1x64xf32>
    %c0_36 = arith.constant 0 : index
    %c0_37 = arith.constant 0 : index
    %27 = vector.load %arg13[%c0_36, %c0_37] : memref<1x64xf32, #tpu.memory_space<vmem>>, vector<1x64xf32>
    %c0_38 = arith.constant 0 : index
    %c0_39 = arith.constant 0 : index
    %28 = vector.load %arg14[%c0_38, %c0_39] : memref<1x64xf32, #tpu.memory_space<vmem>>, vector<1x64xf32>
    %c0_40 = arith.constant 0 : index
    %c0_41 = arith.constant 0 : index
    %29 = vector.load %arg15[%c0_40, %c0_41] : memref<1x64xf32, #tpu.memory_space<vmem>>, vector<1x64xf32>
    %30 = arith.truncf %17 : vector<10x64xf32> to vector<10x64xbf16>
    %cst = arith.constant dense<0.000000e+00> : vector<10x192xf32>
    %31 = tpu.matmul %30, %18, %cst {dimension_numbers = #tpu.dot_dimension_numbers<[1], [0], [0], [1], [0, 0, 1, 1], [], []>} : vector<10x64xbf16>, vector<64x192xbf16>, vector<10x192xf32> -> vector<10x192xf32>
    %32 = vector.broadcast %19 : vector<1x192xf32> to vector<10x192xf32>
    %33 = arith.addf %31, %32 : vector<10x192xf32>
    %34 = arith.truncf %33 : vector<10x192xf32> to vector<10x192xbf16>
    %35 = vector.extract_strided_slice %34 {offsets = [0, 0], sizes = [5, 16], strides = [1, 1]} : vector<10x192xbf16> to vector<5x16xbf16>
    %36 = vector.extract_strided_slice %34 {offsets = [0, 64], sizes = [5, 16], strides = [1, 1]} : vector<10x192xbf16> to vector<5x16xbf16>
    %37 = vector.extract_strided_slice %34 {offsets = [0, 128], sizes = [5, 16], strides = [1, 1]} : vector<10x192xbf16> to vector<5x16xbf16>
    %cst_42 = arith.constant dense<0.000000e+00> : vector<5x5xf32>
    %38 = tpu.matmul %35, %36, %cst_42 {dimension_numbers = #tpu.dot_dimension_numbers<[1], [1], [0], [0], [0, 0, 1, 0], [], []>} : vector<5x16xbf16>, vector<5x16xbf16>, vector<5x5xf32> -> vector<5x5xf32>
    %cst_43 = arith.constant dense<0xFF800000> : vector<5xf32>
    %39 = vector.multi_reduction <maximumf>, %38, %cst_43 [1] : vector<5x5xf32> to vector<5xf32>
    %40 = vector.shape_cast %39 : vector<5xf32> to vector<5x1xf32>
    %41 = vector.broadcast %40 : vector<5x1xf32> to vector<5x5xf32>
    %42 = arith.subf %38, %41 : vector<5x5xf32>
    %43 = math.exp %42 : vector<5x5xf32>
    %cst_44 = arith.constant dense<0.000000e+00> : vector<5xf32>
    %44 = vector.multi_reduction <add>, %43, %cst_44 [1] : vector<5x5xf32> to vector<5xf32>
    %45 = vector.shape_cast %44 : vector<5xf32> to vector<5x1xf32>
    %46 = vector.broadcast %45 : vector<5x1xf32> to vector<5x5xf32>
    %47 = arith.divf %43, %46 : vector<5x5xf32>
    %c0_45 = arith.constant 0 : index
    %c0_46 = arith.constant 0 : index
    %c0_47 = arith.constant 0 : index
    %c0_48 = arith.constant 0 : index
    %c0_49 = arith.constant 0 : index
    %48 = vector.load %arg21[%c0_45, %c0_46, %c0_47, %c0_48, %c0_49] : memref<2x2x4x5x5xf32, #tpu.memory_space<vmem>>, vector<1x1x1x5x5xf32>
    %49 = vector.shape_cast %48 : vector<1x1x1x5x5xf32> to vector<5x5xf32>
    %50 = vector.shape_cast %47 : vector<5x5xf32> to vector<1x1x1x5x5xf32>
    tpu.vector_store %arg21[%c0_45, %c0_46, %c0_47, %c0_48, %c0_49], %50 {strides = array<i32>} : memref<2x2x4x5x5xf32, #tpu.memory_space<vmem>>, vector<1x1x1x5x5xf32>,
    %51 = arith.truncf %47 : vector<5x5xf32> to vector<5x5xbf16>
    %cst_50 = arith.constant dense<0.000000e+00> : vector<5x16xf32>
    %52 = tpu.matmul %51, %37, %cst_50 {dimension_numbers = #tpu.dot_dimension_numbers<[1], [0], [0], [1], [0, 0, 1, 1], [], []>} : vector<5x5xbf16>, vector<5x16xbf16>, vector<5x16xf32> -> vector<5x16xf32>
    %c0_51 = arith.constant 0 : index
    %c0_52 = arith.constant 0 : index
    %53 = vector.load %arg22[%c0_51, %c0_52] : memref<10x64xf32, #tpu.memory_space<vmem>>, vector<5x16xf32>
    tpu.vector_store %arg22[%c0_51, %c0_52], %52 {strides = array<i32>} : memref<10x64xf32, #tpu.memory_space<vmem>>, vector<5x16xf32>,
    %54 = vector.extract_strided_slice %34 {offsets = [0, 16], sizes = [5, 16], strides = [1, 1]} : vector<10x192xbf16> to vector<5x16xbf16>
    %55 = vector.extract_strided_slice %34 {offsets = [0, 80], sizes = [5, 16], strides = [1, 1]} : vector<10x192xbf16> to vector<5x16xbf16>
    %56 = vector.extract_strided_slice %34 {offsets = [0, 144], sizes = [5, 16], strides = [1, 1]} : vector<10x192xbf16> to vector<5x16xbf16>
    %cst_53 = arith.constant dense<0.000000e+00> : vector<5x5xf32>
    %57 = tpu.matmul %54, %55, %cst_53 {dimension_numbers = #tpu.dot_dimension_numbers<[1], [1], [0], [0], [0, 0, 1, 0], [], []>} : vector<5x16xbf16>, vector<5x16xbf16>, vector<5x5xf32> -> vector<5x5xf32>
    %cst_54 = arith.constant dense<0xFF800000> : vector<5xf32>
    %58 = vector.multi_reduction <maximumf>, %57, %cst_54 [1] : vector<5x5xf32> to vector<5xf32>
    %59 = vector.shape_cast %58 : vector<5xf32> to vector<5x1xf32>
    %60 = vector.broadcast %59 : vector<5x1xf32> to vector<5x5xf32>
    %61 = arith.subf %57, %60 : vector<5x5xf32>
    %62 = math.exp %61 : vector<5x5xf32>
    %cst_55 = arith.constant dense<0.000000e+00> : vector<5xf32>
    %63 = vector.multi_reduction <add>, %62, %cst_55 [1] : vector<5x5xf32> to vector<5xf32>
    %64 = vector.shape_cast %63 : vector<5xf32> to vector<5x1xf32>
    %65 = vector.broadcast %64 : vector<5x1xf32> to vector<5x5xf32>
    %66 = arith.divf %62, %65 : vector<5x5xf32>
    %c0_56 = arith.constant 0 : index
    %c0_57 = arith.constant 0 : index
    %c1_58 = arith.constant 1 : index
    %c0_59 = arith.constant 0 : index
    %c0_60 = arith.constant 0 : index
    %67 = vector.load %arg21[%c0_56, %c0_57, %c1_58, %c0_59, %c0_60] : memref<2x2x4x5x5xf32, #tpu.memory_space<vmem>>, vector<1x1x1x5x5xf32>
    %68 = vector.shape_cast %67 : vector<1x1x1x5x5xf32> to vector<5x5xf32>
    %69 = vector.shape_cast %66 : vector<5x5xf32> to vector<1x1x1x5x5xf32>
    tpu.vector_store %arg21[%c0_56, %c0_57, %c1_58, %c0_59, %c0_60], %69 {strides = array<i32>} : memref<2x2x4x5x5xf32, #tpu.memory_space<vmem>>, vector<1x1x1x5x5xf32>,
    %70 = arith.truncf %66 : vector<5x5xf32> to vector<5x5xbf16>
    %cst_61 = arith.constant dense<0.000000e+00> : vector<5x16xf32>
    %71 = tpu.matmul %70, %56, %cst_61 {dimension_numbers = #tpu.dot_dimension_numbers<[1], [0], [0], [1], [0, 0, 1, 1], [], []>} : vector<5x5xbf16>, vector<5x16xbf16>, vector<5x16xf32> -> vector<5x16xf32>
    %c0_62 = arith.constant 0 : index
    %c16 = arith.constant 16 : index
    %72 = vector.load %arg22[%c0_62, %c16] : memref<10x64xf32, #tpu.memory_space<vmem>>, vector<5x16xf32>
    tpu.vector_store %arg22[%c0_62, %c16], %71 {strides = array<i32>} : memref<10x64xf32, #tpu.memory_space<vmem>>, vector<5x16xf32>,
    %73 = vector.extract_strided_slice %34 {offsets = [0, 32], sizes = [5, 16], strides = [1, 1]} : vector<10x192xbf16> to vector<5x16xbf16>
    %74 = vector.extract_strided_slice %34 {offsets = [0, 96], sizes = [5, 16], strides = [1, 1]} : vector<10x192xbf16> to vector<5x16xbf16>
    %75 = vector.extract_strided_slice %34 {offsets = [0, 160], sizes = [5, 16], strides = [1, 1]} : vector<10x192xbf16> to vector<5x16xbf16>
    %cst_63 = arith.constant dense<0.000000e+00> : vector<5x5xf32>
    %76 = tpu.matmul %73, %74, %cst_63 {dimension_numbers = #tpu.dot_dimension_numbers<[1], [1], [0], [0], [0, 0, 1, 0], [], []>} : vector<5x16xbf16>, vector<5x16xbf16>, vector<5x5xf32> -> vector<5x5xf32>
    %cst_64 = arith.constant dense<0xFF800000> : vector<5xf32>
    %77 = vector.multi_reduction <maximumf>, %76, %cst_64 [1] : vector<5x5xf32> to vector<5xf32>
    %78 = vector.shape_cast %77 : vector<5xf32> to vector<5x1xf32>
    %79 = vector.broadcast %78 : vector<5x1xf32> to vector<5x5xf32>
    %80 = arith.subf %76, %79 : vector<5x5xf32>
    %81 = math.exp %80 : vector<5x5xf32>
    %cst_65 = arith.constant dense<0.000000e+00> : vector<5xf32>
    %82 = vector.multi_reduction <add>, %81, %cst_65 [1] : vector<5x5xf32> to vector<5xf32>
    %83 = vector.shape_cast %82 : vector<5xf32> to vector<5x1xf32>
    %84 = vector.broadcast %83 : vector<5x1xf32> to vector<5x5xf32>
    %85 = arith.divf %81, %84 : vector<5x5xf32>
    %c0_66 = arith.constant 0 : index
    %c0_67 = arith.constant 0 : index
    %c2 = arith.constant 2 : index
    %c0_68 = arith.constant 0 : index
    %c0_69 = arith.constant 0 : index
    %86 = vector.load %arg21[%c0_66, %c0_67, %c2, %c0_68, %c0_69] : memref<2x2x4x5x5xf32, #tpu.memory_space<vmem>>, vector<1x1x1x5x5xf32>
    %87 = vector.shape_cast %86 : vector<1x1x1x5x5xf32> to vector<5x5xf32>
    %88 = vector.shape_cast %85 : vector<5x5xf32> to vector<1x1x1x5x5xf32>
    tpu.vector_store %arg21[%c0_66, %c0_67, %c2, %c0_68, %c0_69], %88 {strides = array<i32>} : memref<2x2x4x5x5xf32, #tpu.memory_space<vmem>>, vector<1x1x1x5x5xf32>,
    %89 = arith.truncf %85 : vector<5x5xf32> to vector<5x5xbf16>
    %cst_70 = arith.constant dense<0.000000e+00> : vector<5x16xf32>
    %90 = tpu.matmul %89, %75, %cst_70 {dimension_numbers = #tpu.dot_dimension_numbers<[1], [0], [0], [1], [0, 0, 1, 1], [], []>} : vector<5x5xbf16>, vector<5x16xbf16>, vector<5x16xf32> -> vector<5x16xf32>
    %c0_71 = arith.constant 0 : index
    %c32 = arith.constant 32 : index
    %91 = vector.load %arg22[%c0_71, %c32] : memref<10x64xf32, #tpu.memory_space<vmem>>, vector<5x16xf32>
    tpu.vector_store %arg22[%c0_71, %c32], %90 {strides = array<i32>} : memref<10x64xf32, #tpu.memory_space<vmem>>, vector<5x16xf32>,
    %92 = vector.extract_strided_slice %34 {offsets = [0, 48], sizes = [5, 16], strides = [1, 1]} : vector<10x192xbf16> to vector<5x16xbf16>
    %93 = vector.extract_strided_slice %34 {offsets = [0, 112], sizes = [5, 16], strides = [1, 1]} : vector<10x192xbf16> to vector<5x16xbf16>
    %94 = vector.extract_strided_slice %34 {offsets = [0, 176], sizes = [5, 16], strides = [1, 1]} : vector<10x192xbf16> to vector<5x16xbf16>
    %cst_72 = arith.constant dense<0.000000e+00> : vector<5x5xf32>
    %95 = tpu.matmul %92, %93, %cst_72 {dimension_numbers = #tpu.dot_dimension_numbers<[1], [1], [0], [0], [0, 0, 1, 0], [], []>} : vector<5x16xbf16>, vector<5x16xbf16>, vector<5x5xf32> -> vector<5x5xf32>
    %cst_73 = arith.constant dense<0xFF800000> : vector<5xf32>
    %96 = vector.multi_reduction <maximumf>, %95, %cst_73 [1] : vector<5x5xf32> to vector<5xf32>
    %97 = vector.shape_cast %96 : vector<5xf32> to vector<5x1xf32>
    %98 = vector.broadcast %97 : vector<5x1xf32> to vector<5x5xf32>
    %99 = arith.subf %95, %98 : vector<5x5xf32>
    %100 = math.exp %99 : vector<5x5xf32>
    %cst_74 = arith.constant dense<0.000000e+00> : vector<5xf32>
    %101 = vector.multi_reduction <add>, %100, %cst_74 [1] : vector<5x5xf32> to vector<5xf32>
    %102 = vector.shape_cast %101 : vector<5xf32> to vector<5x1xf32>
    %103 = vector.broadcast %102 : vector<5x1xf32> to vector<5x5xf32>
    %104 = arith.divf %100, %103 : vector<5x5xf32>
    %c0_75 = arith.constant 0 : index
    %c0_76 = arith.constant 0 : index
    %c3 = arith.constant 3 : index
    %c0_77 = arith.constant 0 : index
    %c0_78 = arith.constant 0 : index
    %105 = vector.load %arg21[%c0_75, %c0_76, %c3, %c0_77, %c0_78] : memref<2x2x4x5x5xf32, #tpu.memory_space<vmem>>, vector<1x1x1x5x5xf32>
    %106 = vector.shape_cast %105 : vector<1x1x1x5x5xf32> to vector<5x5xf32>
    %107 = vector.shape_cast %104 : vector<5x5xf32> to vector<1x1x1x5x5xf32>
    tpu.vector_store %arg21[%c0_75, %c0_76, %c3, %c0_77, %c0_78], %107 {strides = array<i32>} : memref<2x2x4x5x5xf32, #tpu.memory_space<vmem>>, vector<1x1x1x5x5xf32>,
    %108 = arith.truncf %104 : vector<5x5xf32> to vector<5x5xbf16>
    %cst_79 = arith.constant dense<0.000000e+00> : vector<5x16xf32>
    %109 = tpu.matmul %108, %94, %cst_79 {dimension_numbers = #tpu.dot_dimension_numbers<[1], [0], [0], [1], [0, 0, 1, 1], [], []>} : vector<5x5xbf16>, vector<5x16xbf16>, vector<5x16xf32> -> vector<5x16xf32>
    %c0_80 = arith.constant 0 : index
    %c48 = arith.constant 48 : index
    %110 = vector.load %arg22[%c0_80, %c48] : memref<10x64xf32, #tpu.memory_space<vmem>>, vector<5x16xf32>
    tpu.vector_store %arg22[%c0_80, %c48], %109 {strides = array<i32>} : memref<10x64xf32, #tpu.memory_space<vmem>>, vector<5x16xf32>,
    %111 = vector.extract_strided_slice %34 {offsets = [5, 0], sizes = [5, 16], strides = [1, 1]} : vector<10x192xbf16> to vector<5x16xbf16>
    %112 = vector.extract_strided_slice %34 {offsets = [5, 64], sizes = [5, 16], strides = [1, 1]} : vector<10x192xbf16> to vector<5x16xbf16>
    %113 = vector.extract_strided_slice %34 {offsets = [5, 128], sizes = [5, 16], strides = [1, 1]} : vector<10x192xbf16> to vector<5x16xbf16>
    %cst_81 = arith.constant dense<0.000000e+00> : vector<5x5xf32>
    %114 = tpu.matmul %111, %112, %cst_81 {dimension_numbers = #tpu.dot_dimension_numbers<[1], [1], [0], [0], [0, 0, 1, 0], [], []>} : vector<5x16xbf16>, vector<5x16xbf16>, vector<5x5xf32> -> vector<5x5xf32>
    %cst_82 = arith.constant dense<0xFF800000> : vector<5xf32>
    %115 = vector.multi_reduction <maximumf>, %114, %cst_82 [1] : vector<5x5xf32> to vector<5xf32>
    %116 = vector.shape_cast %115 : vector<5xf32> to vector<5x1xf32>
    %117 = vector.broadcast %116 : vector<5x1xf32> to vector<5x5xf32>
    %118 = arith.subf %114, %117 : vector<5x5xf32>
    %119 = math.exp %118 : vector<5x5xf32>
    %cst_83 = arith.constant dense<0.000000e+00> : vector<5xf32>
    %120 = vector.multi_reduction <add>, %119, %cst_83 [1] : vector<5x5xf32> to vector<5xf32>
    %121 = vector.shape_cast %120 : vector<5xf32> to vector<5x1xf32>
    %122 = vector.broadcast %121 : vector<5x1xf32> to vector<5x5xf32>
    %123 = arith.divf %119, %122 : vector<5x5xf32>
    %c0_84 = arith.constant 0 : index
    %c1_85 = arith.constant 1 : index
    %c0_86 = arith.constant 0 : index
    %c0_87 = arith.constant 0 : index
    %c0_88 = arith.constant 0 : index
    %124 = vector.load %arg21[%c0_84, %c1_85, %c0_86, %c0_87, %c0_88] : memref<2x2x4x5x5xf32, #tpu.memory_space<vmem>>, vector<1x1x1x5x5xf32>
    %125 = vector.shape_cast %124 : vector<1x1x1x5x5xf32> to vector<5x5xf32>
    %126 = vector.shape_cast %123 : vector<5x5xf32> to vector<1x1x1x5x5xf32>
    tpu.vector_store %arg21[%c0_84, %c1_85, %c0_86, %c0_87, %c0_88], %126 {strides = array<i32>} : memref<2x2x4x5x5xf32, #tpu.memory_space<vmem>>, vector<1x1x1x5x5xf32>,
    %127 = arith.truncf %123 : vector<5x5xf32> to vector<5x5xbf16>
    %cst_89 = arith.constant dense<0.000000e+00> : vector<5x16xf32>
    %128 = tpu.matmul %127, %113, %cst_89 {dimension_numbers = #tpu.dot_dimension_numbers<[1], [0], [0], [1], [0, 0, 1, 1], [], []>} : vector<5x5xbf16>, vector<5x16xbf16>, vector<5x16xf32> -> vector<5x16xf32>
    %c5_90 = arith.constant 5 : index
    %c0_91 = arith.constant 0 : index
    %129 = vector.load %arg22[%c5_90, %c0_91] : memref<10x64xf32, #tpu.memory_space<vmem>>, vector<5x16xf32>
    tpu.vector_store %arg22[%c5_90, %c0_91], %128 {strides = array<i32>} : memref<10x64xf32, #tpu.memory_space<vmem>>, vector<5x16xf32>,
    %130 = vector.extract_strided_slice %34 {offsets = [5, 16], sizes = [5, 16], strides = [1, 1]} : vector<10x192xbf16> to vector<5x16xbf16>
    %131 = vector.extract_strided_slice %34 {offsets = [5, 80], sizes = [5, 16], strides = [1, 1]} : vector<10x192xbf16> to vector<5x16xbf16>
    %132 = vector.extract_strided_slice %34 {offsets = [5, 144], sizes = [5, 16], strides = [1, 1]} : vector<10x192xbf16> to vector<5x16xbf16>
    %cst_92 = arith.constant dense<0.000000e+00> : vector<5x5xf32>
    %133 = tpu.matmul %130, %131, %cst_92 {dimension_numbers = #tpu.dot_dimension_numbers<[1], [1], [0], [0], [0, 0, 1, 0], [], []>} : vector<5x16xbf16>, vector<5x16xbf16>, vector<5x5xf32> -> vector<5x5xf32>
    %cst_93 = arith.constant dense<0xFF800000> : vector<5xf32>
    %134 = vector.multi_reduction <maximumf>, %133, %cst_93 [1] : vector<5x5xf32> to vector<5xf32>
    %135 = vector.shape_cast %134 : vector<5xf32> to vector<5x1xf32>
    %136 = vector.broadcast %135 : vector<5x1xf32> to vector<5x5xf32>
    %137 = arith.subf %133, %136 : vector<5x5xf32>
    %138 = math.exp %137 : vector<5x5xf32>
    %cst_94 = arith.constant dense<0.000000e+00> : vector<5xf32>
    %139 = vector.multi_reduction <add>, %138, %cst_94 [1] : vector<5x5xf32> to vector<5xf32>
    %140 = vector.shape_cast %139 : vector<5xf32> to vector<5x1xf32>
    %141 = vector.broadcast %140 : vector<5x1xf32> to vector<5x5xf32>
    %142 = arith.divf %138, %141 : vector<5x5xf32>
    %c0_95 = arith.constant 0 : index
    %c1_96 = arith.constant 1 : index
    %c1_97 = arith.constant 1 : index
    %c0_98 = arith.constant 0 : index
    %c0_99 = arith.constant 0 : index
    %143 = vector.load %arg21[%c0_95, %c1_96, %c1_97, %c0_98, %c0_99] : memref<2x2x4x5x5xf32, #tpu.memory_space<vmem>>, vector<1x1x1x5x5xf32>
    %144 = vector.shape_cast %143 : vector<1x1x1x5x5xf32> to vector<5x5xf32>
    %145 = vector.shape_cast %142 : vector<5x5xf32> to vector<1x1x1x5x5xf32>
    tpu.vector_store %arg21[%c0_95, %c1_96, %c1_97, %c0_98, %c0_99], %145 {strides = array<i32>} : memref<2x2x4x5x5xf32, #tpu.memory_space<vmem>>, vector<1x1x1x5x5xf32>,
    %146 = arith.truncf %142 : vector<5x5xf32> to vector<5x5xbf16>
    %cst_100 = arith.constant dense<0.000000e+00> : vector<5x16xf32>
    %147 = tpu.matmul %146, %132, %cst_100 {dimension_numbers = #tpu.dot_dimension_numbers<[1], [0], [0], [1], [0, 0, 1, 1], [], []>} : vector<5x5xbf16>, vector<5x16xbf16>, vector<5x16xf32> -> vector<5x16xf32>
    %c5_101 = arith.constant 5 : index
    %c16_102 = arith.constant 16 : index
    %148 = vector.load %arg22[%c5_101, %c16_102] : memref<10x64xf32, #tpu.memory_space<vmem>>, vector<5x16xf32>
    tpu.vector_store %arg22[%c5_101, %c16_102], %147 {strides = array<i32>} : memref<10x64xf32, #tpu.memory_space<vmem>>, vector<5x16xf32>,
    %149 = vector.extract_strided_slice %34 {offsets = [5, 32], sizes = [5, 16], strides = [1, 1]} : vector<10x192xbf16> to vector<5x16xbf16>
    %150 = vector.extract_strided_slice %34 {offsets = [5, 96], sizes = [5, 16], strides = [1, 1]} : vector<10x192xbf16> to vector<5x16xbf16>
    %151 = vector.extract_strided_slice %34 {offsets = [5, 160], sizes = [5, 16], strides = [1, 1]} : vector<10x192xbf16> to vector<5x16xbf16>
    %cst_103 = arith.constant dense<0.000000e+00> : vector<5x5xf32>
    %152 = tpu.matmul %149, %150, %cst_103 {dimension_numbers = #tpu.dot_dimension_numbers<[1], [1], [0], [0], [0, 0, 1, 0], [], []>} : vector<5x16xbf16>, vector<5x16xbf16>, vector<5x5xf32> -> vector<5x5xf32>
    %cst_104 = arith.constant dense<0xFF800000> : vector<5xf32>
    %153 = vector.multi_reduction <maximumf>, %152, %cst_104 [1] : vector<5x5xf32> to vector<5xf32>
    %154 = vector.shape_cast %153 : vector<5xf32> to vector<5x1xf32>
    %155 = vector.broadcast %154 : vector<5x1xf32> to vector<5x5xf32>
    %156 = arith.subf %152, %155 : vector<5x5xf32>
    %157 = math.exp %156 : vector<5x5xf32>
    %cst_105 = arith.constant dense<0.000000e+00> : vector<5xf32>
    %158 = vector.multi_reduction <add>, %157, %cst_105 [1] : vector<5x5xf32> to vector<5xf32>
    %159 = vector.shape_cast %158 : vector<5xf32> to vector<5x1xf32>
    %160 = vector.broadcast %159 : vector<5x1xf32> to vector<5x5xf32>
    %161 = arith.divf %157, %160 : vector<5x5xf32>
    %c0_106 = arith.constant 0 : index
    %c1_107 = arith.constant 1 : index
    %c2_108 = arith.constant 2 : index
    %c0_109 = arith.constant 0 : index
    %c0_110 = arith.constant 0 : index
    %162 = vector.load %arg21[%c0_106, %c1_107, %c2_108, %c0_109, %c0_110] : memref<2x2x4x5x5xf32, #tpu.memory_space<vmem>>, vector<1x1x1x5x5xf32>
    %163 = vector.shape_cast %162 : vector<1x1x1x5x5xf32> to vector<5x5xf32>
    %164 = vector.shape_cast %161 : vector<5x5xf32> to vector<1x1x1x5x5xf32>
    tpu.vector_store %arg21[%c0_106, %c1_107, %c2_108, %c0_109, %c0_110], %164 {strides = array<i32>} : memref<2x2x4x5x5xf32, #tpu.memory_space<vmem>>, vector<1x1x1x5x5xf32>,
    %165 = arith.truncf %161 : vector<5x5xf32> to vector<5x5xbf16>
    %cst_111 = arith.constant dense<0.000000e+00> : vector<5x16xf32>
    %166 = tpu.matmul %165, %151, %cst_111 {dimension_numbers = #tpu.dot_dimension_numbers<[1], [0], [0], [1], [0, 0, 1, 1], [], []>} : vector<5x5xbf16>, vector<5x16xbf16>, vector<5x16xf32> -> vector<5x16xf32>
    %c5_112 = arith.constant 5 : index
    %c32_113 = arith.constant 32 : index
    %167 = vector.load %arg22[%c5_112, %c32_113] : memref<10x64xf32, #tpu.memory_space<vmem>>, vector<5x16xf32>
    tpu.vector_store %arg22[%c5_112, %c32_113], %166 {strides = array<i32>} : memref<10x64xf32, #tpu.memory_space<vmem>>, vector<5x16xf32>,
    %168 = vector.extract_strided_slice %34 {offsets = [5, 48], sizes = [5, 16], strides = [1, 1]} : vector<10x192xbf16> to vector<5x16xbf16>
    %169 = vector.extract_strided_slice %34 {offsets = [5, 112], sizes = [5, 16], strides = [1, 1]} : vector<10x192xbf16> to vector<5x16xbf16>
    %170 = vector.extract_strided_slice %34 {offsets = [5, 176], sizes = [5, 16], strides = [1, 1]} : vector<10x192xbf16> to vector<5x16xbf16>
    %cst_114 = arith.constant dense<0.000000e+00> : vector<5x5xf32>
    %171 = tpu.matmul %168, %169, %cst_114 {dimension_numbers = #tpu.dot_dimension_numbers<[1], [1], [0], [0], [0, 0, 1, 0], [], []>} : vector<5x16xbf16>, vector<5x16xbf16>, vector<5x5xf32> -> vector<5x5xf32>
    %cst_115 = arith.constant dense<0xFF800000> : vector<5xf32>
    %172 = vector.multi_reduction <maximumf>, %171, %cst_115 [1] : vector<5x5xf32> to vector<5xf32>
    %173 = vector.shape_cast %172 : vector<5xf32> to vector<5x1xf32>
    %174 = vector.broadcast %173 : vector<5x1xf32> to vector<5x5xf32>
    %175 = arith.subf %171, %174 : vector<5x5xf32>
    %176 = math.exp %175 : vector<5x5xf32>
    %cst_116 = arith.constant dense<0.000000e+00> : vector<5xf32>
    %177 = vector.multi_reduction <add>, %176, %cst_116 [1] : vector<5x5xf32> to vector<5xf32>
    %178 = vector.shape_cast %177 : vector<5xf32> to vector<5x1xf32>
    %179 = vector.broadcast %178 : vector<5x1xf32> to vector<5x5xf32>
    %180 = arith.divf %176, %179 : vector<5x5xf32>
    %c0_117 = arith.constant 0 : index
    %c1_118 = arith.constant 1 : index
    %c3_119 = arith.constant 3 : index
    %c0_120 = arith.constant 0 : index
    %c0_121 = arith.constant 0 : index
    %181 = vector.load %arg21[%c0_117, %c1_118, %c3_119, %c0_120, %c0_121] : memref<2x2x4x5x5xf32, #tpu.memory_space<vmem>>, vector<1x1x1x5x5xf32>
    %182 = vector.shape_cast %181 : vector<1x1x1x5x5xf32> to vector<5x5xf32>
    %183 = vector.shape_cast %180 : vector<5x5xf32> to vector<1x1x1x5x5xf32>
    tpu.vector_store %arg21[%c0_117, %c1_118, %c3_119, %c0_120, %c0_121], %183 {strides = array<i32>} : memref<2x2x4x5x5xf32, #tpu.memory_space<vmem>>, vector<1x1x1x5x5xf32>,
    %184 = arith.truncf %180 : vector<5x5xf32> to vector<5x5xbf16>
    %cst_122 = arith.constant dense<0.000000e+00> : vector<5x16xf32>
    %185 = tpu.matmul %184, %170, %cst_122 {dimension_numbers = #tpu.dot_dimension_numbers<[1], [0], [0], [1], [0, 0, 1, 1], [], []>} : vector<5x5xbf16>, vector<5x16xbf16>, vector<5x16xf32> -> vector<5x16xf32>
    %c5_123 = arith.constant 5 : index
    %c48_124 = arith.constant 48 : index
    %186 = vector.load %arg22[%c5_123, %c48_124] : memref<10x64xf32, #tpu.memory_space<vmem>>, vector<5x16xf32>
    tpu.vector_store %arg22[%c5_123, %c48_124], %185 {strides = array<i32>} : memref<10x64xf32, #tpu.memory_space<vmem>>, vector<5x16xf32>,
    %c0_125 = arith.constant 0 : index
    %c0_126 = arith.constant 0 : index
    %187 = vector.load %arg22[%c0_125, %c0_126] : memref<10x64xf32, #tpu.memory_space<vmem>>, vector<10x64xf32>
    %188 = arith.truncf %187 : vector<10x64xf32> to vector<10x64xbf16>
    %cst_127 = arith.constant dense<0.000000e+00> : vector<10x64xf32>
    %189 = tpu.matmul %188, %20, %cst_127 {dimension_numbers = #tpu.dot_dimension_numbers<[1], [0], [0], [1], [0, 0, 1, 1], [], []>} : vector<10x64xbf16>, vector<64x64xbf16>, vector<10x64xf32> -> vector<10x64xf32>
    %190 = vector.broadcast %21 : vector<1x64xf32> to vector<10x64xf32>
    %191 = arith.addf %189, %190 : vector<10x64xf32>
    %192 = arith.addf %17, %191 : vector<10x64xf32>
    %cst_128 = arith.constant dense<0.000000e+00> : vector<10xf32>
    %193 = vector.multi_reduction <add>, %192, %cst_128 [1] : vector<10x64xf32> to vector<10xf32>
    %194 = vector.shape_cast %193 : vector<10xf32> to vector<10x1xf32>
    %cst_129 = arith.constant 6.400000e+01 : f32
    %195 = vector.broadcast %cst_129 : f32 to vector<10x1xf32>
    %196 = arith.divf %194, %195 : vector<10x1xf32>
    %197 = vector.broadcast %196 : vector<10x1xf32> to vector<10x64xf32>
    %198 = arith.subf %192, %197 : vector<10x64xf32>
    %199 = arith.mulf %198, %198 : vector<10x64xf32>
    %cst_130 = arith.constant dense<0.000000e+00> : vector<10xf32>
    %200 = vector.multi_reduction <add>, %199, %cst_130 [1] : vector<10x64xf32> to vector<10xf32>
    %201 = vector.shape_cast %200 : vector<10xf32> to vector<10x1xf32>
    %cst_131 = arith.constant 6.400000e+01 : f32
    %202 = vector.broadcast %cst_131 : f32 to vector<10x1xf32>
    %203 = arith.divf %201, %202 : vector<10x1xf32>
    %204 = vector.broadcast %196 : vector<10x1xf32> to vector<10x64xf32>
    %205 = arith.subf %192, %204 : vector<10x64xf32>
    %cst_132 = arith.constant 9.99999974E-6 : f32
    %206 = vector.broadcast %cst_132 : f32 to vector<10x1xf32>
    %207 = arith.addf %203, %206 : vector<10x1xf32>
    %208 = math.rsqrt %207 : vector<10x1xf32>
    %209 = vector.broadcast %208 : vector<10x1xf32> to vector<10x64xf32>
    %210 = arith.mulf %205, %209 : vector<10x64xf32>
    %211 = vector.broadcast %26 : vector<1x64xf32> to vector<10x64xf32>
    %212 = arith.mulf %210, %211 : vector<10x64xf32>
    %213 = vector.broadcast %27 : vector<1x64xf32> to vector<10x64xf32>
    %214 = arith.addf %212, %213 : vector<10x64xf32>
    %215 = arith.truncf %214 : vector<10x64xf32> to vector<10x64xbf16>
    %cst_133 = arith.constant dense<0.000000e+00> : vector<10x128xf32>
    %216 = tpu.matmul %215, %22, %cst_133 {dimension_numbers = #tpu.dot_dimension_numbers<[1], [0], [0], [1], [0, 0, 1, 1], [], []>} : vector<10x64xbf16>, vector<64x128xbf16>, vector<10x128xf32> -> vector<10x128xf32>
    %217 = vector.broadcast %23 : vector<1x128xf32> to vector<10x128xf32>
    %218 = arith.addf %216, %217 : vector<10x128xf32>
    %cst_134 = arith.constant 0.000000e+00 : f32
    %219 = vector.broadcast %cst_134 : f32 to vector<10x128xf32>
    %220 = arith.maximumf %218, %219 : vector<10x128xf32>
    %221 = arith.truncf %220 : vector<10x128xf32> to vector<10x128xbf16>
    %cst_135 = arith.constant dense<0.000000e+00> : vector<10x64xf32>
    %222 = tpu.matmul %221, %24, %cst_135 {dimension_numbers = #tpu.dot_dimension_numbers<[1], [0], [0], [1], [0, 0, 1, 1], [], []>} : vector<10x128xbf16>, vector<128x64xbf16>, vector<10x64xf32> -> vector<10x64xf32>
    %223 = vector.broadcast %25 : vector<1x64xf32> to vector<10x64xf32>
    %224 = arith.addf %222, %223 : vector<10x64xf32>
    %225 = arith.addf %214, %224 : vector<10x64xf32>
    %cst_136 = arith.constant dense<0.000000e+00> : vector<10xf32>
    %226 = vector.multi_reduction <add>, %225, %cst_136 [1] : vector<10x64xf32> to vector<10xf32>
    %227 = vector.shape_cast %226 : vector<10xf32> to vector<10x1xf32>
    %cst_137 = arith.constant 6.400000e+01 : f32
    %228 = vector.broadcast %cst_137 : f32 to vector<10x1xf32>
    %229 = arith.divf %227, %228 : vector<10x1xf32>
    %230 = vector.broadcast %229 : vector<10x1xf32> to vector<10x64xf32>
    %231 = arith.subf %225, %230 : vector<10x64xf32>
    %232 = arith.mulf %231, %231 : vector<10x64xf32>
    %cst_138 = arith.constant dense<0.000000e+00> : vector<10xf32>
    %233 = vector.multi_reduction <add>, %232, %cst_138 [1] : vector<10x64xf32> to vector<10xf32>
    %234 = vector.shape_cast %233 : vector<10xf32> to vector<10x1xf32>
    %cst_139 = arith.constant 6.400000e+01 : f32
    %235 = vector.broadcast %cst_139 : f32 to vector<10x1xf32>
    %236 = arith.divf %234, %235 : vector<10x1xf32>
    %237 = vector.broadcast %229 : vector<10x1xf32> to vector<10x64xf32>
    %238 = arith.subf %225, %237 : vector<10x64xf32>
    %cst_140 = arith.constant 9.99999974E-6 : f32
    %239 = vector.broadcast %cst_140 : f32 to vector<10x1xf32>
    %240 = arith.addf %236, %239 : vector<10x1xf32>
    %241 = math.rsqrt %240 : vector<10x1xf32>
    %242 = vector.broadcast %241 : vector<10x1xf32> to vector<10x64xf32>
    %243 = arith.mulf %238, %242 : vector<10x64xf32>
    %244 = vector.broadcast %28 : vector<1x64xf32> to vector<10x64xf32>
    %245 = arith.mulf %243, %244 : vector<10x64xf32>
    %246 = vector.broadcast %29 : vector<1x64xf32> to vector<10x64xf32>
    %247 = arith.addf %245, %246 : vector<10x64xf32>
    %248 = arith.truncf %247 : vector<10x64xf32> to vector<10x64xbf16>
    %cst_141 = arith.constant dense<0.000000e+00> : vector<10x192xf32>
    %249 = tpu.matmul %248, %18, %cst_141 {dimension_numbers = #tpu.dot_dimension_numbers<[1], [0], [0], [1], [0, 0, 1, 1], [], []>} : vector<10x64xbf16>, vector<64x192xbf16>, vector<10x192xf32> -> vector<10x192xf32>
    %250 = vector.broadcast %19 : vector<1x192xf32> to vector<10x192xf32>
    %251 = arith.addf %249, %250 : vector<10x192xf32>
    %252 = arith.truncf %251 : vector<10x192xf32> to vector<10x192xbf16>
    %253 = vector.extract_strided_slice %252 {offsets = [0, 0], sizes = [5, 16], strides = [1, 1]} : vector<10x192xbf16> to vector<5x16xbf16>
    %254 = vector.extract_strided_slice %252 {offsets = [0, 64], sizes = [5, 16], strides = [1, 1]} : vector<10x192xbf16> to vector<5x16xbf16>
    %255 = vector.extract_strided_slice %252 {offsets = [0, 128], sizes = [5, 16], strides = [1, 1]} : vector<10x192xbf16> to vector<5x16xbf16>
    %cst_142 = arith.constant dense<0.000000e+00> : vector<5x5xf32>
    %256 = tpu.matmul %253, %254, %cst_142 {dimension_numbers = #tpu.dot_dimension_numbers<[1], [1], [0], [0], [0, 0, 1, 0], [], []>} : vector<5x16xbf16>, vector<5x16xbf16>, vector<5x5xf32> -> vector<5x5xf32>
    %cst_143 = arith.constant dense<0xFF800000> : vector<5xf32>
    %257 = vector.multi_reduction <maximumf>, %256, %cst_143 [1] : vector<5x5xf32> to vector<5xf32>
    %258 = vector.shape_cast %257 : vector<5xf32> to vector<5x1xf32>
    %259 = vector.broadcast %258 : vector<5x1xf32> to vector<5x5xf32>
    %260 = arith.subf %256, %259 : vector<5x5xf32>
    %261 = math.exp %260 : vector<5x5xf32>
    %cst_144 = arith.constant dense<0.000000e+00> : vector<5xf32>
    %262 = vector.multi_reduction <add>, %261, %cst_144 [1] : vector<5x5xf32> to vector<5xf32>
    %263 = vector.shape_cast %262 : vector<5xf32> to vector<5x1xf32>
    %264 = vector.broadcast %263 : vector<5x1xf32> to vector<5x5xf32>
    %265 = arith.divf %261, %264 : vector<5x5xf32>
    %c1_145 = arith.constant 1 : index
    %c0_146 = arith.constant 0 : index
    %c0_147 = arith.constant 0 : index
    %c0_148 = arith.constant 0 : index
    %c0_149 = arith.constant 0 : index
    %266 = vector.load %arg21[%c1_145, %c0_146, %c0_147, %c0_148, %c0_149] : memref<2x2x4x5x5xf32, #tpu.memory_space<vmem>>, vector<1x1x1x5x5xf32>
    %267 = vector.shape_cast %266 : vector<1x1x1x5x5xf32> to vector<5x5xf32>
    %268 = vector.shape_cast %265 : vector<5x5xf32> to vector<1x1x1x5x5xf32>
    tpu.vector_store %arg21[%c1_145, %c0_146, %c0_147, %c0_148, %c0_149], %268 {strides = array<i32>} : memref<2x2x4x5x5xf32, #tpu.memory_space<vmem>>, vector<1x1x1x5x5xf32>,
    %269 = arith.truncf %265 : vector<5x5xf32> to vector<5x5xbf16>
    %cst_150 = arith.constant dense<0.000000e+00> : vector<5x16xf32>
    %270 = tpu.matmul %269, %255, %cst_150 {dimension_numbers = #tpu.dot_dimension_numbers<[1], [0], [0], [1], [0, 0, 1, 1], [], []>} : vector<5x5xbf16>, vector<5x16xbf16>, vector<5x16xf32> -> vector<5x16xf32>
    %c0_151 = arith.constant 0 : index
    %c0_152 = arith.constant 0 : index
    %271 = vector.load %arg22[%c0_151, %c0_152] : memref<10x64xf32, #tpu.memory_space<vmem>>, vector<5x16xf32>
    tpu.vector_store %arg22[%c0_151, %c0_152], %270 {strides = array<i32>} : memref<10x64xf32, #tpu.memory_space<vmem>>, vector<5x16xf32>,
    %272 = vector.extract_strided_slice %252 {offsets = [0, 16], sizes = [5, 16], strides = [1, 1]} : vector<10x192xbf16> to vector<5x16xbf16>
    %273 = vector.extract_strided_slice %252 {offsets = [0, 80], sizes = [5, 16], strides = [1, 1]} : vector<10x192xbf16> to vector<5x16xbf16>
    %274 = vector.extract_strided_slice %252 {offsets = [0, 144], sizes = [5, 16], strides = [1, 1]} : vector<10x192xbf16> to vector<5x16xbf16>
    %cst_153 = arith.constant dense<0.000000e+00> : vector<5x5xf32>
    %275 = tpu.matmul %272, %273, %cst_153 {dimension_numbers = #tpu.dot_dimension_numbers<[1], [1], [0], [0], [0, 0, 1, 0], [], []>} : vector<5x16xbf16>, vector<5x16xbf16>, vector<5x5xf32> -> vector<5x5xf32>
    %cst_154 = arith.constant dense<0xFF800000> : vector<5xf32>
    %276 = vector.multi_reduction <maximumf>, %275, %cst_154 [1] : vector<5x5xf32> to vector<5xf32>
    %277 = vector.shape_cast %276 : vector<5xf32> to vector<5x1xf32>
    %278 = vector.broadcast %277 : vector<5x1xf32> to vector<5x5xf32>
    %279 = arith.subf %275, %278 : vector<5x5xf32>
    %280 = math.exp %279 : vector<5x5xf32>
    %cst_155 = arith.constant dense<0.000000e+00> : vector<5xf32>
    %281 = vector.multi_reduction <add>, %280, %cst_155 [1] : vector<5x5xf32> to vector<5xf32>
    %282 = vector.shape_cast %281 : vector<5xf32> to vector<5x1xf32>
    %283 = vector.broadcast %282 : vector<5x1xf32> to vector<5x5xf32>
    %284 = arith.divf %280, %283 : vector<5x5xf32>
    %c1_156 = arith.constant 1 : index
    %c0_157 = arith.constant 0 : index
    %c1_158 = arith.constant 1 : index
    %c0_159 = arith.constant 0 : index
    %c0_160 = arith.constant 0 : index
    %285 = vector.load %arg21[%c1_156, %c0_157, %c1_158, %c0_159, %c0_160] : memref<2x2x4x5x5xf32, #tpu.memory_space<vmem>>, vector<1x1x1x5x5xf32>
    %286 = vector.shape_cast %285 : vector<1x1x1x5x5xf32> to vector<5x5xf32>
    %287 = vector.shape_cast %284 : vector<5x5xf32> to vector<1x1x1x5x5xf32>
    tpu.vector_store %arg21[%c1_156, %c0_157, %c1_158, %c0_159, %c0_160], %287 {strides = array<i32>} : memref<2x2x4x5x5xf32, #tpu.memory_space<vmem>>, vector<1x1x1x5x5xf32>,
    %288 = arith.truncf %284 : vector<5x5xf32> to vector<5x5xbf16>
    %cst_161 = arith.constant dense<0.000000e+00> : vector<5x16xf32>
    %289 = tpu.matmul %288, %274, %cst_161 {dimension_numbers = #tpu.dot_dimension_numbers<[1], [0], [0], [1], [0, 0, 1, 1], [], []>} : vector<5x5xbf16>, vector<5x16xbf16>, vector<5x16xf32> -> vector<5x16xf32>
    %c0_162 = arith.constant 0 : index
    %c16_163 = arith.constant 16 : index
    %290 = vector.load %arg22[%c0_162, %c16_163] : memref<10x64xf32, #tpu.memory_space<vmem>>, vector<5x16xf32>
    tpu.vector_store %arg22[%c0_162, %c16_163], %289 {strides = array<i32>} : memref<10x64xf32, #tpu.memory_space<vmem>>, vector<5x16xf32>,
    %291 = vector.extract_strided_slice %252 {offsets = [0, 32], sizes = [5, 16], strides = [1, 1]} : vector<10x192xbf16> to vector<5x16xbf16>
    %292 = vector.extract_strided_slice %252 {offsets = [0, 96], sizes = [5, 16], strides = [1, 1]} : vector<10x192xbf16> to vector<5x16xbf16>
    %293 = vector.extract_strided_slice %252 {offsets = [0, 160], sizes = [5, 16], strides = [1, 1]} : vector<10x192xbf16> to vector<5x16xbf16>
    %cst_164 = arith.constant dense<0.000000e+00> : vector<5x5xf32>
    %294 = tpu.matmul %291, %292, %cst_164 {dimension_numbers = #tpu.dot_dimension_numbers<[1], [1], [0], [0], [0, 0, 1, 0], [], []>} : vector<5x16xbf16>, vector<5x16xbf16>, vector<5x5xf32> -> vector<5x5xf32>
    %cst_165 = arith.constant dense<0xFF800000> : vector<5xf32>
    %295 = vector.multi_reduction <maximumf>, %294, %cst_165 [1] : vector<5x5xf32> to vector<5xf32>
    %296 = vector.shape_cast %295 : vector<5xf32> to vector<5x1xf32>
    %297 = vector.broadcast %296 : vector<5x1xf32> to vector<5x5xf32>
    %298 = arith.subf %294, %297 : vector<5x5xf32>
    %299 = math.exp %298 : vector<5x5xf32>
    %cst_166 = arith.constant dense<0.000000e+00> : vector<5xf32>
    %300 = vector.multi_reduction <add>, %299, %cst_166 [1] : vector<5x5xf32> to vector<5xf32>
    %301 = vector.shape_cast %300 : vector<5xf32> to vector<5x1xf32>
    %302 = vector.broadcast %301 : vector<5x1xf32> to vector<5x5xf32>
    %303 = arith.divf %299, %302 : vector<5x5xf32>
    %c1_167 = arith.constant 1 : index
    %c0_168 = arith.constant 0 : index
    %c2_169 = arith.constant 2 : index
    %c0_170 = arith.constant 0 : index
    %c0_171 = arith.constant 0 : index
    %304 = vector.load %arg21[%c1_167, %c0_168, %c2_169, %c0_170, %c0_171] : memref<2x2x4x5x5xf32, #tpu.memory_space<vmem>>, vector<1x1x1x5x5xf32>
    %305 = vector.shape_cast %304 : vector<1x1x1x5x5xf32> to vector<5x5xf32>
    %306 = vector.shape_cast %303 : vector<5x5xf32> to vector<1x1x1x5x5xf32>
    tpu.vector_store %arg21[%c1_167, %c0_168, %c2_169, %c0_170, %c0_171], %306 {strides = array<i32>} : memref<2x2x4x5x5xf32, #tpu.memory_space<vmem>>, vector<1x1x1x5x5xf32>,
    %307 = arith.truncf %303 : vector<5x5xf32> to vector<5x5xbf16>
    %cst_172 = arith.constant dense<0.000000e+00> : vector<5x16xf32>
    %308 = tpu.matmul %307, %293, %cst_172 {dimension_numbers = #tpu.dot_dimension_numbers<[1], [0], [0], [1], [0, 0, 1, 1], [], []>} : vector<5x5xbf16>, vector<5x16xbf16>, vector<5x16xf32> -> vector<5x16xf32>
    %c0_173 = arith.constant 0 : index
    %c32_174 = arith.constant 32 : index
    %309 = vector.load %arg22[%c0_173, %c32_174] : memref<10x64xf32, #tpu.memory_space<vmem>>, vector<5x16xf32>
    tpu.vector_store %arg22[%c0_173, %c32_174], %308 {strides = array<i32>} : memref<10x64xf32, #tpu.memory_space<vmem>>, vector<5x16xf32>,
    %310 = vector.extract_strided_slice %252 {offsets = [0, 48], sizes = [5, 16], strides = [1, 1]} : vector<10x192xbf16> to vector<5x16xbf16>
    %311 = vector.extract_strided_slice %252 {offsets = [0, 112], sizes = [5, 16], strides = [1, 1]} : vector<10x192xbf16> to vector<5x16xbf16>
    %312 = vector.extract_strided_slice %252 {offsets = [0, 176], sizes = [5, 16], strides = [1, 1]} : vector<10x192xbf16> to vector<5x16xbf16>
    %cst_175 = arith.constant dense<0.000000e+00> : vector<5x5xf32>
    %313 = tpu.matmul %310, %311, %cst_175 {dimension_numbers = #tpu.dot_dimension_numbers<[1], [1], [0], [0], [0, 0, 1, 0], [], []>} : vector<5x16xbf16>, vector<5x16xbf16>, vector<5x5xf32> -> vector<5x5xf32>
    %cst_176 = arith.constant dense<0xFF800000> : vector<5xf32>
    %314 = vector.multi_reduction <maximumf>, %313, %cst_176 [1] : vector<5x5xf32> to vector<5xf32>
    %315 = vector.shape_cast %314 : vector<5xf32> to vector<5x1xf32>
    %316 = vector.broadcast %315 : vector<5x1xf32> to vector<5x5xf32>
    %317 = arith.subf %313, %316 : vector<5x5xf32>
    %318 = math.exp %317 : vector<5x5xf32>
    %cst_177 = arith.constant dense<0.000000e+00> : vector<5xf32>
    %319 = vector.multi_reduction <add>, %318, %cst_177 [1] : vector<5x5xf32> to vector<5xf32>
    %320 = vector.shape_cast %319 : vector<5xf32> to vector<5x1xf32>
    %321 = vector.broadcast %320 : vector<5x1xf32> to vector<5x5xf32>
    %322 = arith.divf %318, %321 : vector<5x5xf32>
    %c1_178 = arith.constant 1 : index
    %c0_179 = arith.constant 0 : index
    %c3_180 = arith.constant 3 : index
    %c0_181 = arith.constant 0 : index
    %c0_182 = arith.constant 0 : index
    %323 = vector.load %arg21[%c1_178, %c0_179, %c3_180, %c0_181, %c0_182] : memref<2x2x4x5x5xf32, #tpu.memory_space<vmem>>, vector<1x1x1x5x5xf32>
    %324 = vector.shape_cast %323 : vector<1x1x1x5x5xf32> to vector<5x5xf32>
    %325 = vector.shape_cast %322 : vector<5x5xf32> to vector<1x1x1x5x5xf32>
    tpu.vector_store %arg21[%c1_178, %c0_179, %c3_180, %c0_181, %c0_182], %325 {strides = array<i32>} : memref<2x2x4x5x5xf32, #tpu.memory_space<vmem>>, vector<1x1x1x5x5xf32>,
    %326 = arith.truncf %322 : vector<5x5xf32> to vector<5x5xbf16>
    %cst_183 = arith.constant dense<0.000000e+00> : vector<5x16xf32>
    %327 = tpu.matmul %326, %312, %cst_183 {dimension_numbers = #tpu.dot_dimension_numbers<[1], [0], [0], [1], [0, 0, 1, 1], [], []>} : vector<5x5xbf16>, vector<5x16xbf16>, vector<5x16xf32> -> vector<5x16xf32>
    %c0_184 = arith.constant 0 : index
    %c48_185 = arith.constant 48 : index
    %328 = vector.load %arg22[%c0_184, %c48_185] : memref<10x64xf32, #tpu.memory_space<vmem>>, vector<5x16xf32>
    tpu.vector_store %arg22[%c0_184, %c48_185], %327 {strides = array<i32>} : memref<10x64xf32, #tpu.memory_space<vmem>>, vector<5x16xf32>,
    %329 = vector.extract_strided_slice %252 {offsets = [5, 0], sizes = [5, 16], strides = [1, 1]} : vector<10x192xbf16> to vector<5x16xbf16>
    %330 = vector.extract_strided_slice %252 {offsets = [5, 64], sizes = [5, 16], strides = [1, 1]} : vector<10x192xbf16> to vector<5x16xbf16>
    %331 = vector.extract_strided_slice %252 {offsets = [5, 128], sizes = [5, 16], strides = [1, 1]} : vector<10x192xbf16> to vector<5x16xbf16>
    %cst_186 = arith.constant dense<0.000000e+00> : vector<5x5xf32>
    %332 = tpu.matmul %329, %330, %cst_186 {dimension_numbers = #tpu.dot_dimension_numbers<[1], [1], [0], [0], [0, 0, 1, 0], [], []>} : vector<5x16xbf16>, vector<5x16xbf16>, vector<5x5xf32> -> vector<5x5xf32>
    %cst_187 = arith.constant dense<0xFF800000> : vector<5xf32>
    %333 = vector.multi_reduction <maximumf>, %332, %cst_187 [1] : vector<5x5xf32> to vector<5xf32>
    %334 = vector.shape_cast %333 : vector<5xf32> to vector<5x1xf32>
    %335 = vector.broadcast %334 : vector<5x1xf32> to vector<5x5xf32>
    %336 = arith.subf %332, %335 : vector<5x5xf32>
    %337 = math.exp %336 : vector<5x5xf32>
    %cst_188 = arith.constant dense<0.000000e+00> : vector<5xf32>
    %338 = vector.multi_reduction <add>, %337, %cst_188 [1] : vector<5x5xf32> to vector<5xf32>
    %339 = vector.shape_cast %338 : vector<5xf32> to vector<5x1xf32>
    %340 = vector.broadcast %339 : vector<5x1xf32> to vector<5x5xf32>
    %341 = arith.divf %337, %340 : vector<5x5xf32>
    %c1_189 = arith.constant 1 : index
    %c1_190 = arith.constant 1 : index
    %c0_191 = arith.constant 0 : index
    %c0_192 = arith.constant 0 : index
    %c0_193 = arith.constant 0 : index
    %342 = vector.load %arg21[%c1_189, %c1_190, %c0_191, %c0_192, %c0_193] : memref<2x2x4x5x5xf32, #tpu.memory_space<vmem>>, vector<1x1x1x5x5xf32>
    %343 = vector.shape_cast %342 : vector<1x1x1x5x5xf32> to vector<5x5xf32>
    %344 = vector.shape_cast %341 : vector<5x5xf32> to vector<1x1x1x5x5xf32>
    tpu.vector_store %arg21[%c1_189, %c1_190, %c0_191, %c0_192, %c0_193], %344 {strides = array<i32>} : memref<2x2x4x5x5xf32, #tpu.memory_space<vmem>>, vector<1x1x1x5x5xf32>,
    %345 = arith.truncf %341 : vector<5x5xf32> to vector<5x5xbf16>
    %cst_194 = arith.constant dense<0.000000e+00> : vector<5x16xf32>
    %346 = tpu.matmul %345, %331, %cst_194 {dimension_numbers = #tpu.dot_dimension_numbers<[1], [0], [0], [1], [0, 0, 1, 1], [], []>} : vector<5x5xbf16>, vector<5x16xbf16>, vector<5x16xf32> -> vector<5x16xf32>
    %c5_195 = arith.constant 5 : index
    %c0_196 = arith.constant 0 : index
    %347 = vector.load %arg22[%c5_195, %c0_196] : memref<10x64xf32, #tpu.memory_space<vmem>>, vector<5x16xf32>
    tpu.vector_store %arg22[%c5_195, %c0_196], %346 {strides = array<i32>} : memref<10x64xf32, #tpu.memory_space<vmem>>, vector<5x16xf32>,
    %348 = vector.extract_strided_slice %252 {offsets = [5, 16], sizes = [5, 16], strides = [1, 1]} : vector<10x192xbf16> to vector<5x16xbf16>
    %349 = vector.extract_strided_slice %252 {offsets = [5, 80], sizes = [5, 16], strides = [1, 1]} : vector<10x192xbf16> to vector<5x16xbf16>
    %350 = vector.extract_strided_slice %252 {offsets = [5, 144], sizes = [5, 16], strides = [1, 1]} : vector<10x192xbf16> to vector<5x16xbf16>
    %cst_197 = arith.constant dense<0.000000e+00> : vector<5x5xf32>
    %351 = tpu.matmul %348, %349, %cst_197 {dimension_numbers = #tpu.dot_dimension_numbers<[1], [1], [0], [0], [0, 0, 1, 0], [], []>} : vector<5x16xbf16>, vector<5x16xbf16>, vector<5x5xf32> -> vector<5x5xf32>
    %cst_198 = arith.constant dense<0xFF800000> : vector<5xf32>
    %352 = vector.multi_reduction <maximumf>, %351, %cst_198 [1] : vector<5x5xf32> to vector<5xf32>
    %353 = vector.shape_cast %352 : vector<5xf32> to vector<5x1xf32>
    %354 = vector.broadcast %353 : vector<5x1xf32> to vector<5x5xf32>
    %355 = arith.subf %351, %354 : vector<5x5xf32>
    %356 = math.exp %355 : vector<5x5xf32>
    %cst_199 = arith.constant dense<0.000000e+00> : vector<5xf32>
    %357 = vector.multi_reduction <add>, %356, %cst_199 [1] : vector<5x5xf32> to vector<5xf32>
    %358 = vector.shape_cast %357 : vector<5xf32> to vector<5x1xf32>
    %359 = vector.broadcast %358 : vector<5x1xf32> to vector<5x5xf32>
    %360 = arith.divf %356, %359 : vector<5x5xf32>
    %c1_200 = arith.constant 1 : index
    %c1_201 = arith.constant 1 : index
    %c1_202 = arith.constant 1 : index
    %c0_203 = arith.constant 0 : index
    %c0_204 = arith.constant 0 : index
    %361 = vector.load %arg21[%c1_200, %c1_201, %c1_202, %c0_203, %c0_204] : memref<2x2x4x5x5xf32, #tpu.memory_space<vmem>>, vector<1x1x1x5x5xf32>
    %362 = vector.shape_cast %361 : vector<1x1x1x5x5xf32> to vector<5x5xf32>
    %363 = vector.shape_cast %360 : vector<5x5xf32> to vector<1x1x1x5x5xf32>
    tpu.vector_store %arg21[%c1_200, %c1_201, %c1_202, %c0_203, %c0_204], %363 {strides = array<i32>} : memref<2x2x4x5x5xf32, #tpu.memory_space<vmem>>, vector<1x1x1x5x5xf32>,
    %364 = arith.truncf %360 : vector<5x5xf32> to vector<5x5xbf16>
    %cst_205 = arith.constant dense<0.000000e+00> : vector<5x16xf32>
    %365 = tpu.matmul %364, %350, %cst_205 {dimension_numbers = #tpu.dot_dimension_numbers<[1], [0], [0], [1], [0, 0, 1, 1], [], []>} : vector<5x5xbf16>, vector<5x16xbf16>, vector<5x16xf32> -> vector<5x16xf32>
    %c5_206 = arith.constant 5 : index
    %c16_207 = arith.constant 16 : index
    %366 = vector.load %arg22[%c5_206, %c16_207] : memref<10x64xf32, #tpu.memory_space<vmem>>, vector<5x16xf32>
    tpu.vector_store %arg22[%c5_206, %c16_207], %365 {strides = array<i32>} : memref<10x64xf32, #tpu.memory_space<vmem>>, vector<5x16xf32>,
    %367 = vector.extract_strided_slice %252 {offsets = [5, 32], sizes = [5, 16], strides = [1, 1]} : vector<10x192xbf16> to vector<5x16xbf16>
    %368 = vector.extract_strided_slice %252 {offsets = [5, 96], sizes = [5, 16], strides = [1, 1]} : vector<10x192xbf16> to vector<5x16xbf16>
    %369 = vector.extract_strided_slice %252 {offsets = [5, 160], sizes = [5, 16], strides = [1, 1]} : vector<10x192xbf16> to vector<5x16xbf16>
    %cst_208 = arith.constant dense<0.000000e+00> : vector<5x5xf32>
    %370 = tpu.matmul %367, %368, %cst_208 {dimension_numbers = #tpu.dot_dimension_numbers<[1], [1], [0], [0], [0, 0, 1, 0], [], []>} : vector<5x16xbf16>, vector<5x16xbf16>, vector<5x5xf32> -> vector<5x5xf32>
    %cst_209 = arith.constant dense<0xFF800000> : vector<5xf32>
    %371 = vector.multi_reduction <maximumf>, %370, %cst_209 [1] : vector<5x5xf32> to vector<5xf32>
    %372 = vector.shape_cast %371 : vector<5xf32> to vector<5x1xf32>
    %373 = vector.broadcast %372 : vector<5x1xf32> to vector<5x5xf32>
    %374 = arith.subf %370, %373 : vector<5x5xf32>
    %375 = math.exp %374 : vector<5x5xf32>
    %cst_210 = arith.constant dense<0.000000e+00> : vector<5xf32>
    %376 = vector.multi_reduction <add>, %375, %cst_210 [1] : vector<5x5xf32> to vector<5xf32>
    %377 = vector.shape_cast %376 : vector<5xf32> to vector<5x1xf32>
    %378 = vector.broadcast %377 : vector<5x1xf32> to vector<5x5xf32>
    %379 = arith.divf %375, %378 : vector<5x5xf32>
    %c1_211 = arith.constant 1 : index
    %c1_212 = arith.constant 1 : index
    %c2_213 = arith.constant 2 : index
    %c0_214 = arith.constant 0 : index
    %c0_215 = arith.constant 0 : index
    %380 = vector.load %arg21[%c1_211, %c1_212, %c2_213, %c0_214, %c0_215] : memref<2x2x4x5x5xf32, #tpu.memory_space<vmem>>, vector<1x1x1x5x5xf32>
    %381 = vector.shape_cast %380 : vector<1x1x1x5x5xf32> to vector<5x5xf32>
    %382 = vector.shape_cast %379 : vector<5x5xf32> to vector<1x1x1x5x5xf32>
    tpu.vector_store %arg21[%c1_211, %c1_212, %c2_213, %c0_214, %c0_215], %382 {strides = array<i32>} : memref<2x2x4x5x5xf32, #tpu.memory_space<vmem>>, vector<1x1x1x5x5xf32>,
    %383 = arith.truncf %379 : vector<5x5xf32> to vector<5x5xbf16>
    %cst_216 = arith.constant dense<0.000000e+00> : vector<5x16xf32>
    %384 = tpu.matmul %383, %369, %cst_216 {dimension_numbers = #tpu.dot_dimension_numbers<[1], [0], [0], [1], [0, 0, 1, 1], [], []>} : vector<5x5xbf16>, vector<5x16xbf16>, vector<5x16xf32> -> vector<5x16xf32>
    %c5_217 = arith.constant 5 : index
    %c32_218 = arith.constant 32 : index
    %385 = vector.load %arg22[%c5_217, %c32_218] : memref<10x64xf32, #tpu.memory_space<vmem>>, vector<5x16xf32>
    tpu.vector_store %arg22[%c5_217, %c32_218], %384 {strides = array<i32>} : memref<10x64xf32, #tpu.memory_space<vmem>>, vector<5x16xf32>,
    %386 = vector.extract_strided_slice %252 {offsets = [5, 48], sizes = [5, 16], strides = [1, 1]} : vector<10x192xbf16> to vector<5x16xbf16>
    %387 = vector.extract_strided_slice %252 {offsets = [5, 112], sizes = [5, 16], strides = [1, 1]} : vector<10x192xbf16> to vector<5x16xbf16>
    %388 = vector.extract_strided_slice %252 {offsets = [5, 176], sizes = [5, 16], strides = [1, 1]} : vector<10x192xbf16> to vector<5x16xbf16>
    %cst_219 = arith.constant dense<0.000000e+00> : vector<5x5xf32>
    %389 = tpu.matmul %386, %387, %cst_219 {dimension_numbers = #tpu.dot_dimension_numbers<[1], [1], [0], [0], [0, 0, 1, 0], [], []>} : vector<5x16xbf16>, vector<5x16xbf16>, vector<5x5xf32> -> vector<5x5xf32>
    %cst_220 = arith.constant dense<0xFF800000> : vector<5xf32>
    %390 = vector.multi_reduction <maximumf>, %389, %cst_220 [1] : vector<5x5xf32> to vector<5xf32>
    %391 = vector.shape_cast %390 : vector<5xf32> to vector<5x1xf32>
    %392 = vector.broadcast %391 : vector<5x1xf32> to vector<5x5xf32>
    %393 = arith.subf %389, %392 : vector<5x5xf32>
    %394 = math.exp %393 : vector<5x5xf32>
    %cst_221 = arith.constant dense<0.000000e+00> : vector<5xf32>
    %395 = vector.multi_reduction <add>, %394, %cst_221 [1] : vector<5x5xf32> to vector<5xf32>
    %396 = vector.shape_cast %395 : vector<5xf32> to vector<5x1xf32>
    %397 = vector.broadcast %396 : vector<5x1xf32> to vector<5x5xf32>
    %398 = arith.divf %394, %397 : vector<5x5xf32>
    %c1_222 = arith.constant 1 : index
    %c1_223 = arith.constant 1 : index
    %c3_224 = arith.constant 3 : index
    %c0_225 = arith.constant 0 : index
    %c0_226 = arith.constant 0 : index
    %399 = vector.load %arg21[%c1_222, %c1_223, %c3_224, %c0_225, %c0_226] : memref<2x2x4x5x5xf32, #tpu.memory_space<vmem>>, vector<1x1x1x5x5xf32>
    %400 = vector.shape_cast %399 : vector<1x1x1x5x5xf32> to vector<5x5xf32>
    %401 = vector.shape_cast %398 : vector<5x5xf32> to vector<1x1x1x5x5xf32>
    tpu.vector_store %arg21[%c1_222, %c1_223, %c3_224, %c0_225, %c0_226], %401 {strides = array<i32>} : memref<2x2x4x5x5xf32, #tpu.memory_space<vmem>>, vector<1x1x1x5x5xf32>,
    %402 = arith.truncf %398 : vector<5x5xf32> to vector<5x5xbf16>
    %cst_227 = arith.constant dense<0.000000e+00> : vector<5x16xf32>
    %403 = tpu.matmul %402, %388, %cst_227 {dimension_numbers = #tpu.dot_dimension_numbers<[1], [0], [0], [1], [0, 0, 1, 1], [], []>} : vector<5x5xbf16>, vector<5x16xbf16>, vector<5x16xf32> -> vector<5x16xf32>
    %c5_228 = arith.constant 5 : index
    %c48_229 = arith.constant 48 : index
    %404 = vector.load %arg22[%c5_228, %c48_229] : memref<10x64xf32, #tpu.memory_space<vmem>>, vector<5x16xf32>
    tpu.vector_store %arg22[%c5_228, %c48_229], %403 {strides = array<i32>} : memref<10x64xf32, #tpu.memory_space<vmem>>, vector<5x16xf32>,
    %c0_230 = arith.constant 0 : index
    %c0_231 = arith.constant 0 : index
    %405 = vector.load %arg22[%c0_230, %c0_231] : memref<10x64xf32, #tpu.memory_space<vmem>>, vector<10x64xf32>
    %406 = arith.truncf %405 : vector<10x64xf32> to vector<10x64xbf16>
    %cst_232 = arith.constant dense<0.000000e+00> : vector<10x64xf32>
    %407 = tpu.matmul %406, %20, %cst_232 {dimension_numbers = #tpu.dot_dimension_numbers<[1], [0], [0], [1], [0, 0, 1, 1], [], []>} : vector<10x64xbf16>, vector<64x64xbf16>, vector<10x64xf32> -> vector<10x64xf32>
    %408 = vector.broadcast %21 : vector<1x64xf32> to vector<10x64xf32>
    %409 = arith.addf %407, %408 : vector<10x64xf32>
    %410 = arith.addf %247, %409 : vector<10x64xf32>
    %cst_233 = arith.constant dense<0.000000e+00> : vector<10xf32>
    %411 = vector.multi_reduction <add>, %410, %cst_233 [1] : vector<10x64xf32> to vector<10xf32>
    %412 = vector.shape_cast %411 : vector<10xf32> to vector<10x1xf32>
    %cst_234 = arith.constant 6.400000e+01 : f32
    %413 = vector.broadcast %cst_234 : f32 to vector<10x1xf32>
    %414 = arith.divf %412, %413 : vector<10x1xf32>
    %415 = vector.broadcast %414 : vector<10x1xf32> to vector<10x64xf32>
    %416 = arith.subf %410, %415 : vector<10x64xf32>
    %417 = arith.mulf %416, %416 : vector<10x64xf32>
    %cst_235 = arith.constant dense<0.000000e+00> : vector<10xf32>
    %418 = vector.multi_reduction <add>, %417, %cst_235 [1] : vector<10x64xf32> to vector<10xf32>
    %419 = vector.shape_cast %418 : vector<10xf32> to vector<10x1xf32>
    %cst_236 = arith.constant 6.400000e+01 : f32
    %420 = vector.broadcast %cst_236 : f32 to vector<10x1xf32>
    %421 = arith.divf %419, %420 : vector<10x1xf32>
    %422 = vector.broadcast %414 : vector<10x1xf32> to vector<10x64xf32>
    %423 = arith.subf %410, %422 : vector<10x64xf32>
    %cst_237 = arith.constant 9.99999974E-6 : f32
    %424 = vector.broadcast %cst_237 : f32 to vector<10x1xf32>
    %425 = arith.addf %421, %424 : vector<10x1xf32>
    %426 = math.rsqrt %425 : vector<10x1xf32>
    %427 = vector.broadcast %426 : vector<10x1xf32> to vector<10x64xf32>
    %428 = arith.mulf %423, %427 : vector<10x64xf32>
    %429 = vector.broadcast %26 : vector<1x64xf32> to vector<10x64xf32>
    %430 = arith.mulf %428, %429 : vector<10x64xf32>
    %431 = vector.broadcast %27 : vector<1x64xf32> to vector<10x64xf32>
    %432 = arith.addf %430, %431 : vector<10x64xf32>
    %433 = arith.truncf %432 : vector<10x64xf32> to vector<10x64xbf16>
    %cst_238 = arith.constant dense<0.000000e+00> : vector<10x128xf32>
    %434 = tpu.matmul %433, %22, %cst_238 {dimension_numbers = #tpu.dot_dimension_numbers<[1], [0], [0], [1], [0, 0, 1, 1], [], []>} : vector<10x64xbf16>, vector<64x128xbf16>, vector<10x128xf32> -> vector<10x128xf32>
    %435 = vector.broadcast %23 : vector<1x128xf32> to vector<10x128xf32>
    %436 = arith.addf %434, %435 : vector<10x128xf32>
    %cst_239 = arith.constant 0.000000e+00 : f32
    %437 = vector.broadcast %cst_239 : f32 to vector<10x128xf32>
    %438 = arith.maximumf %436, %437 : vector<10x128xf32>
    %439 = arith.truncf %438 : vector<10x128xf32> to vector<10x128xbf16>
    %cst_240 = arith.constant dense<0.000000e+00> : vector<10x64xf32>
    %440 = tpu.matmul %439, %24, %cst_240 {dimension_numbers = #tpu.dot_dimension_numbers<[1], [0], [0], [1], [0, 0, 1, 1], [], []>} : vector<10x128xbf16>, vector<128x64xbf16>, vector<10x64xf32> -> vector<10x64xf32>
    %441 = vector.broadcast %25 : vector<1x64xf32> to vector<10x64xf32>
    %442 = arith.addf %440, %441 : vector<10x64xf32>
    %443 = arith.addf %432, %442 : vector<10x64xf32>
    %cst_241 = arith.constant dense<0.000000e+00> : vector<10xf32>
    %444 = vector.multi_reduction <add>, %443, %cst_241 [1] : vector<10x64xf32> to vector<10xf32>
    %445 = vector.shape_cast %444 : vector<10xf32> to vector<10x1xf32>
    %cst_242 = arith.constant 6.400000e+01 : f32
    %446 = vector.broadcast %cst_242 : f32 to vector<10x1xf32>
    %447 = arith.divf %445, %446 : vector<10x1xf32>
    %448 = vector.broadcast %447 : vector<10x1xf32> to vector<10x64xf32>
    %449 = arith.subf %443, %448 : vector<10x64xf32>
    %450 = arith.mulf %449, %449 : vector<10x64xf32>
    %cst_243 = arith.constant dense<0.000000e+00> : vector<10xf32>
    %451 = vector.multi_reduction <add>, %450, %cst_243 [1] : vector<10x64xf32> to vector<10xf32>
    %452 = vector.shape_cast %451 : vector<10xf32> to vector<10x1xf32>
    %cst_244 = arith.constant 6.400000e+01 : f32
    %453 = vector.broadcast %cst_244 : f32 to vector<10x1xf32>
    %454 = arith.divf %452, %453 : vector<10x1xf32>
    %455 = vector.broadcast %447 : vector<10x1xf32> to vector<10x64xf32>
    %456 = arith.subf %443, %455 : vector<10x64xf32>
    %cst_245 = arith.constant 9.99999974E-6 : f32
    %457 = vector.broadcast %cst_245 : f32 to vector<10x1xf32>
    %458 = arith.addf %454, %457 : vector<10x1xf32>
    %459 = math.rsqrt %458 : vector<10x1xf32>
    %460 = vector.broadcast %459 : vector<10x1xf32> to vector<10x64xf32>
    %461 = arith.mulf %456, %460 : vector<10x64xf32>
    %462 = vector.broadcast %28 : vector<1x64xf32> to vector<10x64xf32>
    %463 = arith.mulf %461, %462 : vector<10x64xf32>
    %464 = vector.broadcast %29 : vector<1x64xf32> to vector<10x64xf32>
    %465 = arith.addf %463, %464 : vector<10x64xf32>
    %466 = vector.extract_strided_slice %465 {offsets = [0, 0], sizes = [1, 64], strides = [1, 1]} : vector<10x64xf32> to vector<1x64xf32>
    %467 = vector.extract_strided_slice %465 {offsets = [5, 0], sizes = [1, 64], strides = [1, 1]} : vector<10x64xf32> to vector<1x64xf32>
    %468 = tpu.concatenate %466, %467 in 0 : vector<1x64xf32>, vector<1x64xf32> -> vector<2x64xf32>
    %c0_246 = arith.constant 0 : index
    %c0_247 = arith.constant 0 : index
    %469 = vector.load %arg16[%c0_246, %c0_247] : memref<1x64xf32, #tpu.memory_space<vmem>>, vector<1x64xf32>
    %c0_248 = arith.constant 0 : index
    %c0_249 = arith.constant 0 : index
    %470 = vector.load %arg17[%c0_248, %c0_249] : memref<1x64xf32, #tpu.memory_space<vmem>>, vector<1x64xf32>
    %cst_250 = arith.constant dense<0.000000e+00> : vector<2xf32>
    %471 = vector.multi_reduction <add>, %468, %cst_250 [1] : vector<2x64xf32> to vector<2xf32>
    %472 = vector.shape_cast %471 : vector<2xf32> to vector<2x1xf32>
    %cst_251 = arith.constant 6.400000e+01 : f32
    %473 = vector.broadcast %cst_251 : f32 to vector<2x1xf32>
    %474 = arith.divf %472, %473 : vector<2x1xf32>
    %475 = vector.broadcast %474 : vector<2x1xf32> to vector<2x64xf32>
    %476 = arith.subf %468, %475 : vector<2x64xf32>
    %477 = arith.mulf %476, %476 : vector<2x64xf32>
    %cst_252 = arith.constant dense<0.000000e+00> : vector<2xf32>
    %478 = vector.multi_reduction <add>, %477, %cst_252 [1] : vector<2x64xf32> to vector<2xf32>
    %479 = vector.shape_cast %478 : vector<2xf32> to vector<2x1xf32>
    %cst_253 = arith.constant 6.400000e+01 : f32
    %480 = vector.broadcast %cst_253 : f32 to vector<2x1xf32>
    %481 = arith.divf %479, %480 : vector<2x1xf32>
    %482 = vector.broadcast %474 : vector<2x1xf32> to vector<2x64xf32>
    %483 = arith.subf %468, %482 : vector<2x64xf32>
    %cst_254 = arith.constant 9.99999974E-6 : f32
    %484 = vector.broadcast %cst_254 : f32 to vector<2x1xf32>
    %485 = arith.addf %481, %484 : vector<2x1xf32>
    %486 = math.rsqrt %485 : vector<2x1xf32>
    %487 = vector.broadcast %486 : vector<2x1xf32> to vector<2x64xf32>
    %488 = arith.mulf %483, %487 : vector<2x64xf32>
    %489 = vector.broadcast %469 : vector<1x64xf32> to vector<2x64xf32>
    %490 = arith.mulf %488, %489 : vector<2x64xf32>
    %491 = vector.broadcast %470 : vector<1x64xf32> to vector<2x64xf32>
    %492 = arith.addf %490, %491 : vector<2x64xf32>
    %493 = arith.truncf %492 : vector<2x64xf32> to vector<2x64xbf16>
    %c0_255 = arith.constant 0 : index
    %c0_256 = arith.constant 0 : index
    %494 = vector.load %arg18[%c0_255, %c0_256] : memref<64x128xbf16, #tpu.memory_space<vmem>>, vector<64x128xbf16>
    %cst_257 = arith.constant dense<0.000000e+00> : vector<2x128xf32>
    %495 = tpu.matmul %493, %494, %cst_257 {dimension_numbers = #tpu.dot_dimension_numbers<[1], [0], [0], [1], [0, 0, 1, 1], [], []>} : vector<2x64xbf16>, vector<64x128xbf16>, vector<2x128xf32> -> vector<2x128xf32>
    %c0_258 = arith.constant 0 : index
    %c0_259 = arith.constant 0 : index
    %496 = vector.load %arg19[%c0_258, %c0_259] : memref<1x128xf32, #tpu.memory_space<vmem>>, vector<1x128xf32>
    %497 = vector.broadcast %496 : vector<1x128xf32> to vector<2x128xf32>
    %498 = arith.addf %495, %497 : vector<2x128xf32>
    %c0_260 = arith.constant 0 : index
    %c0_261 = arith.constant 0 : index
    %499 = vector.load %arg20[%c0_260, %c0_261] : memref<2x128xf32, #tpu.memory_space<vmem>>, vector<2x128xf32>
    tpu.vector_store %arg20[%c0_260, %c0_261], %498 {strides = array<i32>} : memref<2x128xf32, #tpu.memory_space<vmem>>, vector<2x128xf32>,
    return
  }
  func.func @transform_0(%arg0: i32) -> (i32, i32, i32) {
    %c0_i32 = arith.constant 0 : i32
    %c0_i32_0 = arith.constant 0 : i32
    %c0_i32_1 = arith.constant 0 : i32
    return %arg0, %c0_i32, %c0_i32_0 : i32, i32, i32
  }
  func.func @transform_1(%arg0: i32) -> (i32, i32, i32) {
    %c0_i32 = arith.constant 0 : i32
    %c0_i32_0 = arith.constant 0 : i32
    %c0_i32_1 = arith.constant 0 : i32
    %c0_i32_2 = arith.constant 0 : i32
    return %c0_i32, %c0_i32_0, %c0_i32_1 : i32, i32, i32
  }
  func.func @transform_2(%arg0: i32) -> (i32, i32, i32) {
    %c0_i32 = arith.constant 0 : i32
    %c0_i32_0 = arith.constant 0 : i32
    %c0_i32_1 = arith.constant 0 : i32
    %c0_i32_2 = arith.constant 0 : i32
    return %c0_i32, %c0_i32_0, %c0_i32_1 : i32, i32, i32
  }
  func.func @transform_3(%arg0: i32) -> (i32, i32) {
    %c0_i32 = arith.constant 0 : i32
    %c0_i32_0 = arith.constant 0 : i32
    %c0_i32_1 = arith.constant 0 : i32
    return %c0_i32, %c0_i32_0 : i32, i32
  }
  func.func @transform_4(%arg0: i32) -> (i32, i32) {
    %c0_i32 = arith.constant 0 : i32
    %c0_i32_0 = arith.constant 0 : i32
    %c0_i32_1 = arith.constant 0 : i32
    return %c0_i32, %c0_i32_0 : i32, i32
  }
  func.func @transform_5(%arg0: i32) -> (i32, i32) {
    %c0_i32 = arith.constant 0 : i32
    %c0_i32_0 = arith.constant 0 : i32
    %c0_i32_1 = arith.constant 0 : i32
    return %c0_i32, %c0_i32_0 : i32, i32
  }
  func.func @transform_6(%arg0: i32) -> (i32, i32) {
    %c0_i32 = arith.constant 0 : i32
    %c0_i32_0 = arith.constant 0 : i32
    %c0_i32_1 = arith.constant 0 : i32
    return %c0_i32, %c0_i32_0 : i32, i32
  }
  func.func @transform_7(%arg0: i32) -> (i32, i32) {
    %c0_i32 = arith.constant 0 : i32
    %c0_i32_0 = arith.constant 0 : i32
    %c0_i32_1 = arith.constant 0 : i32
    return %c0_i32, %c0_i32_0 : i32, i32
  }
  func.func @transform_8(%arg0: i32) -> (i32, i32) {
    %c0_i32 = arith.constant 0 : i32
    %c0_i32_0 = arith.constant 0 : i32
    %c0_i32_1 = arith.constant 0 : i32
    return %c0_i32, %c0_i32_0 : i32, i32
  }
  func.func @transform_9(%arg0: i32) -> (i32, i32) {
    %c0_i32 = arith.constant 0 : i32
    %c0_i32_0 = arith.constant 0 : i32
    %c0_i32_1 = arith.constant 0 : i32
    return %c0_i32, %c0_i32_0 : i32, i32
  }
  func.func @transform_10(%arg0: i32) -> (i32, i32) {
    %c0_i32 = arith.constant 0 : i32
    %c0_i32_0 = arith.constant 0 : i32
    %c0_i32_1 = arith.constant 0 : i32
    return %c0_i32, %c0_i32_0 : i32, i32
  }
  func.func @transform_11(%arg0: i32) -> (i32, i32) {
    %c0_i32 = arith.constant 0 : i32
    %c0_i32_0 = arith.constant 0 : i32
    %c0_i32_1 = arith.constant 0 : i32
    return %c0_i32, %c0_i32_0 : i32, i32
  }
  func.func @transform_12(%arg0: i32) -> (i32, i32) {
    %c0_i32 = arith.constant 0 : i32
    %c0_i32_0 = arith.constant 0 : i32
    %c0_i32_1 = arith.constant 0 : i32
    return %c0_i32, %c0_i32_0 : i32, i32
  }
  func.func @transform_13(%arg0: i32) -> (i32, i32) {
    %c0_i32 = arith.constant 0 : i32
    %c0_i32_0 = arith.constant 0 : i32
    %c0_i32_1 = arith.constant 0 : i32
    return %c0_i32, %c0_i32_0 : i32, i32
  }
  func.func @transform_14(%arg0: i32) -> (i32, i32) {
    %c0_i32 = arith.constant 0 : i32
    %c0_i32_0 = arith.constant 0 : i32
    %c0_i32_1 = arith.constant 0 : i32
    return %c0_i32, %c0_i32_0 : i32, i32
  }
  func.func @transform_15(%arg0: i32) -> (i32, i32) {
    %c0_i32 = arith.constant 0 : i32
    %c0_i32_0 = arith.constant 0 : i32
    %c0_i32_1 = arith.constant 0 : i32
    return %c0_i32, %c0_i32_0 : i32, i32
  }
  func.func @transform_16(%arg0: i32) -> (i32, i32) {
    %c0_i32 = arith.constant 0 : i32
    %c0_i32_0 = arith.constant 0 : i32
    %c0_i32_1 = arith.constant 0 : i32
    return %c0_i32, %c0_i32_0 : i32, i32
  }
  func.func @transform_17(%arg0: i32) -> (i32, i32) {
    %c0_i32 = arith.constant 0 : i32
    %c0_i32_0 = arith.constant 0 : i32
    %c0_i32_1 = arith.constant 0 : i32
    return %c0_i32, %c0_i32_0 : i32, i32
  }
  func.func @transform_18(%arg0: i32) -> (i32, i32) {
    %c0_i32 = arith.constant 0 : i32
    %c0_i32_0 = arith.constant 0 : i32
    %c0_i32_1 = arith.constant 0 : i32
    return %c0_i32, %c0_i32_0 : i32, i32
  }
  func.func @transform_19(%arg0: i32) -> (i32, i32) {
    %c0_i32 = arith.constant 0 : i32
    %c0_i32_0 = arith.constant 0 : i32
    return %arg0, %c0_i32 : i32, i32
  }
  func.func @transform_20(%arg0: i32) -> (i32, i32, i32, i32, i32) {
    %c0_i32 = arith.constant 0 : i32
    %c0_i32_0 = arith.constant 0 : i32
    %c0_i32_1 = arith.constant 0 : i32
    %c0_i32_2 = arith.constant 0 : i32
    %c0_i32_3 = arith.constant 0 : i32
    return %c0_i32, %arg0, %c0_i32_0, %c0_i32_1, %c0_i32_2 : i32, i32, i32, i32, i32
  }
}

</mosaic_0001>

<llo_original>
// kernel: event_lens_forward.2
$region0: #{event_lens_forward.2}
  #allocation0 [shape = 'u32[]', space=smem, size = 0x4, offset = 0x4, fixed_abs, tag = 'smem constant byte address 0x4 - core index']
  #allocation1 [shape = 'u32[144,128]{1,0:T(1,128)}', space=vmem, size = 0x12000, scoped, tag = 'internal scratch']
  %s0 = inlined_call_operand.vmem [shape: f32[8,3,256], index: 0, kind: input, shape index: {}]
  %s1 = inlined_call_operand.vmem [shape: f32[3,64], index: 1, kind: input, shape index: {}]
  %s2 = inlined_call_operand.vmem [shape: f32[1,64], index: 2, kind: input, shape index: {}]
  %s3 = inlined_call_operand.vmem [shape: f32[8,64], index: 3, kind: output, shape index: {}]
  %s4 = sld [smem:[#allocation0]]
  $region22: #{event_lens_forward.2} parent=0
    _
  %s6 = ssub.s32 1, %s4
  %s7 = scalar_select 0, %s6, %s4
  // Predicated region
  $region2: #{event_lens_forward.2} parent=0 // pred_check
    _
  $region3: #{event_lens_forward.2} parent=0 // pred_check_branch
    %9 = sbr.rel (0) target = $region5
  $region4: #{event_lens_forward.2} parent=0 // pred_region
    _
  $region5: #{event_lens_forward.2} parent=0 // pred_fallthru
    _
  // Predicated region
  $region6: #{event_lens_forward.2} parent=0 // pred_check
    _
  $region7: #{event_lens_forward.2} parent=0 // pred_check_branch
    %11 = sbr.rel (0) target = $region9
  $region8: #{event_lens_forward.2} parent=0 // pred_region
    _
  $region9: #{event_lens_forward.2} parent=0 // pred_fallthru
    _
  // Predicated region
  $region10: #{event_lens_forward.2} parent=0 // pred_check
    _
  $region11: #{event_lens_forward.2} parent=0 // pred_check_branch
    %13 = sbr.rel (0) target = $region13
  $region12: #{event_lens_forward.2} parent=0 // pred_region
    _
  $region13: #{event_lens_forward.2} parent=0 // pred_fallthru
    _
  %v14 = vld [vmem:[%s0] sm:$0x77]
  %v15 = vld [vmem:[%s0 + $0x8] sm:$0x77]
  %v16 = vld [vmem:[%s0 + $0x10] sm:$0x77]
  %v17 = vld [vmem:[%s0 + $0x18] sm:$0x77]
  %v18 = vld [vmem:[%s0 + $0x20] sm:$0x77]
  %v19 = vld [vmem:[%s0 + $0x28] sm:$0x77]
  %v20 = vld [vmem:[%s0 + $0x30] sm:$0x77]
  %v21 = vld [vmem:[%s0 + $0x38] sm:$0x77]
  %v30 = vcombine.high %v14, %v14
  %v31 = vcombine.high %v15, %v15
  %v32 = vcombine.high %v16, %v16
  %v33 = vcombine.high %v17, %v17
  %v34 = vcombine.high %v18, %v18
  %v35 = vcombine.high %v19, %v19
  %v36 = vcombine.high %v20, %v20
  %v37 = vcombine.high %v21, %v21
  %vm46 = vcmask 1042432
  %v47 = vsel %vm46, %v14, 0.0
  %v48 = vsel %vm46, %v30, 0.0
  %v49 = vadd.f32 %v47, %v48
  %50 = vadd.xlane.f32.xlu0 %v49
  %v51 = vpop.xlane.xlu0 %50
  %v52 = vsel %vm46, %v15, 0.0
  %v53 = vsel %vm46, %v31, 0.0
  %v54 = vadd.f32 %v52, %v53
  %55 = vadd.xlane.f32.xlu0 %v54
  %v56 = vpop.xlane.xlu0 %55
  %v57 = vsel %vm46, %v16, 0.0
  %v58 = vsel %vm46, %v32, 0.0
  %v59 = vadd.f32 %v57, %v58
  %60 = vadd.xlane.f32.xlu0 %v59
  %v61 = vpop.xlane.xlu0 %60
  %v62 = vsel %vm46, %v17, 0.0
  %v63 = vsel %vm46, %v33, 0.0
  %v64 = vadd.f32 %v62, %v63
  %65 = vadd.xlane.f32.xlu0 %v64
  %v66 = vpop.xlane.xlu0 %65
  %v67 = vsel %vm46, %v18, 0.0
  %v68 = vsel %vm46, %v34, 0.0
  %v69 = vadd.f32 %v67, %v68
  %70 = vadd.xlane.f32.xlu0 %v69
  %v71 = vpop.xlane.xlu0 %70
  %v72 = vsel %vm46, %v19, 0.0
  %v73 = vsel %vm46, %v35, 0.0
  %v74 = vadd.f32 %v72, %v73
  %75 = vadd.xlane.f32.xlu0 %v74
  %v76 = vpop.xlane.xlu0 %75
  %v77 = vsel %vm46, %v20, 0.0
  %v78 = vsel %vm46, %v36, 0.0
  %v79 = vadd.f32 %v77, %v78
  %80 = vadd.xlane.f32.xlu0 %v79
  %v81 = vpop.xlane.xlu0 %80
  %v82 = vsel %vm46, %v21, 0.0
  %v83 = vsel %vm46, %v37, 0.0
  %v84 = vadd.f32 %v82, %v83
  %85 = vadd.xlane.f32.xlu0 %v84
  %v86 = vpop.xlane.xlu0 %85
  %v87 = vrcp.pop 256.0
  %v88 = vmul.f32 %v51, %v87
  %v89 = vmul.f32 %v56, %v87
  %v90 = vmul.f32 %v61, %v87
  %v91 = vmul.f32 %v66, %v87
  %v92 = vmul.f32 %v71, %v87
  %v93 = vmul.f32 %v76, %v87
  %v94 = vmul.f32 %v81, %v87
  %v95 = vmul.f32 %v86, %v87
  %v96 = vld [vmem:[%s1] sm:$0x7]
  %v97 = vld [vmem:[%s2] sm:$0x1]
  %v98 = vlaneseq
  %v99 = vshrl.u32 %v98, 7
  %v100 = vsub.s32 0, %v99
  %v101 = vrot.slane %v88, %v100
  %v102 = vlaneseq
  %v103 = vshrl.u32 %v102, 7
  %v104 = vsub.s32 0, %v103
  %v105 = vrot.slane %v89, %v104
  %v106 = vlaneseq
  %v107 = vshrl.u32 %v106, 7
  %v108 = vsub.s32 0, %v107
  %v109 = vrot.slane %v90, %v108
  %v110 = vlaneseq
  %v111 = vshrl.u32 %v110, 7
  %v112 = vsub.s32 0, %v111
  %v113 = vrot.slane %v91, %v112
  %v114 = vlaneseq
  %v115 = vshrl.u32 %v114, 7
  %v116 = vsub.s32 0, %v115
  %v117 = vrot.slane %v92, %v116
  %v118 = vlaneseq
  %v119 = vshrl.u32 %v118, 7
  %v120 = vsub.s32 0, %v119
  %v121 = vrot.slane %v93, %v120
  %v122 = vlaneseq
  %v123 = vshrl.u32 %v122, 7
  %v124 = vsub.s32 0, %v123
  %v125 = vrot.slane %v94, %v124
  %v126 = vlaneseq
  %v127 = vshrl.u32 %v126, 7
  %v128 = vsub.s32 0, %v127
  %v129 = vrot.slane %v95, %v128
  %v130 = vlaneseq
  %v131 = vshrl.u32 %v130, 7
  %v132 = vsub.s32 0, %v131
  %v133 = vrot.slane %v96, %v132
  %136 = vbcast.lane.b32.xlu0 %v133, 256
  %v137 = vpop.permute.xlu0 %136
  %s139 = sor.u32 256, 8
  %140 = vbcast.lane.b32.xlu0 %v133, %s139
  %v141 = vpop.permute.xlu0 %140
  %s143 = sor.u32 256, 16
  %144 = vbcast.lane.b32.xlu0 %v133, %s143
  %v145 = vpop.permute.xlu0 %144
  %s147 = sor.u32 256, 24
  %148 = vbcast.lane.b32.xlu0 %v133, %s147
  %v149 = vpop.permute.xlu0 %148
  %s151 = sor.u32 256, 32
  %152 = vbcast.lane.b32.xlu0 %v133, %s151
  %v153 = vpop.permute.xlu0 %152
  %s155 = sor.u32 256, 40
  %156 = vbcast.lane.b32.xlu0 %v133, %s155
  %v157 = vpop.permute.xlu0 %156
  %s159 = sor.u32 256, 48
  %160 = vbcast.lane.b32.xlu0 %v133, %s159
  %v161 = vpop.permute.xlu0 %160
  %s163 = sor.u32 256, 56
  %164 = vbcast.lane.b32.xlu0 %v133, %s163
  %v165 = vpop.permute.xlu0 %164
  %v174 = vmul.f32 %v101, %v137
  %v175 = vmul.f32 %v101, %v141
  %v176 = vmul.f32 %v101, %v145
  %v177 = vmul.f32 %v101, %v149
  %v178 = vmul.f32 %v101, %v153
  %v179 = vmul.f32 %v101, %v157
  %v180 = vmul.f32 %v101, %v161
  %v181 = vmul.f32 %v101, %v165
  %v182 = vmul.f32 %v105, %v137
  %v183 = vmul.f32 %v105, %v141
  %v184 = vmul.f32 %v105, %v145
  %v185 = vmul.f32 %v105, %v149
  %v186 = vmul.f32 %v105, %v153
  %v187 = vmul.f32 %v105, %v157
  %v188 = vmul.f32 %v105, %v161
  %v189 = vmul.f32 %v105, %v165
  %v190 = vmul.f32 %v109, %v137
  %v191 = vmul.f32 %v109, %v141
  %v192 = vmul.f32 %v109, %v145
  %v193 = vmul.f32 %v109, %v149
  %v194 = vmul.f32 %v109, %v153
  %v195 = vmul.f32 %v109, %v157
  %v196 = vmul.f32 %v109, %v161
  %v197 = vmul.f32 %v109, %v165
  %v198 = vmul.f32 %v113, %v137
  %v199 = vmul.f32 %v113, %v141
  %v200 = vmul.f32 %v113, %v145
  %v201 = vmul.f32 %v113, %v149
  %v202 = vmul.f32 %v113, %v153
  %v203 = vmul.f32 %v113, %v157
  %v204 = vmul.f32 %v113, %v161
  %v205 = vmul.f32 %v113, %v165
  %v206 = vmul.f32 %v117, %v137
  %v207 = vmul.f32 %v117, %v141
  %v208 = vmul.f32 %v117, %v145
  %v209 = vmul.f32 %v117, %v149
  %v210 = vmul.f32 %v117, %v153
  %v211 = vmul.f32 %v117, %v157
  %v212 = vmul.f32 %v117, %v161
  %v213 = vmul.f32 %v117, %v165
  %v214 = vmul.f32 %v121, %v137
  %v215 = vmul.f32 %v121, %v141
  %v216 = vmul.f32 %v121, %v145
  %v217 = vmul.f32 %v121, %v149
  %v218 = vmul.f32 %v121, %v153
  %v219 = vmul.f32 %v121, %v157
  %v220 = vmul.f32 %v121, %v161
  %v221 = vmul.f32 %v121, %v165
  %v222 = vmul.f32 %v125, %v137
  %v223 = vmul.f32 %v125, %v141
  %v224 = vmul.f32 %v125, %v145
  %v225 = vmul.f32 %v125, %v149
  %v226 = vmul.f32 %v125, %v153
  %v227 = vmul.f32 %v125, %v157
  %v228 = vmul.f32 %v125, %v161
  %v229 = vmul.f32 %v125, %v165
  %v230 = vmul.f32 %v129, %v137
  %v231 = vmul.f32 %v129, %v141
  %v232 = vmul.f32 %v129, %v145
  %v233 = vmul.f32 %v129, %v149
  %v234 = vmul.f32 %v129, %v153
  %v235 = vmul.f32 %v129, %v157
  %v236 = vmul.f32 %v129, %v161
  %v237 = vmul.f32 %v129, %v165
  %v239 = vlaneseq
  %v240 = vshrl.u32 %v239, 7
  %v241 = vsub.s32 0, %v240
  %v242 = vrot.slane %v97, %v241
  %308 = vset.pattern.permute.xlu0 0
  %309 = vperm.xlu0 %308, %v174
  %v310 = vpop.permute.xlu0 %309
  %311 = vset.pattern.permute.xlu0 0
  %312 = vperm.xlu0 %311, %v175
  %v313 = vpop.permute.xlu0 %312
  %314 = vset.pattern.permute.xlu0 0
  %315 = vperm.xlu0 %314, %v176
  %v316 = vpop.permute.xlu0 %315
  %317 = vset.pattern.permute.xlu0 0
  %318 = vperm.xlu0 %317, %v177
  %v319 = vpop.permute.xlu0 %318
  %320 = vset.pattern.permute.xlu0 0
  %321 = vperm.xlu0 %320, %v178
  %v322 = vpop.permute.xlu0 %321
  %323 = vset.pattern.permute.xlu0 0
  %324 = vperm.xlu0 %323, %v179
  %v325 = vpop.permute.xlu0 %324
  %326 = vset.pattern.permute.xlu0 0
  %327 = vperm.xlu0 %326, %v180
  %v328 = vpop.permute.xlu0 %327
  %329 = vset.pattern.permute.xlu0 0
  %330 = vperm.xlu0 %329, %v181
  %v331 = vpop.permute.xlu0 %330
  %332 = vset.pattern.permute.xlu0 0
  %333 = vperm.xlu0 %332, %v182
  %v334 = vpop.permute.xlu0 %333
  %335 = vset.pattern.permute.xlu0 0
  %336 = vperm.xlu0 %335, %v183
  %v337 = vpop.permute.xlu0 %336
  %338 = vset.pattern.permute.xlu0 0
  %339 = vperm.xlu0 %338, %v184
  %v340 = vpop.permute.xlu0 %339
  %341 = vset.pattern.permute.xlu0 0
  %342 = vperm.xlu0 %341, %v185
  %v343 = vpop.permute.xlu0 %342
  %344 = vset.pattern.permute.xlu0 0
  %345 = vperm.xlu0 %344, %v186
  %v346 = vpop.permute.xlu0 %345
  %347 = vset.pattern.permute.xlu0 0
  %348 = vperm.xlu0 %347, %v187
  %v349 = vpop.permute.xlu0 %348
  %350 = vset.pattern.permute.xlu0 0
  %351 = vperm.xlu0 %350, %v188
  %v352 = vpop.permute.xlu0 %351
  %353 = vset.pattern.permute.xlu0 0
  %354 = vperm.xlu0 %353, %v189
  %v355 = vpop.permute.xlu0 %354
  %356 = vset.pattern.permute.xlu0 0
  %357 = vperm.xlu0 %356, %v190
  %v358 = vpop.permute.xlu0 %357
  %359 = vset.pattern.permute.xlu0 0
  %360 = vperm.xlu0 %359, %v191
  %v361 = vpop.permute.xlu0 %360
  %362 = vset.pattern.permute.xlu0 0
  %363 = vperm.xlu0 %362, %v192
  %v364 = vpop.permute.xlu0 %363
  %365 = vset.pattern.permute.xlu0 0
  %366 = vperm.xlu0 %365, %v193
  %v367 = vpop.permute.xlu0 %366
  %368 = vset.pattern.permute.xlu0 0
  %369 = vperm.xlu0 %368, %v194
  %v370 = vpop.permute.xlu0 %369
  %371 = vset.pattern.permute.xlu0 0
  %372 = vperm.xlu0 %371, %v195
  %v373 = vpop.permute.xlu0 %372
  %374 = vset.pattern.permute.xlu0 0
  %375 = vperm.xlu0 %374, %v196
  %v376 = vpop.permute.xlu0 %375
  %377 = vset.pattern.permute.xlu0 0
  %378 = vperm.xlu0 %377, %v197
  %v379 = vpop.permute.xlu0 %378
  %380 = vset.pattern.permute.xlu0 0
  %381 = vperm.xlu0 %380, %v198
  %v382 = vpop.permute.xlu0 %381
  %383 = vset.pattern.permute.xlu0 0
  %384 = vperm.xlu0 %383, %v199
  %v385 = vpop.permute.xlu0 %384
  %386 = vset.pattern.permute.xlu0 0
  %387 = vperm.xlu0 %386, %v200
  %v388 = vpop.permute.xlu0 %387
  %389 = vset.pattern.permute.xlu0 0
  %390 = vperm.xlu0 %389, %v201
  %v391 = vpop.permute.xlu0 %390
  %392 = vset.pattern.permute.xlu0 0
  %393 = vperm.xlu0 %392, %v202
  %v394 = vpop.permute.xlu0 %393
  %395 = vset.pattern.permute.xlu0 0
  %396 = vperm.xlu0 %395, %v203
  %v397 = vpop.permute.xlu0 %396
  %398 = vset.pattern.permute.xlu0 0
  %399 = vperm.xlu0 %398, %v204
  %v400 = vpop.permute.xlu0 %399
  %401 = vset.pattern.permute.xlu0 0
  %402 = vperm.xlu0 %401, %v205
  %v403 = vpop.permute.xlu0 %402
  %404 = vset.pattern.permute.xlu0 0
  %405 = vperm.xlu0 %404, %v206
  %v406 = vpop.permute.xlu0 %405
  %407 = vset.pattern.permute.xlu0 0
  %408 = vperm.xlu0 %407, %v207
  %v409 = vpop.permute.xlu0 %408
  %410 = vset.pattern.permute.xlu0 0
  %411 = vperm.xlu0 %410, %v208
  %v412 = vpop.permute.xlu0 %411
  %413 = vset.pattern.permute.xlu0 0
  %414 = vperm.xlu0 %413, %v209
  %v415 = vpop.permute.xlu0 %414
  %416 = vset.pattern.permute.xlu0 0
  %417 = vperm.xlu0 %416, %v210
  %v418 = vpop.permute.xlu0 %417
  %419 = vset.pattern.permute.xlu0 0
  %420 = vperm.xlu0 %419, %v211
  %v421 = vpop.permute.xlu0 %420
  %422 = vset.pattern.permute.xlu0 0
  %423 = vperm.xlu0 %422, %v212
  %v424 = vpop.permute.xlu0 %423
  %425 = vset.pattern.permute.xlu0 0
  %426 = vperm.xlu0 %425, %v213
  %v427 = vpop.permute.xlu0 %426
  %428 = vset.pattern.permute.xlu0 0
  %429 = vperm.xlu0 %428, %v214
  %v430 = vpop.permute.xlu0 %429
  %431 = vset.pattern.permute.xlu0 0
  %432 = vperm.xlu0 %431, %v215
  %v433 = vpop.permute.xlu0 %432
  %434 = vset.pattern.permute.xlu0 0
  %435 = vperm.xlu0 %434, %v216
  %v436 = vpop.permute.xlu0 %435
  %437 = vset.pattern.permute.xlu0 0
  %438 = vperm.xlu0 %437, %v217
  %v439 = vpop.permute.xlu0 %438
  %440 = vset.pattern.permute.xlu0 0
  %441 = vperm.xlu0 %440, %v218
  %v442 = vpop.permute.xlu0 %441
  %443 = vset.pattern.permute.xlu0 0
  %444 = vperm.xlu0 %443, %v219
  %v445 = vpop.permute.xlu0 %444
  %446 = vset.pattern.permute.xlu0 0
  %447 = vperm.xlu0 %446, %v220
  %v448 = vpop.permute.xlu0 %447
  %449 = vset.pattern.permute.xlu0 0
  %450 = vperm.xlu0 %449, %v221
  %v451 = vpop.permute.xlu0 %450
  %452 = vset.pattern.permute.xlu0 0
  %453 = vperm.xlu0 %452, %v222
  %v454 = vpop.permute.xlu0 %453
  %455 = vset.pattern.permute.xlu0 0
  %456 = vperm.xlu0 %455, %v223
  %v457 = vpop.permute.xlu0 %456
  %458 = vset.pattern.permute.xlu0 0
  %459 = vperm.xlu0 %458, %v224
  %v460 = vpop.permute.xlu0 %459
  %461 = vset.pattern.permute.xlu0 0
  %462 = vperm.xlu0 %461, %v225
  %v463 = vpop.permute.xlu0 %462
  %464 = vset.pattern.permute.xlu0 0
  %465 = vperm.xlu0 %464, %v226
  %v466 = vpop.permute.xlu0 %465
  %467 = vset.pattern.permute.xlu0 0
  %468 = vperm.xlu0 %467, %v227
  %v469 = vpop.permute.xlu0 %468
  %470 = vset.pattern.permute.xlu0 0
  %471 = vperm.xlu0 %470, %v228
  %v472 = vpop.permute.xlu0 %471
  %473 = vset.pattern.permute.xlu0 0
  %474 = vperm.xlu0 %473, %v229
  %v475 = vpop.permute.xlu0 %474
  %476 = vset.pattern.permute.xlu0 0
  %477 = vperm.xlu0 %476, %v230
  %v478 = vpop.permute.xlu0 %477
  %479 = vset.pattern.permute.xlu0 0
  %480 = vperm.xlu0 %479, %v231
  %v481 = vpop.permute.xlu0 %480
  %482 = vset.pattern.permute.xlu0 0
  %483 = vperm.xlu0 %482, %v232
  %v484 = vpop.permute.xlu0 %483
  %485 = vset.pattern.permute.xlu0 0
  %486 = vperm.xlu0 %485, %v233
  %v487 = vpop.permute.xlu0 %486
  %488 = vset.pattern.permute.xlu0 0
  %489 = vperm.xlu0 %488, %v234
  %v490 = vpop.permute.xlu0 %489
  %491 = vset.pattern.permute.xlu0 0
  %492 = vperm.xlu0 %491, %v235
  %v493 = vpop.permute.xlu0 %492
  %494 = vset.pattern.permute.xlu0 0
  %495 = vperm.xlu0 %494, %v236
  %v496 = vpop.permute.xlu0 %495
  %497 = vset.pattern.permute.xlu0 0
  %498 = vperm.xlu0 %497, %v237
  %v499 = vpop.permute.xlu0 %498
  %v500 = vlaneseq
  %v501 = vand.u32 %v500, 127
  %v502 = vlaneseq
  %v503 = vshrl.u32 %v502, 7
  %v504 = vsub.s32 %v501, %v503
  %v505 = vrot.slane %v310, %v504
  %v506 = vadd.s32 %v501, 4294967288
  %v507 = vlaneseq
  %v508 = vshrl.u32 %v507, 7
  %v509 = vsub.s32 %v506, %v508
  %v510 = vrot.slane %v313, %v509
  %vm511 = vcmask 130112
  %v512 = vsel %vm511, %v510, %v505
  %v513 = vadd.s32 %v501, 4294967280
  %v514 = vlaneseq
  %v515 = vshrl.u32 %v514, 7
  %v516 = vsub.s32 %v513, %v515
  %v517 = vrot.slane %v316, %v516
  %vm518 = vcmask 195712
  %v519 = vsel %vm518, %v517, %v512
  %v520 = vadd.s32 %v501, 4294967272
  %v521 = vlaneseq
  %v522 = vshrl.u32 %v521, 7
  %v523 = vsub.s32 %v520, %v522
  %v524 = vrot.slane %v319, %v523
  %vm525 = vcmask 261312
  %v526 = vsel %vm525, %v524, %v519
  %v527 = vadd.s32 %v501, 4294967264
  %v528 = vlaneseq
  %v529 = vshrl.u32 %v528, 7
  %v530 = vsub.s32 %v527, %v529
  %v531 = vrot.slane %v322, %v530
  %vm532 = vcmask 326912
  %v533 = vsel %vm532, %v531, %v526
  %v534 = vadd.s32 %v501, 4294967256
  %v535 = vlaneseq
  %v536 = vshrl.u32 %v535, 7
  %v537 = vsub.s32 %v534, %v536
  %v538 = vrot.slane %v325, %v537
  %vm539 = vcmask 392512
  %v540 = vsel %vm539, %v538, %v533
  %v541 = vadd.s32 %v501, 4294967248
  %v542 = vlaneseq
  %v543 = vshrl.u32 %v542, 7
  %v544 = vsub.s32 %v541, %v543
  %v545 = vrot.slane %v328, %v544
  %vm546 = vcmask 458112
  %v547 = vsel %vm546, %v545, %v540
  %v548 = vadd.s32 %v501, 4294967240
  %v549 = vlaneseq
  %v550 = vshrl.u32 %v549, 7
  %v551 = vsub.s32 %v548, %v550
  %v552 = vrot.slane %v331, %v551
  %vm553 = vcmask 523712
  %v554 = vsel %vm553, %v552, %v547
  %v555 = vlaneseq
  %v556 = vshrl.u32 %v555, 7
  %v557 = vsub.s32 %v501, %v556
  %v558 = vrot.slane %v334, %v557
  %v559 = vlaneseq
  %v560 = vshrl.u32 %v559, 7
  %v561 = vsub.s32 %v506, %v560
  %v562 = vrot.slane %v337, %v561
  %v563 = vsel %vm511, %v562, %v558
  %v564 = vlaneseq
  %v565 = vshrl.u32 %v564, 7
  %v566 = vsub.s32 %v513, %v565
  %v567 = vrot.slane %v340, %v566
  %v568 = vsel %vm518, %v567, %v563
  %v569 = vlaneseq
  %v570 = vshrl.u32 %v569, 7
  %v571 = vsub.s32 %v520, %v570
  %v572 = vrot.slane %v343, %v571
  %v573 = vsel %vm525, %v572, %v568
  %v574 = vlaneseq
  %v575 = vshrl.u32 %v574, 7
  %v576 = vsub.s32 %v527, %v575
  %v577 = vrot.slane %v346, %v576
  %v578 = vsel %vm532, %v577, %v573
  %v579 = vlaneseq
  %v580 = vshrl.u32 %v579, 7
  %v581 = vsub.s32 %v534, %v580
  %v582 = vrot.slane %v349, %v581
  %v583 = vsel %vm539, %v582, %v578
  %v584 = vlaneseq
  %v585 = vshrl.u32 %v584, 7
  %v586 = vsub.s32 %v541, %v585
  %v587 = vrot.slane %v352, %v586
  %v588 = vsel %vm546, %v587, %v583
  %v589 = vlaneseq
  %v590 = vshrl.u32 %v589, 7
  %v591 = vsub.s32 %v548, %v590
  %v592 = vrot.slane %v355, %v591
  %v593 = vsel %vm553, %v592, %v588
  %v594 = vlaneseq
  %v595 = vshrl.u32 %v594, 7
  %v596 = vsub.s32 %v501, %v595
  %v597 = vrot.slane %v358, %v596
  %v598 = vlaneseq
  %v599 = vshrl.u32 %v598, 7
  %v600 = vsub.s32 %v506, %v599
  %v601 = vrot.slane %v361, %v600
  %v602 = vsel %vm511, %v601, %v597
  %v603 = vlaneseq
  %v604 = vshrl.u32 %v603, 7
  %v605 = vsub.s32 %v513, %v604
  %v606 = vrot.slane %v364, %v605
  %v607 = vsel %vm518, %v606, %v602
  %v608 = vlaneseq
  %v609 = vshrl.u32 %v608, 7
  %v610 = vsub.s32 %v520, %v609
  %v611 = vrot.slane %v367, %v610
  %v612 = vsel %vm525, %v611, %v607
  %v613 = vlaneseq
  %v614 = vshrl.u32 %v613, 7
  %v615 = vsub.s32 %v527, %v614
  %v616 = vrot.slane %v370, %v615
  %v617 = vsel %vm532, %v616, %v612
  %v618 = vlaneseq
  %v619 = vshrl.u32 %v618, 7
  %v620 = vsub.s32 %v534, %v619
  %v621 = vrot.slane %v373, %v620
  %v622 = vsel %vm539, %v621, %v617
  %v623 = vlaneseq
  %v624 = vshrl.u32 %v623, 7
  %v625 = vsub.s32 %v541, %v624
  %v626 = vrot.slane %v376, %v625
  %v627 = vsel %vm546, %v626, %v622
  %v628 = vlaneseq
  %v629 = vshrl.u32 %v628, 7
  %v630 = vsub.s32 %v548, %v629
  %v631 = vrot.slane %v379, %v630
  %v632 = vsel %vm553, %v631, %v627
  %v633 = vlaneseq
  %v634 = vshrl.u32 %v633, 7
  %v635 = vsub.s32 %v501, %v634
  %v636 = vrot.slane %v382, %v635
  %v637 = vlaneseq
  %v638 = vshrl.u32 %v637, 7
  %v639 = vsub.s32 %v506, %v638
  %v640 = vrot.slane %v385, %v639
  %v641 = vsel %vm511, %v640, %v636
  %v642 = vlaneseq
  %v643 = vshrl.u32 %v642, 7
  %v644 = vsub.s32 %v513, %v643
  %v645 = vrot.slane %v388, %v644
  %v646 = vsel %vm518, %v645, %v641
  %v647 = vlaneseq
  %v648 = vshrl.u32 %v647, 7
  %v649 = vsub.s32 %v520, %v648
  %v650 = vrot.slane %v391, %v649
  %v651 = vsel %vm525, %v650, %v646
  %v652 = vlaneseq
  %v653 = vshrl.u32 %v652, 7
  %v654 = vsub.s32 %v527, %v653
  %v655 = vrot.slane %v394, %v654
  %v656 = vsel %vm532, %v655, %v651
  %v657 = vlaneseq
  %v658 = vshrl.u32 %v657, 7
  %v659 = vsub.s32 %v534, %v658
  %v660 = vrot.slane %v397, %v659
  %v661 = vsel %vm539, %v660, %v656
  %v662 = vlaneseq
  %v663 = vshrl.u32 %v662, 7
  %v664 = vsub.s32 %v541, %v663
  %v665 = vrot.slane %v400, %v664
  %v666 = vsel %vm546, %v665, %v661
  %v667 = vlaneseq
  %v668 = vshrl.u32 %v667, 7
  %v669 = vsub.s32 %v548, %v668
  %v670 = vrot.slane %v403, %v669
  %v671 = vsel %vm553, %v670, %v666
  %v672 = vlaneseq
  %v673 = vshrl.u32 %v672, 7
  %v674 = vsub.s32 %v501, %v673
  %v675 = vrot.slane %v406, %v674
  %v676 = vlaneseq
  %v677 = vshrl.u32 %v676, 7
  %v678 = vsub.s32 %v506, %v677
  %v679 = vrot.slane %v409, %v678
  %v680 = vsel %vm511, %v679, %v675
  %v681 = vlaneseq
  %v682 = vshrl.u32 %v681, 7
  %v683 = vsub.s32 %v513, %v682
  %v684 = vrot.slane %v412, %v683
  %v685 = vsel %vm518, %v684, %v680
  %v686 = vlaneseq
  %v687 = vshrl.u32 %v686, 7
  %v688 = vsub.s32 %v520, %v687
  %v689 = vrot.slane %v415, %v688
  %v690 = vsel %vm525, %v689, %v685
  %v691 = vlaneseq
  %v692 = vshrl.u32 %v691, 7
  %v693 = vsub.s32 %v527, %v692
  %v694 = vrot.slane %v418, %v693
  %v695 = vsel %vm532, %v694, %v690
  %v696 = vlaneseq
  %v697 = vshrl.u32 %v696, 7
  %v698 = vsub.s32 %v534, %v697
  %v699 = vrot.slane %v421, %v698
  %v700 = vsel %vm539, %v699, %v695
  %v701 = vlaneseq
  %v702 = vshrl.u32 %v701, 7
  %v703 = vsub.s32 %v541, %v702
  %v704 = vrot.slane %v424, %v703
  %v705 = vsel %vm546, %v704, %v700
  %v706 = vlaneseq
  %v707 = vshrl.u32 %v706, 7
  %v708 = vsub.s32 %v548, %v707
  %v709 = vrot.slane %v427, %v708
  %v710 = vsel %vm553, %v709, %v705
  %v711 = vlaneseq
  %v712 = vshrl.u32 %v711, 7
  %v713 = vsub.s32 %v501, %v712
  %v714 = vrot.slane %v430, %v713
  %v715 = vlaneseq
  %v716 = vshrl.u32 %v715, 7
  %v717 = vsub.s32 %v506, %v716
  %v718 = vrot.slane %v433, %v717
  %v719 = vsel %vm511, %v718, %v714
  %v720 = vlaneseq
  %v721 = vshrl.u32 %v720, 7
  %v722 = vsub.s32 %v513, %v721
  %v723 = vrot.slane %v436, %v722
  %v724 = vsel %vm518, %v723, %v719
  %v725 = vlaneseq
  %v726 = vshrl.u32 %v725, 7
  %v727 = vsub.s32 %v520, %v726
  %v728 = vrot.slane %v439, %v727
  %v729 = vsel %vm525, %v728, %v724
  %v730 = vlaneseq
  %v731 = vshrl.u32 %v730, 7
  %v732 = vsub.s32 %v527, %v731
  %v733 = vrot.slane %v442, %v732
  %v734 = vsel %vm532, %v733, %v729
  %v735 = vlaneseq
  %v736 = vshrl.u32 %v735, 7
  %v737 = vsub.s32 %v534, %v736
  %v738 = vrot.slane %v445, %v737
  %v739 = vsel %vm539, %v738, %v734
  %v740 = vlaneseq
  %v741 = vshrl.u32 %v740, 7
  %v742 = vsub.s32 %v541, %v741
  %v743 = vrot.slane %v448, %v742
  %v744 = vsel %vm546, %v743, %v739
  %v745 = vlaneseq
  %v746 = vshrl.u32 %v745, 7
  %v747 = vsub.s32 %v548, %v746
  %v748 = vrot.slane %v451, %v747
  %v749 = vsel %vm553, %v748, %v744
  %v750 = vlaneseq
  %v751 = vshrl.u32 %v750, 7
  %v752 = vsub.s32 %v501, %v751
  %v753 = vrot.slane %v454, %v752
  %v754 = vlaneseq
  %v755 = vshrl.u32 %v754, 7
  %v756 = vsub.s32 %v506, %v755
  %v757 = vrot.slane %v457, %v756
  %v758 = vsel %vm511, %v757, %v753
  %v759 = vlaneseq
  %v760 = vshrl.u32 %v759, 7
  %v761 = vsub.s32 %v513, %v760
  %v762 = vrot.slane %v460, %v761
  %v763 = vsel %vm518, %v762, %v758
  %v764 = vlaneseq
  %v765 = vshrl.u32 %v764, 7
  %v766 = vsub.s32 %v520, %v765
  %v767 = vrot.slane %v463, %v766
  %v768 = vsel %vm525, %v767, %v763
  %v769 = vlaneseq
  %v770 = vshrl.u32 %v769, 7
  %v771 = vsub.s32 %v527, %v770
  %v772 = vrot.slane %v466, %v771
  %v773 = vsel %vm532, %v772, %v768
  %v774 = vlaneseq
  %v775 = vshrl.u32 %v774, 7
  %v776 = vsub.s32 %v534, %v775
  %v777 = vrot.slane %v469, %v776
  %v778 = vsel %vm539, %v777, %v773
  %v779 = vlaneseq
  %v780 = vshrl.u32 %v779, 7
  %v781 = vsub.s32 %v541, %v780
  %v782 = vrot.slane %v472, %v781
  %v783 = vsel %vm546, %v782, %v778
  %v784 = vlaneseq
  %v785 = vshrl.u32 %v784, 7
  %v786 = vsub.s32 %v548, %v785
  %v787 = vrot.slane %v475, %v786
  %v788 = vsel %vm553, %v787, %v783
  %v789 = vlaneseq
  %v790 = vshrl.u32 %v789, 7
  %v791 = vsub.s32 %v501, %v790
  %v792 = vrot.slane %v478, %v791
  %v793 = vlaneseq
  %v794 = vshrl.u32 %v793, 7
  %v795 = vsub.s32 %v506, %v794
  %v796 = vrot.slane %v481, %v795
  %v797 = vsel %vm511, %v796, %v792
  %v798 = vlaneseq
  %v799 = vshrl.u32 %v798, 7
  %v800 = vsub.s32 %v513, %v799
  %v801 = vrot.slane %v484, %v800
  %v802 = vsel %vm518, %v801, %v797
  %v803 = vlaneseq
  %v804 = vshrl.u32 %v803, 7
  %v805 = vsub.s32 %v520, %v804
  %v806 = vrot.slane %v487, %v805
  %v807 = vsel %vm525, %v806, %v802
  %v808 = vlaneseq
  %v809 = vshrl.u32 %v808, 7
  %v810 = vsub.s32 %v527, %v809
  %v811 = vrot.slane %v490, %v810
  %v812 = vsel %vm532, %v811, %v807
  %v813 = vlaneseq
  %v814 = vshrl.u32 %v813, 7
  %v815 = vsub.s32 %v534, %v814
  %v816 = vrot.slane %v493, %v815
  %v817 = vsel %vm539, %v816, %v812
  %v818 = vlaneseq
  %v819 = vshrl.u32 %v818, 7
  %v820 = vsub.s32 %v541, %v819
  %v821 = vrot.slane %v496, %v820
  %v822 = vsel %vm546, %v821, %v817
  %v823 = vlaneseq
  %v824 = vshrl.u32 %v823, 7
  %v825 = vsub.s32 %v548, %v824
  %v826 = vrot.slane %v499, %v825
  %v827 = vsel %vm553, %v826, %v822
  %vm828 = vcmask 1041409
  %v829 = vsel %vm828, %v593, %v554
  %vm830 = vcmask 1042434
  %v831 = vsel %vm830, %v632, %v829
  %vm832 = vcmask 1043459
  %v833 = vsel %vm832, %v671, %v831
  %vm834 = vcmask 1044484
  %v835 = vsel %vm834, %v710, %v833
  %vm836 = vcmask 1045509
  %v837 = vsel %vm836, %v749, %v835
  %vm838 = vcmask 1046534
  %v839 = vsel %vm838, %v788, %v837
  %vm840 = vcmask 1047559
  %v841 = vsel %vm840, %v827, %v839
  %v843 = vadd.f32 %v242, %v841
  %v844 = vlaneseq
  %v845 = vshrl.u32 %v844, 7
  %v846 = vsub.s32 1, %v845
  %v847 = vrot.slane %v88, %v846
  %v848 = vlaneseq
  %v849 = vshrl.u32 %v848, 7
  %v850 = vsub.s32 1, %v849
  %v851 = vrot.slane %v89, %v850
  %v852 = vlaneseq
  %v853 = vshrl.u32 %v852, 7
  %v854 = vsub.s32 1, %v853
  %v855 = vrot.slane %v90, %v854
  %v856 = vlaneseq
  %v857 = vshrl.u32 %v856, 7
  %v858 = vsub.s32 1, %v857
  %v859 = vrot.slane %v91, %v858
  %v860 = vlaneseq
  %v861 = vshrl.u32 %v860, 7
  %v862 = vsub.s32 1, %v861
  %v863 = vrot.slane %v92, %v862
  %v864 = vlaneseq
  %v865 = vshrl.u32 %v864, 7
  %v866 = vsub.s32 1, %v865
  %v867 = vrot.slane %v93, %v866
  %v868 = vlaneseq
  %v869 = vshrl.u32 %v868, 7
  %v870 = vsub.s32 1, %v869
  %v871 = vrot.slane %v94, %v870
  %v872 = vlaneseq
  %v873 = vshrl.u32 %v872, 7
  %v874 = vsub.s32 1, %v873
  %v875 = vrot.slane %v95, %v874
  %v876 = vlaneseq
  %v877 = vshrl.u32 %v876, 7
  %v878 = vsub.s32 1, %v877
  %v879 = vrot.slane %v96, %v878
  %882 = vbcast.lane.b32.xlu0 %v879, 256
  %v883 = vpop.permute.xlu0 %882
  %s885 = sor.u32 256, 8
  %886 = vbcast.lane.b32.xlu0 %v879, %s885
  %v887 = vpop.permute.xlu0 %886
  %s889 = sor.u32 256, 16
  %890 = vbcast.lane.b32.xlu0 %v879, %s889
  %v891 = vpop.permute.xlu0 %890
  %s893 = sor.u32 256, 24
  %894 = vbcast.lane.b32.xlu0 %v879, %s893
  %v895 = vpop.permute.xlu0 %894
  %s897 = sor.u32 256, 32
  %898 = vbcast.lane.b32.xlu0 %v879, %s897
  %v899 = vpop.permute.xlu0 %898
  %s901 = sor.u32 256, 40
  %902 = vbcast.lane.b32.xlu0 %v879, %s901
  %v903 = vpop.permute.xlu0 %902
  %s905 = sor.u32 256, 48
  %906 = vbcast.lane.b32.xlu0 %v879, %s905
  %v907 = vpop.permute.xlu0 %906
  %s909 = sor.u32 256, 56
  %910 = vbcast.lane.b32.xlu0 %v879, %s909
  %v911 = vpop.permute.xlu0 %910
  %v920 = vmul.f32 %v847, %v883
  %v921 = vmul.f32 %v847, %v887
  %v922 = vmul.f32 %v847, %v891
  %v923 = vmul.f32 %v847, %v895
  %v924 = vmul.f32 %v847, %v899
  %v925 = vmul.f32 %v847, %v903
  %v926 = vmul.f32 %v847, %v907
  %v927 = vmul.f32 %v847, %v911
  %v928 = vmul.f32 %v851, %v883
  %v929 = vmul.f32 %v851, %v887
  %v930 = vmul.f32 %v851, %v891
  %v931 = vmul.f32 %v851, %v895
  %v932 = vmul.f32 %v851, %v899
  %v933 = vmul.f32 %v851, %v903
  %v934 = vmul.f32 %v851, %v907
  %v935 = vmul.f32 %v851, %v911
  %v936 = vmul.f32 %v855, %v883
  %v937 = vmul.f32 %v855, %v887
  %v938 = vmul.f32 %v855, %v891
  %v939 = vmul.f32 %v855, %v895
  %v940 = vmul.f32 %v855, %v899
  %v941 = vmul.f32 %v855, %v903
  %v942 = vmul.f32 %v855, %v907
  %v943 = vmul.f32 %v855, %v911
  %v944 = vmul.f32 %v859, %v883
  %v945 = vmul.f32 %v859, %v887
  %v946 = vmul.f32 %v859, %v891
  %v947 = vmul.f32 %v859, %v895
  %v948 = vmul.f32 %v859, %v899
  %v949 = vmul.f32 %v859, %v903
  %v950 = vmul.f32 %v859, %v907
  %v951 = vmul.f32 %v859, %v911
  %v952 = vmul.f32 %v863, %v883
  %v953 = vmul.f32 %v863, %v887
  %v954 = vmul.f32 %v863, %v891
  %v955 = vmul.f32 %v863, %v895
  %v956 = vmul.f32 %v863, %v899
  %v957 = vmul.f32 %v863, %v903
  %v958 = vmul.f32 %v863, %v907
  %v959 = vmul.f32 %v863, %v911
  %v960 = vmul.f32 %v867, %v883
  %v961 = vmul.f32 %v867, %v887
  %v962 = vmul.f32 %v867, %v891
  %v963 = vmul.f32 %v867, %v895
  %v964 = vmul.f32 %v867, %v899
  %v965 = vmul.f32 %v867, %v903
  %v966 = vmul.f32 %v867, %v907
  %v967 = vmul.f32 %v867, %v911
  %v968 = vmul.f32 %v871, %v883
  %v969 = vmul.f32 %v871, %v887
  %v970 = vmul.f32 %v871, %v891
  %v971 = vmul.f32 %v871, %v895
  %v972 = vmul.f32 %v871, %v899
  %v973 = vmul.f32 %v871, %v903
  %v974 = vmul.f32 %v871, %v907
  %v975 = vmul.f32 %v871, %v911
  %v976 = vmul.f32 %v875, %v883
  %v977 = vmul.f32 %v875, %v887
  %v978 = vmul.f32 %v875, %v891
  %v979 = vmul.f32 %v875, %v895
  %v980 = vmul.f32 %v875, %v899
  %v981 = vmul.f32 %v875, %v903
  %v982 = vmul.f32 %v875, %v907
  %v983 = vmul.f32 %v875, %v911
  %1048 = vset.pattern.permute.xlu0 0
  %1049 = vperm.xlu0 %1048, %v920
  %v1050 = vpop.permute.xlu0 %1049
  %1051 = vset.pattern.permute.xlu0 0
  %1052 = vperm.xlu0 %1051, %v921
  %v1053 = vpop.permute.xlu0 %1052
  %1054 = vset.pattern.permute.xlu0 0
  %1055 = vperm.xlu0 %1054, %v922
  %v1056 = vpop.permute.xlu0 %1055
  %1057 = vset.pattern.permute.xlu0 0
  %1058 = vperm.xlu0 %1057, %v923
  %v1059 = vpop.permute.xlu0 %1058
  %1060 = vset.pattern.permute.xlu0 0
  %1061 = vperm.xlu0 %1060, %v924
  %v1062 = vpop.permute.xlu0 %1061
  %1063 = vset.pattern.permute.xlu0 0
  %1064 = vperm.xlu0 %1063, %v925
  %v1065 = vpop.permute.xlu0 %1064
  %1066 = vset.pattern.permute.xlu0 0
  %1067 = vperm.xlu0 %1066, %v926
  %v1068 = vpop.permute.xlu0 %1067
  %1069 = vset.pattern.permute.xlu0 0
  %1070 = vperm.xlu0 %1069, %v927
  %v1071 = vpop.permute.xlu0 %1070
  %1072 = vset.pattern.permute.xlu0 0
  %1073 = vperm.xlu0 %1072, %v928
  %v1074 = vpop.permute.xlu0 %1073
  %1075 = vset.pattern.permute.xlu0 0
  %1076 = vperm.xlu0 %1075, %v929
  %v1077 = vpop.permute.xlu0 %1076
  %1078 = vset.pattern.permute.xlu0 0
  %1079 = vperm.xlu0 %1078, %v930
  %v1080 = vpop.permute.xlu0 %1079
  %1081 = vset.pattern.permute.xlu0 0
  %1082 = vperm.xlu0 %1081, %v931
  %v1083 = vpop.permute.xlu0 %1082
  %1084 = vset.pattern.permute.xlu0 0
  %1085 = vperm.xlu0 %1084, %v932
  %v1086 = vpop.permute.xlu0 %1085
  %1087 = vset.pattern.permute.xlu0 0
  %1088 = vperm.xlu0 %1087, %v933
  %v1089 = vpop.permute.xlu0 %1088
  %1090 = vset.pattern.permute.xlu0 0
  %1091 = vperm.xlu0 %1090, %v934
  %v1092 = vpop.permute.xlu0 %1091
  %1093 = vset.pattern.permute.xlu0 0
  %1094 = vperm.xlu0 %1093, %v935
  %v1095 = vpop.permute.xlu0 %1094
  %1096 = vset.pattern.permute.xlu0 0
  %1097 = vperm.xlu0 %1096, %v936
  %v1098 = vpop.permute.xlu0 %1097
  %1099 = vset.pattern.permute.xlu0 0
  %1100 = vperm.xlu0 %1099, %v937
  %v1101 = vpop.permute.xlu0 %1100
  %1102 = vset.pattern.permute.xlu0 0
  %1103 = vperm.xlu0 %1102, %v938
  %v1104 = vpop.permute.xlu0 %1103
  %1105 = vset.pattern.permute.xlu0 0
  %1106 = vperm.xlu0 %1105, %v939
  %v1107 = vpop.permute.xlu0 %1106
  %1108 = vset.pattern.permute.xlu0 0
  %1109 = vperm.xlu0 %1108, %v940
  %v1110 = vpop.permute.xlu0 %1109
  %1111 = vset.pattern.permute.xlu0 0
  %1112 = vperm.xlu0 %1111, %v941
  %v1113 = vpop.permute.xlu0 %1112
  %1114 = vset.pattern.permute.xlu0 0
  %1115 = vperm.xlu0 %1114, %v942
  %v1116 = vpop.permute.xlu0 %1115
  %1117 = vset.pattern.permute.xlu0 0
  %1118 = vperm.xlu0 %1117, %v943
  %v1119 = vpop.permute.xlu0 %1118
  %1120 = vset.pattern.permute.xlu0 0
  %1121 = vperm.xlu0 %1120, %v944
  %v1122 = vpop.permute.xlu0 %1121
  %1123 = vset.pattern.permute.xlu0 0
  %1124 = vperm.xlu0 %1123, %v945
  %v1125 = vpop.permute.xlu0 %1124
  %1126 = vset.pattern.permute.xlu0 0
  %1127 = vperm.xlu0 %1126, %v946
  %v1128 = vpop.permute.xlu0 %1127
  %1129 = vset.pattern.permute.xlu0 0
  %1130 = vperm.xlu0 %1129, %v947
  %v1131 = vpop.permute.xlu0 %1130
  %1132 = vset.pattern.permute.xlu0 0
  %1133 = vperm.xlu0 %1132, %v948
  %v1134 = vpop.permute.xlu0 %1133
  %1135 = vset.pattern.permute.xlu0 0
  %1136 = vperm.xlu0 %1135, %v949
  %v1137 = vpop.permute.xlu0 %1136
  %1138 = vset.pattern.permute.xlu0 0
  %1139 = vperm.xlu0 %1138, %v950
  %v1140 = vpop.permute.xlu0 %1139
  %1141 = vset.pattern.permute.xlu0 0
  %1142 = vperm.xlu0 %1141, %v951
  %v1143 = vpop.permute.xlu0 %1142
  %1144 = vset.pattern.permute.xlu0 0
  %1145 = vperm.xlu0 %1144, %v952
  %v1146 = vpop.permute.xlu0 %1145
  %1147 = vset.pattern.permute.xlu0 0
  %1148 = vperm.xlu0 %1147, %v953
  %v1149 = vpop.permute.xlu0 %1148
  %1150 = vset.pattern.permute.xlu0 0
  %1151 = vperm.xlu0 %1150, %v954
  %v1152 = vpop.permute.xlu0 %1151
  %1153 = vset.pattern.permute.xlu0 0
  %1154 = vperm.xlu0 %1153, %v955
  %v1155 = vpop.permute.xlu0 %1154
  %1156 = vset.pattern.permute.xlu0 0
  %1157 = vperm.xlu0 %1156, %v956
  %v1158 = vpop.permute.xlu0 %1157
  %1159 = vset.pattern.permute.xlu0 0
  %1160 = vperm.xlu0 %1159, %v957
  %v1161 = vpop.permute.xlu0 %1160
  %1162 = vset.pattern.permute.xlu0 0
  %1163 = vperm.xlu0 %1162, %v958
  %v1164 = vpop.permute.xlu0 %1163
  %1165 = vset.pattern.permute.xlu0 0
  %1166 = vperm.xlu0 %1165, %v959
  %v1167 = vpop.permute.xlu0 %1166
  %1168 = vset.pattern.permute.xlu0 0
  %1169 = vperm.xlu0 %1168, %v960
  %v1170 = vpop.permute.xlu0 %1169
  %1171 = vset.pattern.permute.xlu0 0
  %1172 = vperm.xlu0 %1171, %v961
  %v1173 = vpop.permute.xlu0 %1172
  %1174 = vset.pattern.permute.xlu0 0
  %1175 = vperm.xlu0 %1174, %v962
  %v1176 = vpop.permute.xlu0 %1175
  %1177 = vset.pattern.permute.xlu0 0
  %1178 = vperm.xlu0 %1177, %v963
  %v1179 = vpop.permute.xlu0 %1178
  %1180 = vset.pattern.permute.xlu0 0
  %1181 = vperm.xlu0 %1180, %v964
  %v1182 = vpop.permute.xlu0 %1181
  %1183 = vset.pattern.permute.xlu0 0
  %1184 = vperm.xlu0 %1183, %v965
  %v1185 = vpop.permute.xlu0 %1184
  %1186 = vset.pattern.permute.xlu0 0
  %1187 = vperm.xlu0 %1186, %v966
  %v1188 = vpop.permute.xlu0 %1187
  %1189 = vset.pattern.permute.xlu0 0
  %1190 = vperm.xlu0 %1189, %v967
  %v1191 = vpop.permute.xlu0 %1190
  %1192 = vset.pattern.permute.xlu0 0
  %1193 = vperm.xlu0 %1192, %v968
  %v1194 = vpop.permute.xlu0 %1193
  %1195 = vset.pattern.permute.xlu0 0
  %1196 = vperm.xlu0 %1195, %v969
  %v1197 = vpop.permute.xlu0 %1196
  %1198 = vset.pattern.permute.xlu0 0
  %1199 = vperm.xlu0 %1198, %v970
  %v1200 = vpop.permute.xlu0 %1199
  %1201 = vset.pattern.permute.xlu0 0
  %1202 = vperm.xlu0 %1201, %v971
  %v1203 = vpop.permute.xlu0 %1202
  %1204 = vset.pattern.permute.xlu0 0
  %1205 = vperm.xlu0 %1204, %v972
  %v1206 = vpop.permute.xlu0 %1205
  %1207 = vset.pattern.permute.xlu0 0
  %1208 = vperm.xlu0 %1207, %v973
  %v1209 = vpop.permute.xlu0 %1208
  %1210 = vset.pattern.permute.xlu0 0
  %1211 = vperm.xlu0 %1210, %v974
  %v1212 = vpop.permute.xlu0 %1211
  %1213 = vset.pattern.permute.xlu0 0
  %1214 = vperm.xlu0 %1213, %v975
  %v1215 = vpop.permute.xlu0 %1214
  %1216 = vset.pattern.permute.xlu0 0
  %1217 = vperm.xlu0 %1216, %v976
  %v1218 = vpop.permute.xlu0 %1217
  %1219 = vset.pattern.permute.xlu0 0
  %1220 = vperm.xlu0 %1219, %v977
  %v1221 = vpop.permute.xlu0 %1220
  %1222 = vset.pattern.permute.xlu0 0
  %1223 = vperm.xlu0 %1222, %v978
  %v1224 = vpop.permute.xlu0 %1223
  %1225 = vset.pattern.permute.xlu0 0
  %1226 = vperm.xlu0 %1225, %v979
  %v1227 = vpop.permute.xlu0 %1226
  %1228 = vset.pattern.permute.xlu0 0
  %1229 = vperm.xlu0 %1228, %v980
  %v1230 = vpop.permute.xlu0 %1229
  %1231 = vset.pattern.permute.xlu0 0
  %1232 = vperm.xlu0 %1231, %v981
  %v1233 = vpop.permute.xlu0 %1232
  %1234 = vset.pattern.permute.xlu0 0
  %1235 = vperm.xlu0 %1234, %v982
  %v1236 = vpop.permute.xlu0 %1235
  %1237 = vset.pattern.permute.xlu0 0
  %1238 = vperm.xlu0 %1237, %v983
  %v1239 = vpop.permute.xlu0 %1238
  %v1240 = vlaneseq
  %v1241 = vshrl.u32 %v1240, 7
  %v1242 = vsub.s32 %v501, %v1241
  %v1243 = vrot.slane %v1050, %v1242
  %v1244 = vlaneseq
  %v1245 = vshrl.u32 %v1244, 7
  %v1246 = vsub.s32 %v506, %v1245
  %v1247 = vrot.slane %v1053, %v1246
  %v1248 = vsel %vm511, %v1247, %v1243
  %v1249 = vlaneseq
  %v1250 = vshrl.u32 %v1249, 7
  %v1251 = vsub.s32 %v513, %v1250
  %v1252 = vrot.slane %v1056, %v1251
  %v1253 = vsel %vm518, %v1252, %v1248
  %v1254 = vlaneseq
  %v1255 = vshrl.u32 %v1254, 7
  %v1256 = vsub.s32 %v520, %v1255
  %v1257 = vrot.slane %v1059, %v1256
  %v1258 = vsel %vm525, %v1257, %v1253
  %v1259 = vlaneseq
  %v1260 = vshrl.u32 %v1259, 7
  %v1261 = vsub.s32 %v527, %v1260
  %v1262 = vrot.slane %v1062, %v1261
  %v1263 = vsel %vm532, %v1262, %v1258
  %v1264 = vlaneseq
  %v1265 = vshrl.u32 %v1264, 7
  %v1266 = vsub.s32 %v534, %v1265
  %v1267 = vrot.slane %v1065, %v1266
  %v1268 = vsel %vm539, %v1267, %v1263
  %v1269 = vlaneseq
  %v1270 = vshrl.u32 %v1269, 7
  %v1271 = vsub.s32 %v541, %v1270
  %v1272 = vrot.slane %v1068, %v1271
  %v1273 = vsel %vm546, %v1272, %v1268
  %v1274 = vlaneseq
  %v1275 = vshrl.u32 %v1274, 7
  %v1276 = vsub.s32 %v548, %v1275
  %v1277 = vrot.slane %v1071, %v1276
  %v1278 = vsel %vm553, %v1277, %v1273
  %v1279 = vlaneseq
  %v1280 = vshrl.u32 %v1279, 7
  %v1281 = vsub.s32 %v501, %v1280
  %v1282 = vrot.slane %v1074, %v1281
  %v1283 = vlaneseq
  %v1284 = vshrl.u32 %v1283, 7
  %v1285 = vsub.s32 %v506, %v1284
  %v1286 = vrot.slane %v1077, %v1285
  %v1287 = vsel %vm511, %v1286, %v1282
  %v1288 = vlaneseq
  %v1289 = vshrl.u32 %v1288, 7
  %v1290 = vsub.s32 %v513, %v1289
  %v1291 = vrot.slane %v1080, %v1290
  %v1292 = vsel %vm518, %v1291, %v1287
  %v1293 = vlaneseq
  %v1294 = vshrl.u32 %v1293, 7
  %v1295 = vsub.s32 %v520, %v1294
  %v1296 = vrot.slane %v1083, %v1295
  %v1297 = vsel %vm525, %v1296, %v1292
  %v1298 = vlaneseq
  %v1299 = vshrl.u32 %v1298, 7
  %v1300 = vsub.s32 %v527, %v1299
  %v1301 = vrot.slane %v1086, %v1300
  %v1302 = vsel %vm532, %v1301, %v1297
  %v1303 = vlaneseq
  %v1304 = vshrl.u32 %v1303, 7
  %v1305 = vsub.s32 %v534, %v1304
  %v1306 = vrot.slane %v1089, %v1305
  %v1307 = vsel %vm539, %v1306, %v1302
  %v1308 = vlaneseq
  %v1309 = vshrl.u32 %v1308, 7
  %v1310 = vsub.s32 %v541, %v1309
  %v1311 = vrot.slane %v1092, %v1310
  %v1312 = vsel %vm546, %v1311, %v1307
  %v1313 = vlaneseq
  %v1314 = vshrl.u32 %v1313, 7
  %v1315 = vsub.s32 %v548, %v1314
  %v1316 = vrot.slane %v1095, %v1315
  %v1317 = vsel %vm553, %v1316, %v1312
  %v1318 = vlaneseq
  %v1319 = vshrl.u32 %v1318, 7
  %v1320 = vsub.s32 %v501, %v1319
  %v1321 = vrot.slane %v1098, %v1320
  %v1322 = vlaneseq
  %v1323 = vshrl.u32 %v1322, 7
  %v1324 = vsub.s32 %v506, %v1323
  %v1325 = vrot.slane %v1101, %v1324
  %v1326 = vsel %vm511, %v1325, %v1321
  %v1327 = vlaneseq
  %v1328 = vshrl.u32 %v1327, 7
  %v1329 = vsub.s32 %v513, %v1328
  %v1330 = vrot.slane %v1104, %v1329
  %v1331 = vsel %vm518, %v1330, %v1326
  %v1332 = vlaneseq
  %v1333 = vshrl.u32 %v1332, 7
  %v1334 = vsub.s32 %v520, %v1333
  %v1335 = vrot.slane %v1107, %v1334
  %v1336 = vsel %vm525, %v1335, %v1331
  %v1337 = vlaneseq
  %v1338 = vshrl.u32 %v1337, 7
  %v1339 = vsub.s32 %v527, %v1338
  %v1340 = vrot.slane %v1110, %v1339
  %v1341 = vsel %vm532, %v1340, %v1336
  %v1342 = vlaneseq
  %v1343 = vshrl.u32 %v1342, 7
  %v1344 = vsub.s32 %v534, %v1343
  %v1345 = vrot.slane %v1113, %v1344
  %v1346 = vsel %vm539, %v1345, %v1341
  %v1347 = vlaneseq
  %v1348 = vshrl.u32 %v1347, 7
  %v1349 = vsub.s32 %v541, %v1348
  %v1350 = vrot.slane %v1116, %v1349
  %v1351 = vsel %vm546, %v1350, %v1346
  %v1352 = vlaneseq
  %v1353 = vshrl.u32 %v1352, 7
  %v1354 = vsub.s32 %v548, %v1353
  %v1355 = vrot.slane %v1119, %v1354
  %v1356 = vsel %vm553, %v1355, %v1351
  %v1357 = vlaneseq
  %v1358 = vshrl.u32 %v1357, 7
  %v1359 = vsub.s32 %v501, %v1358
  %v1360 = vrot.slane %v1122, %v1359
  %v1361 = vlaneseq
  %v1362 = vshrl.u32 %v1361, 7
  %v1363 = vsub.s32 %v506, %v1362
  %v1364 = vrot.slane %v1125, %v1363
  %v1365 = vsel %vm511, %v1364, %v1360
  %v1366 = vlaneseq
  %v1367 = vshrl.u32 %v1366, 7
  %v1368 = vsub.s32 %v513, %v1367
  %v1369 = vrot.slane %v1128, %v1368
  %v1370 = vsel %vm518, %v1369, %v1365
  %v1371 = vlaneseq
  %v1372 = vshrl.u32 %v1371, 7
  %v1373 = vsub.s32 %v520, %v1372
  %v1374 = vrot.slane %v1131, %v1373
  %v1375 = vsel %vm525, %v1374, %v1370
  %v1376 = vlaneseq
  %v1377 = vshrl.u32 %v1376, 7
  %v1378 = vsub.s32 %v527, %v1377
  %v1379 = vrot.slane %v1134, %v1378
  %v1380 = vsel %vm532, %v1379, %v1375
  %v1381 = vlaneseq
  %v1382 = vshrl.u32 %v1381, 7
  %v1383 = vsub.s32 %v534, %v1382
  %v1384 = vrot.slane %v1137, %v1383
  %v1385 = vsel %vm539, %v1384, %v1380
  %v1386 = vlaneseq
  %v1387 = vshrl.u32 %v1386, 7
  %v1388 = vsub.s32 %v541, %v1387
  %v1389 = vrot.slane %v1140, %v1388
  %v1390 = vsel %vm546, %v1389, %v1385
  %v1391 = vlaneseq
  %v1392 = vshrl.u32 %v1391, 7
  %v1393 = vsub.s32 %v548, %v1392
  %v1394 = vrot.slane %v1143, %v1393
  %v1395 = vsel %vm553, %v1394, %v1390
  %v1396 = vlaneseq
  %v1397 = vshrl.u32 %v1396, 7
  %v1398 = vsub.s32 %v501, %v1397
  %v1399 = vrot.slane %v1146, %v1398
  %v1400 = vlaneseq
  %v1401 = vshrl.u32 %v1400, 7
  %v1402 = vsub.s32 %v506, %v1401
  %v1403 = vrot.slane %v1149, %v1402
  %v1404 = vsel %vm511, %v1403, %v1399
  %v1405 = vlaneseq
  %v1406 = vshrl.u32 %v1405, 7
  %v1407 = vsub.s32 %v513, %v1406
  %v1408 = vrot.slane %v1152, %v1407
  %v1409 = vsel %vm518, %v1408, %v1404
  %v1410 = vlaneseq
  %v1411 = vshrl.u32 %v1410, 7
  %v1412 = vsub.s32 %v520, %v1411
  %v1413 = vrot.slane %v1155, %v1412
  %v1414 = vsel %vm525, %v1413, %v1409
  %v1415 = vlaneseq
  %v1416 = vshrl.u32 %v1415, 7
  %v1417 = vsub.s32 %v527, %v1416
  %v1418 = vrot.slane %v1158, %v1417
  %v1419 = vsel %vm532, %v1418, %v1414
  %v1420 = vlaneseq
  %v1421 = vshrl.u32 %v1420, 7
  %v1422 = vsub.s32 %v534, %v1421
  %v1423 = vrot.slane %v1161, %v1422
  %v1424 = vsel %vm539, %v1423, %v1419
  %v1425 = vlaneseq
  %v1426 = vshrl.u32 %v1425, 7
  %v1427 = vsub.s32 %v541, %v1426
  %v1428 = vrot.slane %v1164, %v1427
  %v1429 = vsel %vm546, %v1428, %v1424
  %v1430 = vlaneseq
  %v1431 = vshrl.u32 %v1430, 7
  %v1432 = vsub.s32 %v548, %v1431
  %v1433 = vrot.slane %v1167, %v1432
  %v1434 = vsel %vm553, %v1433, %v1429
  %v1435 = vlaneseq
  %v1436 = vshrl.u32 %v1435, 7
  %v1437 = vsub.s32 %v501, %v1436
  %v1438 = vrot.slane %v1170, %v1437
  %v1439 = vlaneseq
  %v1440 = vshrl.u32 %v1439, 7
  %v1441 = vsub.s32 %v506, %v1440
  %v1442 = vrot.slane %v1173, %v1441
  %v1443 = vsel %vm511, %v1442, %v1438
  %v1444 = vlaneseq
  %v1445 = vshrl.u32 %v1444, 7
  %v1446 = vsub.s32 %v513, %v1445
  %v1447 = vrot.slane %v1176, %v1446
  %v1448 = vsel %vm518, %v1447, %v1443
  %v1449 = vlaneseq
  %v1450 = vshrl.u32 %v1449, 7
  %v1451 = vsub.s32 %v520, %v1450
  %v1452 = vrot.slane %v1179, %v1451
  %v1453 = vsel %vm525, %v1452, %v1448
  %v1454 = vlaneseq
  %v1455 = vshrl.u32 %v1454, 7
  %v1456 = vsub.s32 %v527, %v1455
  %v1457 = vrot.slane %v1182, %v1456
  %v1458 = vsel %vm532, %v1457, %v1453
  %v1459 = vlaneseq
  %v1460 = vshrl.u32 %v1459, 7
  %v1461 = vsub.s32 %v534, %v1460
  %v1462 = vrot.slane %v1185, %v1461
  %v1463 = vsel %vm539, %v1462, %v1458
  %v1464 = vlaneseq
  %v1465 = vshrl.u32 %v1464, 7
  %v1466 = vsub.s32 %v541, %v1465
  %v1467 = vrot.slane %v1188, %v1466
  %v1468 = vsel %vm546, %v1467, %v1463
  %v1469 = vlaneseq
  %v1470 = vshrl.u32 %v1469, 7
  %v1471 = vsub.s32 %v548, %v1470
  %v1472 = vrot.slane %v1191, %v1471
  %v1473 = vsel %vm553, %v1472, %v1468
  %v1474 = vlaneseq
  %v1475 = vshrl.u32 %v1474, 7
  %v1476 = vsub.s32 %v501, %v1475
  %v1477 = vrot.slane %v1194, %v1476
  %v1478 = vlaneseq
  %v1479 = vshrl.u32 %v1478, 7
  %v1480 = vsub.s32 %v506, %v1479
  %v1481 = vrot.slane %v1197, %v1480
  %v1482 = vsel %vm511, %v1481, %v1477
  %v1483 = vlaneseq
  %v1484 = vshrl.u32 %v1483, 7
  %v1485 = vsub.s32 %v513, %v1484
  %v1486 = vrot.slane %v1200, %v1485
  %v1487 = vsel %vm518, %v1486, %v1482
  %v1488 = vlaneseq
  %v1489 = vshrl.u32 %v1488, 7
  %v1490 = vsub.s32 %v520, %v1489
  %v1491 = vrot.slane %v1203, %v1490
  %v1492 = vsel %vm525, %v1491, %v1487
  %v1493 = vlaneseq
  %v1494 = vshrl.u32 %v1493, 7
  %v1495 = vsub.s32 %v527, %v1494
  %v1496 = vrot.slane %v1206, %v1495
  %v1497 = vsel %vm532, %v1496, %v1492
  %v1498 = vlaneseq
  %v1499 = vshrl.u32 %v1498, 7
  %v1500 = vsub.s32 %v534, %v1499
  %v1501 = vrot.slane %v1209, %v1500
  %v1502 = vsel %vm539, %v1501, %v1497
  %v1503 = vlaneseq
  %v1504 = vshrl.u32 %v1503, 7
  %v1505 = vsub.s32 %v541, %v1504
  %v1506 = vrot.slane %v1212, %v1505
  %v1507 = vsel %vm546, %v1506, %v1502
  %v1508 = vlaneseq
  %v1509 = vshrl.u32 %v1508, 7
  %v1510 = vsub.s32 %v548, %v1509
  %v1511 = vrot.slane %v1215, %v1510
  %v1512 = vsel %vm553, %v1511, %v1507
  %v1513 = vlaneseq
  %v1514 = vshrl.u32 %v1513, 7
  %v1515 = vsub.s32 %v501, %v1514
  %v1516 = vrot.slane %v1218, %v1515
  %v1517 = vlaneseq
  %v1518 = vshrl.u32 %v1517, 7
  %v1519 = vsub.s32 %v506, %v1518
  %v1520 = vrot.slane %v1221, %v1519
  %v1521 = vsel %vm511, %v1520, %v1516
  %v1522 = vlaneseq
  %v1523 = vshrl.u32 %v1522, 7
  %v1524 = vsub.s32 %v513, %v1523
  %v1525 = vrot.slane %v1224, %v1524
  %v1526 = vsel %vm518, %v1525, %v1521
  %v1527 = vlaneseq
  %v1528 = vshrl.u32 %v1527, 7
  %v1529 = vsub.s32 %v520, %v1528
  %v1530 = vrot.slane %v1227, %v1529
  %v1531 = vsel %vm525, %v1530, %v1526
  %v1532 = vlaneseq
  %v1533 = vshrl.u32 %v1532, 7
  %v1534 = vsub.s32 %v527, %v1533
  %v1535 = vrot.slane %v1230, %v1534
  %v1536 = vsel %vm532, %v1535, %v1531
  %v1537 = vlaneseq
  %v1538 = vshrl.u32 %v1537, 7
  %v1539 = vsub.s32 %v534, %v1538
  %v1540 = vrot.slane %v1233, %v1539
  %v1541 = vsel %vm539, %v1540, %v1536
  %v1542 = vlaneseq
  %v1543 = vshrl.u32 %v1542, 7
  %v1544 = vsub.s32 %v541, %v1543
  %v1545 = vrot.slane %v1236, %v1544
  %v1546 = vsel %vm546, %v1545, %v1541
  %v1547 = vlaneseq
  %v1548 = vshrl.u32 %v1547, 7
  %v1549 = vsub.s32 %v548, %v1548
  %v1550 = vrot.slane %v1239, %v1549
  %v1551 = vsel %vm553, %v1550, %v1546
  %v1552 = vsel %vm828, %v1317, %v1278
  %v1553 = vsel %vm830, %v1356, %v1552
  %v1554 = vsel %vm832, %v1395, %v1553
  %v1555 = vsel %vm834, %v1434, %v1554
  %v1556 = vsel %vm836, %v1473, %v1555
  %v1557 = vsel %vm838, %v1512, %v1556
  %v1558 = vsel %vm840, %v1551, %v1557
  %v1560 = vadd.f32 %v843, %v1558
  %v1561 = vlaneseq
  %v1562 = vshrl.u32 %v1561, 7
  %v1563 = vsub.s32 2, %v1562
  %v1564 = vrot.slane %v88, %v1563
  %v1565 = vlaneseq
  %v1566 = vshrl.u32 %v1565, 7
  %v1567 = vsub.s32 2, %v1566
  %v1568 = vrot.slane %v89, %v1567
  %v1569 = vlaneseq
  %v1570 = vshrl.u32 %v1569, 7
  %v1571 = vsub.s32 2, %v1570
  %v1572 = vrot.slane %v90, %v1571
  %v1573 = vlaneseq
  %v1574 = vshrl.u32 %v1573, 7
  %v1575 = vsub.s32 2, %v1574
  %v1576 = vrot.slane %v91, %v1575
  %v1577 = vlaneseq
  %v1578 = vshrl.u32 %v1577, 7
  %v1579 = vsub.s32 2, %v1578
  %v1580 = vrot.slane %v92, %v1579
  %v1581 = vlaneseq
  %v1582 = vshrl.u32 %v1581, 7
  %v1583 = vsub.s32 2, %v1582
  %v1584 = vrot.slane %v93, %v1583
  %v1585 = vlaneseq
  %v1586 = vshrl.u32 %v1585, 7
  %v1587 = vsub.s32 2, %v1586
  %v1588 = vrot.slane %v94, %v1587
  %v1589 = vlaneseq
  %v1590 = vshrl.u32 %v1589, 7
  %v1591 = vsub.s32 2, %v1590
  %v1592 = vrot.slane %v95, %v1591
  %v1593 = vlaneseq
  %v1594 = vshrl.u32 %v1593, 7
  %v1595 = vsub.s32 2, %v1594
  %v1596 = vrot.slane %v96, %v1595
  %1599 = vbcast.lane.b32.xlu0 %v1596, 256
  %v1600 = vpop.permute.xlu0 %1599
  %s1602 = sor.u32 256, 8
  %1603 = vbcast.lane.b32.xlu0 %v1596, %s1602
  %v1604 = vpop.permute.xlu0 %1603
  %s1606 = sor.u32 256, 16
  %1607 = vbcast.lane.b32.xlu0 %v1596, %s1606
  %v1608 = vpop.permute.xlu0 %1607
  %s1610 = sor.u32 256, 24
  %1611 = vbcast.lane.b32.xlu0 %v1596, %s1610
  %v1612 = vpop.permute.xlu0 %1611
  %s1614 = sor.u32 256, 32
  %1615 = vbcast.lane.b32.xlu0 %v1596, %s1614
  %v1616 = vpop.permute.xlu0 %1615
  %s1618 = sor.u32 256, 40
  %1619 = vbcast.lane.b32.xlu0 %v1596, %s1618
  %v1620 = vpop.permute.xlu0 %1619
  %s1622 = sor.u32 256, 48
  %1623 = vbcast.lane.b32.xlu0 %v1596, %s1622
  %v1624 = vpop.permute.xlu0 %1623
  %s1626 = sor.u32 256, 56
  %1627 = vbcast.lane.b32.xlu0 %v1596, %s1626
  %v1628 = vpop.permute.xlu0 %1627
  %v1637 = vmul.f32 %v1564, %v1600
  %v1638 = vmul.f32 %v1564, %v1604
  %v1639 = vmul.f32 %v1564, %v1608
  %v1640 = vmul.f32 %v1564, %v1612
  %v1641 = vmul.f32 %v1564, %v1616
  %v1642 = vmul.f32 %v1564, %v1620
  %v1643 = vmul.f32 %v1564, %v1624
  %v1644 = vmul.f32 %v1564, %v1628
  %v1645 = vmul.f32 %v1568, %v1600
  %v1646 = vmul.f32 %v1568, %v1604
  %v1647 = vmul.f32 %v1568, %v1608
  %v1648 = vmul.f32 %v1568, %v1612
  %v1649 = vmul.f32 %v1568, %v1616
  %v1650 = vmul.f32 %v1568, %v1620
  %v1651 = vmul.f32 %v1568, %v1624
  %v1652 = vmul.f32 %v1568, %v1628
  %v1653 = vmul.f32 %v1572, %v1600
  %v1654 = vmul.f32 %v1572, %v1604
  %v1655 = vmul.f32 %v1572, %v1608
  %v1656 = vmul.f32 %v1572, %v1612
  %v1657 = vmul.f32 %v1572, %v1616
  %v1658 = vmul.f32 %v1572, %v1620
  %v1659 = vmul.f32 %v1572, %v1624
  %v1660 = vmul.f32 %v1572, %v1628
  %v1661 = vmul.f32 %v1576, %v1600
  %v1662 = vmul.f32 %v1576, %v1604
  %v1663 = vmul.f32 %v1576, %v1608
  %v1664 = vmul.f32 %v1576, %v1612
  %v1665 = vmul.f32 %v1576, %v1616
  %v1666 = vmul.f32 %v1576, %v1620
  %v1667 = vmul.f32 %v1576, %v1624
  %v1668 = vmul.f32 %v1576, %v1628
  %v1669 = vmul.f32 %v1580, %v1600
  %v1670 = vmul.f32 %v1580, %v1604
  %v1671 = vmul.f32 %v1580, %v1608
  %v1672 = vmul.f32 %v1580, %v1612
  %v1673 = vmul.f32 %v1580, %v1616
  %v1674 = vmul.f32 %v1580, %v1620
  %v1675 = vmul.f32 %v1580, %v1624
  %v1676 = vmul.f32 %v1580, %v1628
  %v1677 = vmul.f32 %v1584, %v1600
  %v1678 = vmul.f32 %v1584, %v1604
  %v1679 = vmul.f32 %v1584, %v1608
  %v1680 = vmul.f32 %v1584, %v1612
  %v1681 = vmul.f32 %v1584, %v1616
  %v1682 = vmul.f32 %v1584, %v1620
  %v1683 = vmul.f32 %v1584, %v1624
  %v1684 = vmul.f32 %v1584, %v1628
  %v1685 = vmul.f32 %v1588, %v1600
  %v1686 = vmul.f32 %v1588, %v1604
  %v1687 = vmul.f32 %v1588, %v1608
  %v1688 = vmul.f32 %v1588, %v1612
  %v1689 = vmul.f32 %v1588, %v1616
  %v1690 = vmul.f32 %v1588, %v1620
  %v1691 = vmul.f32 %v1588, %v1624
  %v1692 = vmul.f32 %v1588, %v1628
  %v1693 = vmul.f32 %v1592, %v1600
  %v1694 = vmul.f32 %v1592, %v1604
  %v1695 = vmul.f32 %v1592, %v1608
  %v1696 = vmul.f32 %v1592, %v1612
  %v1697 = vmul.f32 %v1592, %v1616
  %v1698 = vmul.f32 %v1592, %v1620
  %v1699 = vmul.f32 %v1592, %v1624
  %v1700 = vmul.f32 %v1592, %v1628
  %1765 = vset.pattern.permute.xlu0 0
  %1766 = vperm.xlu0 %1765, %v1637
  %v1767 = vpop.permute.xlu0 %1766
  %1768 = vset.pattern.permute.xlu0 0
  %1769 = vperm.xlu0 %1768, %v1638
  %v1770 = vpop.permute.xlu0 %1769
  %1771 = vset.pattern.permute.xlu0 0
  %1772 = vperm.xlu0 %1771, %v1639
  %v1773 = vpop.permute.xlu0 %1772
  %1774 = vset.pattern.permute.xlu0 0
  %1775 = vperm.xlu0 %1774, %v1640
  %v1776 = vpop.permute.xlu0 %1775
  %1777 = vset.pattern.permute.xlu0 0
  %1778 = vperm.xlu0 %1777, %v1641
  %v1779 = vpop.permute.xlu0 %1778
  %1780 = vset.pattern.permute.xlu0 0
  %1781 = vperm.xlu0 %1780, %v1642
  %v1782 = vpop.permute.xlu0 %1781
  %1783 = vset.pattern.permute.xlu0 0
  %1784 = vperm.xlu0 %1783, %v1643
  %v1785 = vpop.permute.xlu0 %1784
  %1786 = vset.pattern.permute.xlu0 0
  %1787 = vperm.xlu0 %1786, %v1644
  %v1788 = vpop.permute.xlu0 %1787
  %1789 = vset.pattern.permute.xlu0 0
  %1790 = vperm.xlu0 %1789, %v1645
  %v1791 = vpop.permute.xlu0 %1790
  %1792 = vset.pattern.permute.xlu0 0
  %1793 = vperm.xlu0 %1792, %v1646
  %v1794 = vpop.permute.xlu0 %1793
  %1795 = vset.pattern.permute.xlu0 0
  %1796 = vperm.xlu0 %1795, %v1647
  %v1797 = vpop.permute.xlu0 %1796
  %1798 = vset.pattern.permute.xlu0 0
  %1799 = vperm.xlu0 %1798, %v1648
  %v1800 = vpop.permute.xlu0 %1799
  %1801 = vset.pattern.permute.xlu0 0
  %1802 = vperm.xlu0 %1801, %v1649
  %v1803 = vpop.permute.xlu0 %1802
  %1804 = vset.pattern.permute.xlu0 0
  %1805 = vperm.xlu0 %1804, %v1650
  %v1806 = vpop.permute.xlu0 %1805
  %1807 = vset.pattern.permute.xlu0 0
  %1808 = vperm.xlu0 %1807, %v1651
  %v1809 = vpop.permute.xlu0 %1808
  %1810 = vset.pattern.permute.xlu0 0
  %1811 = vperm.xlu0 %1810, %v1652
  %v1812 = vpop.permute.xlu0 %1811
  %1813 = vset.pattern.permute.xlu0 0
  %1814 = vperm.xlu0 %1813, %v1653
  %v1815 = vpop.permute.xlu0 %1814
  %1816 = vset.pattern.permute.xlu0 0
  %1817 = vperm.xlu0 %1816, %v1654
  %v1818 = vpop.permute.xlu0 %1817
  %1819 = vset.pattern.permute.xlu0 0
  %1820 = vperm.xlu0 %1819, %v1655
  %v1821 = vpop.permute.xlu0 %1820
  %1822 = vset.pattern.permute.xlu0 0
  %1823 = vperm.xlu0 %1822, %v1656
  %v1824 = vpop.permute.xlu0 %1823
  %1825 = vset.pattern.permute.xlu0 0
  %1826 = vperm.xlu0 %1825, %v1657
  %v1827 = vpop.permute.xlu0 %1826
  %1828 = vset.pattern.permute.xlu0 0
  %1829 = vperm.xlu0 %1828, %v1658
  %v1830 = vpop.permute.xlu0 %1829
  %1831 = vset.pattern.permute.xlu0 0
  %1832 = vperm.xlu0 %1831, %v1659
  %v1833 = vpop.permute.xlu0 %1832
  %1834 = vset.pattern.permute.xlu0 0
  %1835 = vperm.xlu0 %1834, %v1660
  %v1836 = vpop.permute.xlu0 %1835
  %1837 = vset.pattern.permute.xlu0 0
  %1838 = vperm.xlu0 %1837, %v1661
  %v1839 = vpop.permute.xlu0 %1838
  %1840 = vset.pattern.permute.xlu0 0
  %1841 = vperm.xlu0 %1840, %v1662
  %v1842 = vpop.permute.xlu0 %1841
  %1843 = vset.pattern.permute.xlu0 0
  %1844 = vperm.xlu0 %1843, %v1663
  %v1845 = vpop.permute.xlu0 %1844
  %1846 = vset.pattern.permute.xlu0 0
  %1847 = vperm.xlu0 %1846, %v1664
  %v1848 = vpop.permute.xlu0 %1847
  %1849 = vset.pattern.permute.xlu0 0
  %1850 = vperm.xlu0 %1849, %v1665
  %v1851 = vpop.permute.xlu0 %1850
  %1852 = vset.pattern.permute.xlu0 0
  %1853 = vperm.xlu0 %1852, %v1666
  %v1854 = vpop.permute.xlu0 %1853
  %1855 = vset.pattern.permute.xlu0 0
  %1856 = vperm.xlu0 %1855, %v1667
  %v1857 = vpop.permute.xlu0 %1856
  %1858 = vset.pattern.permute.xlu0 0
  %1859 = vperm.xlu0 %1858, %v1668
  %v1860 = vpop.permute.xlu0 %1859
  %1861 = vset.pattern.permute.xlu0 0
  %1862 = vperm.xlu0 %1861, %v1669
  %v1863 = vpop.permute.xlu0 %1862
  %1864 = vset.pattern.permute.xlu0 0
  %1865 = vperm.xlu0 %1864, %v1670
  %v1866 = vpop.permute.xlu0 %1865
  %1867 = vset.pattern.permute.xlu0 0
  %1868 = vperm.xlu0 %1867, %v1671
  %v1869 = vpop.permute.xlu0 %1868
  %1870 = vset.pattern.permute.xlu0 0
  %1871 = vperm.xlu0 %1870, %v1672
  %v1872 = vpop.permute.xlu0 %1871
  %1873 = vset.pattern.permute.xlu0 0
  %1874 = vperm.xlu0 %1873, %v1673
  %v1875 = vpop.permute.xlu0 %1874
  %1876 = vset.pattern.permute.xlu0 0
  %1877 = vperm.xlu0 %1876, %v1674
  %v1878 = vpop.permute.xlu0 %1877
  %1879 = vset.pattern.permute.xlu0 0
  %1880 = vperm.xlu0 %1879, %v1675
  %v1881 = vpop.permute.xlu0 %1880
  %1882 = vset.pattern.permute.xlu0 0
  %1883 = vperm.xlu0 %1882, %v1676
  %v1884 = vpop.permute.xlu0 %1883
  %1885 = vset.pattern.permute.xlu0 0
  %1886 = vperm.xlu0 %1885, %v1677
  %v1887 = vpop.permute.xlu0 %1886
  %1888 = vset.pattern.permute.xlu0 0
  %1889 = vperm.xlu0 %1888, %v1678
  %v1890 = vpop.permute.xlu0 %1889
  %1891 = vset.pattern.permute.xlu0 0
  %1892 = vperm.xlu0 %1891, %v1679
  %v1893 = vpop.permute.xlu0 %1892
  %1894 = vset.pattern.permute.xlu0 0
  %1895 = vperm.xlu0 %1894, %v1680
  %v1896 = vpop.permute.xlu0 %1895
  %1897 = vset.pattern.permute.xlu0 0
  %1898 = vperm.xlu0 %1897, %v1681
  %v1899 = vpop.permute.xlu0 %1898
  %1900 = vset.pattern.permute.xlu0 0
  %1901 = vperm.xlu0 %1900, %v1682
  %v1902 = vpop.permute.xlu0 %1901
  %1903 = vset.pattern.permute.xlu0 0
  %1904 = vperm.xlu0 %1903, %v1683
  %v1905 = vpop.permute.xlu0 %1904
  %1906 = vset.pattern.permute.xlu0 0
  %1907 = vperm.xlu0 %1906, %v1684
  %v1908 = vpop.permute.xlu0 %1907
  %1909 = vset.pattern.permute.xlu0 0
  %1910 = vperm.xlu0 %1909, %v1685
  %v1911 = vpop.permute.xlu0 %1910
  %1912 = vset.pattern.permute.xlu0 0
  %1913 = vperm.xlu0 %1912, %v1686
  %v1914 = vpop.permute.xlu0 %1913
  %1915 = vset.pattern.permute.xlu0 0
  %1916 = vperm.xlu0 %1915, %v1687
  %v1917 = vpop.permute.xlu0 %1916
  %1918 = vset.pattern.permute.xlu0 0
  %1919 = vperm.xlu0 %1918, %v1688
  %v1920 = vpop.permute.xlu0 %1919
  %1921 = vset.pattern.permute.xlu0 0
  %1922 = vperm.xlu0 %1921, %v1689
  %v1923 = vpop.permute.xlu0 %1922
  %1924 = vset.pattern.permute.xlu0 0
  %1925 = vperm.xlu0 %1924, %v1690
  %v1926 = vpop.permute.xlu0 %1925
  %1927 = vset.pattern.permute.xlu0 0
  %1928 = vperm.xlu0 %1927, %v1691
  %v1929 = vpop.permute.xlu0 %1928
  %1930 = vset.pattern.permute.xlu0 0
  %1931 = vperm.xlu0 %1930, %v1692
  %v1932 = vpop.permute.xlu0 %1931
  %1933 = vset.pattern.permute.xlu0 0
  %1934 = vperm.xlu0 %1933, %v1693
  %v1935 = vpop.permute.xlu0 %1934
  %1936 = vset.pattern.permute.xlu0 0
  %1937 = vperm.xlu0 %1936, %v1694
  %v1938 = vpop.permute.xlu0 %1937
  %1939 = vset.pattern.permute.xlu0 0
  %1940 = vperm.xlu0 %1939, %v1695
  %v1941 = vpop.permute.xlu0 %1940
  %1942 = vset.pattern.permute.xlu0 0
  %1943 = vperm.xlu0 %1942, %v1696
  %v1944 = vpop.permute.xlu0 %1943
  %1945 = vset.pattern.permute.xlu0 0
  %1946 = vperm.xlu0 %1945, %v1697
  %v1947 = vpop.permute.xlu0 %1946
  %1948 = vset.pattern.permute.xlu0 0
  %1949 = vperm.xlu0 %1948, %v1698
  %v1950 = vpop.permute.xlu0 %1949
  %1951 = vset.pattern.permute.xlu0 0
  %1952 = vperm.xlu0 %1951, %v1699
  %v1953 = vpop.permute.xlu0 %1952
  %1954 = vset.pattern.permute.xlu0 0
  %1955 = vperm.xlu0 %1954, %v1700
  %v1956 = vpop.permute.xlu0 %1955
  %v1957 = vlaneseq
  %v1958 = vshrl.u32 %v1957, 7
  %v1959 = vsub.s32 %v501, %v1958
  %v1960 = vrot.slane %v1767, %v1959
  %v1961 = vlaneseq
  %v1962 = vshrl.u32 %v1961, 7
  %v1963 = vsub.s32 %v506, %v1962
  %v1964 = vrot.slane %v1770, %v1963
  %v1965 = vsel %vm511, %v1964, %v1960
  %v1966 = vlaneseq
  %v1967 = vshrl.u32 %v1966, 7
  %v1968 = vsub.s32 %v513, %v1967
  %v1969 = vrot.slane %v1773, %v1968
  %v1970 = vsel %vm518, %v1969, %v1965
  %v1971 = vlaneseq
  %v1972 = vshrl.u32 %v1971, 7
  %v1973 = vsub.s32 %v520, %v1972
  %v1974 = vrot.slane %v1776, %v1973
  %v1975 = vsel %vm525, %v1974, %v1970
  %v1976 = vlaneseq
  %v1977 = vshrl.u32 %v1976, 7
  %v1978 = vsub.s32 %v527, %v1977
  %v1979 = vrot.slane %v1779, %v1978
  %v1980 = vsel %vm532, %v1979, %v1975
  %v1981 = vlaneseq
  %v1982 = vshrl.u32 %v1981, 7
  %v1983 = vsub.s32 %v534, %v1982
  %v1984 = vrot.slane %v1782, %v1983
  %v1985 = vsel %vm539, %v1984, %v1980
  %v1986 = vlaneseq
  %v1987 = vshrl.u32 %v1986, 7
  %v1988 = vsub.s32 %v541, %v1987
  %v1989 = vrot.slane %v1785, %v1988
  %v1990 = vsel %vm546, %v1989, %v1985
  %v1991 = vlaneseq
  %v1992 = vshrl.u32 %v1991, 7
  %v1993 = vsub.s32 %v548, %v1992
  %v1994 = vrot.slane %v1788, %v1993
  %v1995 = vsel %vm553, %v1994, %v1990
  %v1996 = vlaneseq
  %v1997 = vshrl.u32 %v1996, 7
  %v1998 = vsub.s32 %v501, %v1997
  %v1999 = vrot.slane %v1791, %v1998
  %v2000 = vlaneseq
  %v2001 = vshrl.u32 %v2000, 7
  %v2002 = vsub.s32 %v506, %v2001
  %v2003 = vrot.slane %v1794, %v2002
  %v2004 = vsel %vm511, %v2003, %v1999
  %v2005 = vlaneseq
  %v2006 = vshrl.u32 %v2005, 7
  %v2007 = vsub.s32 %v513, %v2006
  %v2008 = vrot.slane %v1797, %v2007
  %v2009 = vsel %vm518, %v2008, %v2004
  %v2010 = vlaneseq
  %v2011 = vshrl.u32 %v2010, 7
  %v2012 = vsub.s32 %v520, %v2011
  %v2013 = vrot.slane %v1800, %v2012
  %v2014 = vsel %vm525, %v2013, %v2009
  %v2015 = vlaneseq
  %v2016 = vshrl.u32 %v2015, 7
  %v2017 = vsub.s32 %v527, %v2016
  %v2018 = vrot.slane %v1803, %v2017
  %v2019 = vsel %vm532, %v2018, %v2014
  %v2020 = vlaneseq
  %v2021 = vshrl.u32 %v2020, 7
  %v2022 = vsub.s32 %v534, %v2021
  %v2023 = vrot.slane %v1806, %v2022
  %v2024 = vsel %vm539, %v2023, %v2019
  %v2025 = vlaneseq
  %v2026 = vshrl.u32 %v2025, 7
  %v2027 = vsub.s32 %v541, %v2026
  %v2028 = vrot.slane %v1809, %v2027
  %v2029 = vsel %vm546, %v2028, %v2024
  %v2030 = vlaneseq
  %v2031 = vshrl.u32 %v2030, 7
  %v2032 = vsub.s32 %v548, %v2031
  %v2033 = vrot.slane %v1812, %v2032
  %v2034 = vsel %vm553, %v2033, %v2029
  %v2035 = vlaneseq
  %v2036 = vshrl.u32 %v2035, 7
  %v2037 = vsub.s32 %v501, %v2036
  %v2038 = vrot.slane %v1815, %v2037
  %v2039 = vlaneseq
  %v2040 = vshrl.u32 %v2039, 7
  %v2041 = vsub.s32 %v506, %v2040
  %v2042 = vrot.slane %v1818, %v2041
  %v2043 = vsel %vm511, %v2042, %v2038
  %v2044 = vlaneseq
  %v2045 = vshrl.u32 %v2044, 7
  %v2046 = vsub.s32 %v513, %v2045
  %v2047 = vrot.slane %v1821, %v2046
  %v2048 = vsel %vm518, %v2047, %v2043
  %v2049 = vlaneseq
  %v2050 = vshrl.u32 %v2049, 7
  %v2051 = vsub.s32 %v520, %v2050
  %v2052 = vrot.slane %v1824, %v2051
  %v2053 = vsel %vm525, %v2052, %v2048
  %v2054 = vlaneseq
  %v2055 = vshrl.u32 %v2054, 7
  %v2056 = vsub.s32 %v527, %v2055
  %v2057 = vrot.slane %v1827, %v2056
  %v2058 = vsel %vm532, %v2057, %v2053
  %v2059 = vlaneseq
  %v2060 = vshrl.u32 %v2059, 7
  %v2061 = vsub.s32 %v534, %v2060
  %v2062 = vrot.slane %v1830, %v2061
  %v2063 = vsel %vm539, %v2062, %v2058
  %v2064 = vlaneseq
  %v2065 = vshrl.u32 %v2064, 7
  %v2066 = vsub.s32 %v541, %v2065
  %v2067 = vrot.slane %v1833, %v2066
  %v2068 = vsel %vm546, %v2067, %v2063
  %v2069 = vlaneseq
  %v2070 = vshrl.u32 %v2069, 7
  %v2071 = vsub.s32 %v548, %v2070
  %v2072 = vrot.slane %v1836, %v2071
  %v2073 = vsel %vm553, %v2072, %v2068
  %v2074 = vlaneseq
  %v2075 = vshrl.u32 %v2074, 7
  %v2076 = vsub.s32 %v501, %v2075
  %v2077 = vrot.slane %v1839, %v2076
  %v2078 = vlaneseq
  %v2079 = vshrl.u32 %v2078, 7
  %v2080 = vsub.s32 %v506, %v2079
  %v2081 = vrot.slane %v1842, %v2080
  %v2082 = vsel %vm511, %v2081, %v2077
  %v2083 = vlaneseq
  %v2084 = vshrl.u32 %v2083, 7
  %v2085 = vsub.s32 %v513, %v2084
  %v2086 = vrot.slane %v1845, %v2085
  %v2087 = vsel %vm518, %v2086, %v2082
  %v2088 = vlaneseq
  %v2089 = vshrl.u32 %v2088, 7
  %v2090 = vsub.s32 %v520, %v2089
  %v2091 = vrot.slane %v1848, %v2090
  %v2092 = vsel %vm525, %v2091, %v2087
  %v2093 = vlaneseq
  %v2094 = vshrl.u32 %v2093, 7
  %v2095 = vsub.s32 %v527, %v2094
  %v2096 = vrot.slane %v1851, %v2095
  %v2097 = vsel %vm532, %v2096, %v2092
  %v2098 = vlaneseq
  %v2099 = vshrl.u32 %v2098, 7
  %v2100 = vsub.s32 %v534, %v2099
  %v2101 = vrot.slane %v1854, %v2100
  %v2102 = vsel %vm539, %v2101, %v2097
  %v2103 = vlaneseq
  %v2104 = vshrl.u32 %v2103, 7
  %v2105 = vsub.s32 %v541, %v2104
  %v2106 = vrot.slane %v1857, %v2105
  %v2107 = vsel %vm546, %v2106, %v2102
  %v2108 = vlaneseq
  %v2109 = vshrl.u32 %v2108, 7
  %v2110 = vsub.s32 %v548, %v2109
  %v2111 = vrot.slane %v1860, %v2110
  %v2112 = vsel %vm553, %v2111, %v2107
  %v2113 = vlaneseq
  %v2114 = vshrl.u32 %v2113, 7
  %v2115 = vsub.s32 %v501, %v2114
  %v2116 = vrot.slane %v1863, %v2115
  %v2117 = vlaneseq
  %v2118 = vshrl.u32 %v2117, 7
  %v2119 = vsub.s32 %v506, %v2118
  %v2120 = vrot.slane %v1866, %v2119
  %v2121 = vsel %vm511, %v2120, %v2116
  %v2122 = vlaneseq
  %v2123 = vshrl.u32 %v2122, 7
  %v2124 = vsub.s32 %v513, %v2123
  %v2125 = vrot.slane %v1869, %v2124
  %v2126 = vsel %vm518, %v2125, %v2121
  %v2127 = vlaneseq
  %v2128 = vshrl.u32 %v2127, 7
  %v2129 = vsub.s32 %v520, %v2128
  %v2130 = vrot.slane %v1872, %v2129
  %v2131 = vsel %vm525, %v2130, %v2126
  %v2132 = vlaneseq
  %v2133 = vshrl.u32 %v2132, 7
  %v2134 = vsub.s32 %v527, %v2133
  %v2135 = vrot.slane %v1875, %v2134
  %v2136 = vsel %vm532, %v2135, %v2131
  %v2137 = vlaneseq
  %v2138 = vshrl.u32 %v2137, 7
  %v2139 = vsub.s32 %v534, %v2138
  %v2140 = vrot.slane %v1878, %v2139
  %v2141 = vsel %vm539, %v2140, %v2136
  %v2142 = vlaneseq
  %v2143 = vshrl.u32 %v2142, 7
  %v2144 = vsub.s32 %v541, %v2143
  %v2145 = vrot.slane %v1881, %v2144
  %v2146 = vsel %vm546, %v2145, %v2141
  %v2147 = vlaneseq
  %v2148 = vshrl.u32 %v2147, 7
  %v2149 = vsub.s32 %v548, %v2148
  %v2150 = vrot.slane %v1884, %v2149
  %v2151 = vsel %vm553, %v2150, %v2146
  %v2152 = vlaneseq
  %v2153 = vshrl.u32 %v2152, 7
  %v2154 = vsub.s32 %v501, %v2153
  %v2155 = vrot.slane %v1887, %v2154
  %v2156 = vlaneseq
  %v2157 = vshrl.u32 %v2156, 7
  %v2158 = vsub.s32 %v506, %v2157
  %v2159 = vrot.slane %v1890, %v2158
  %v2160 = vsel %vm511, %v2159, %v2155
  %v2161 = vlaneseq
  %v2162 = vshrl.u32 %v2161, 7
  %v2163 = vsub.s32 %v513, %v2162
  %v2164 = vrot.slane %v1893, %v2163
  %v2165 = vsel %vm518, %v2164, %v2160
  %v2166 = vlaneseq
  %v2167 = vshrl.u32 %v2166, 7
  %v2168 = vsub.s32 %v520, %v2167
  %v2169 = vrot.slane %v1896, %v2168
  %v2170 = vsel %vm525, %v2169, %v2165
  %v2171 = vlaneseq
  %v2172 = vshrl.u32 %v2171, 7
  %v2173 = vsub.s32 %v527, %v2172
  %v2174 = vrot.slane %v1899, %v2173
  %v2175 = vsel %vm532, %v2174, %v2170
  %v2176 = vlaneseq
  %v2177 = vshrl.u32 %v2176, 7
  %v2178 = vsub.s32 %v534, %v2177
  %v2179 = vrot.slane %v1902, %v2178
  %v2180 = vsel %vm539, %v2179, %v2175
  %v2181 = vlaneseq
  %v2182 = vshrl.u32 %v2181, 7
  %v2183 = vsub.s32 %v541, %v2182
  %v2184 = vrot.slane %v1905, %v2183
  %v2185 = vsel %vm546, %v2184, %v2180
  %v2186 = vlaneseq
  %v2187 = vshrl.u32 %v2186, 7
  %v2188 = vsub.s32 %v548, %v2187
  %v2189 = vrot.slane %v1908, %v2188
  %v2190 = vsel %vm553, %v2189, %v2185
  %v2191 = vlaneseq
  %v2192 = vshrl.u32 %v2191, 7
  %v2193 = vsub.s32 %v501, %v2192
  %v2194 = vrot.slane %v1911, %v2193
  %v2195 = vlaneseq
  %v2196 = vshrl.u32 %v2195, 7
  %v2197 = vsub.s32 %v506, %v2196
  %v2198 = vrot.slane %v1914, %v2197
  %v2199 = vsel %vm511, %v2198, %v2194
  %v2200 = vlaneseq
  %v2201 = vshrl.u32 %v2200, 7
  %v2202 = vsub.s32 %v513, %v2201
  %v2203 = vrot.slane %v1917, %v2202
  %v2204 = vsel %vm518, %v2203, %v2199
  %v2205 = vlaneseq
  %v2206 = vshrl.u32 %v2205, 7
  %v2207 = vsub.s32 %v520, %v2206
  %v2208 = vrot.slane %v1920, %v2207
  %v2209 = vsel %vm525, %v2208, %v2204
  %v2210 = vlaneseq
  %v2211 = vshrl.u32 %v2210, 7
  %v2212 = vsub.s32 %v527, %v2211
  %v2213 = vrot.slane %v1923, %v2212
  %v2214 = vsel %vm532, %v2213, %v2209
  %v2215 = vlaneseq
  %v2216 = vshrl.u32 %v2215, 7
  %v2217 = vsub.s32 %v534, %v2216
  %v2218 = vrot.slane %v1926, %v2217
  %v2219 = vsel %vm539, %v2218, %v2214
  %v2220 = vlaneseq
  %v2221 = vshrl.u32 %v2220, 7
  %v2222 = vsub.s32 %v541, %v2221
  %v2223 = vrot.slane %v1929, %v2222
  %v2224 = vsel %vm546, %v2223, %v2219
  %v2225 = vlaneseq
  %v2226 = vshrl.u32 %v2225, 7
  %v2227 = vsub.s32 %v548, %v2226
  %v2228 = vrot.slane %v1932, %v2227
  %v2229 = vsel %vm553, %v2228, %v2224
  %v2230 = vlaneseq
  %v2231 = vshrl.u32 %v2230, 7
  %v2232 = vsub.s32 %v501, %v2231
  %v2233 = vrot.slane %v1935, %v2232
  %v2234 = vlaneseq
  %v2235 = vshrl.u32 %v2234, 7
  %v2236 = vsub.s32 %v506, %v2235
  %v2237 = vrot.slane %v1938, %v2236
  %v2238 = vsel %vm511, %v2237, %v2233
  %v2239 = vlaneseq
  %v2240 = vshrl.u32 %v2239, 7
  %v2241 = vsub.s32 %v513, %v2240
  %v2242 = vrot.slane %v1941, %v2241
  %v2243 = vsel %vm518, %v2242, %v2238
  %v2244 = vlaneseq
  %v2245 = vshrl.u32 %v2244, 7
  %v2246 = vsub.s32 %v520, %v2245
  %v2247 = vrot.slane %v1944, %v2246
  %v2248 = vsel %vm525, %v2247, %v2243
  %v2249 = vlaneseq
  %v2250 = vshrl.u32 %v2249, 7
  %v2251 = vsub.s32 %v527, %v2250
  %v2252 = vrot.slane %v1947, %v2251
  %v2253 = vsel %vm532, %v2252, %v2248
  %v2254 = vlaneseq
  %v2255 = vshrl.u32 %v2254, 7
  %v2256 = vsub.s32 %v534, %v2255
  %v2257 = vrot.slane %v1950, %v2256
  %v2258 = vsel %vm539, %v2257, %v2253
  %v2259 = vlaneseq
  %v2260 = vshrl.u32 %v2259, 7
  %v2261 = vsub.s32 %v541, %v2260
  %v2262 = vrot.slane %v1953, %v2261
  %v2263 = vsel %vm546, %v2262, %v2258
  %v2264 = vlaneseq
  %v2265 = vshrl.u32 %v2264, 7
  %v2266 = vsub.s32 %v548, %v2265
  %v2267 = vrot.slane %v1956, %v2266
  %v2268 = vsel %vm553, %v2267, %v2263
  %v2269 = vsel %vm828, %v2034, %v1995
  %v2270 = vsel %vm830, %v2073, %v2269
  %v2271 = vsel %vm832, %v2112, %v2270
  %v2272 = vsel %vm834, %v2151, %v2271
  %v2273 = vsel %vm836, %v2190, %v2272
  %v2274 = vsel %vm838, %v2229, %v2273
  %v2275 = vsel %vm840, %v2268, %v2274
  %v2277 = vadd.f32 %v1560, %v2275
  %vm2278 = vcmask 523264
  %2279 = vst.msk [vmem:[%s3] sm:$0xff] %vm2278, %v2277
  // Predicated region
  $region14: #{event_lens_forward.2} parent=0 // pred_check
    _
  $region15: #{event_lens_forward.2} parent=0 // pred_check_branch
    %2281 = sbr.rel (0) target = $region17
  $region16: #{event_lens_forward.2} parent=0 // pred_region
    _
  $region17: #{event_lens_forward.2} parent=0 // pred_fallthru
    _
  // Predicated region
  $region18: #{event_lens_forward.2} parent=0 // pred_check
    _
  $region19: #{event_lens_forward.2} parent=0 // pred_check_branch
    %2283 = sbr.rel (0) target = $region21
  $region20: #{event_lens_forward.2} parent=0 // pred_region
    _
  $region21: #{event_lens_forward.2} parent=0 // pred_fallthru
    _

// kernel: event_lens_forward.3
$region0: #{event_lens_forward.3}
  #allocation0 [shape = 'u32[]', space=smem, size = 0x4, offset = 0x4, fixed_abs, tag = 'smem constant byte address 0x4 - core index']
  #allocation1 [shape = 'u32[144,128]{1,0:T(1,128)}', space=vmem, size = 0x12000, scoped, tag = 'internal scratch']
  #allocation2 [shape = 'f32[10,64]{1,0:T(8,128)}', space=vmem, size = 0x2000, scoped, tag = 'scratch operand']
  %s0 = inlined_call_operand.vmem [shape: f32[2,4,64], index: 0, kind: input, shape index: {}]
  %s1 = inlined_call_operand.vmem [shape: f32[1,1,64], index: 1, kind: input, shape index: {}]
  %s2 = inlined_call_operand.vmem [shape: f32[1,5,64], index: 2, kind: input, shape index: {}]
  %s3 = inlined_call_operand.vmem [shape: bf16[64,192], index: 3, kind: input, shape index: {}]
  %s4 = inlined_call_operand.vmem [shape: f32[1,192], index: 4, kind: input, shape index: {}]
  %s5 = inlined_call_operand.vmem [shape: bf16[64,64], index: 5, kind: input, shape index: {}]
  %s6 = inlined_call_operand.vmem [shape: f32[1,64], index: 6, kind: input, shape index: {}]
  %s7 = inlined_call_operand.vmem [shape: bf16[64,128], index: 7, kind: input, shape index: {}]
  %s8 = inlined_call_operand.vmem [shape: f32[1,128], index: 8, kind: input, shape index: {}]
  %s9 = inlined_call_operand.vmem [shape: bf16[128,64], index: 9, kind: input, shape index: {}]
  %s10 = inlined_call_operand.vmem [shape: f32[1,64], index: 10, kind: input, shape index: {}]
  %s11 = inlined_call_operand.vmem [shape: f32[1,64], index: 11, kind: input, shape index: {}]
  %s12 = inlined_call_operand.vmem [shape: f32[1,64], index: 12, kind: input, shape index: {}]
  %s13 = inlined_call_operand.vmem [shape: f32[1,64], index: 13, kind: input, shape index: {}]
  %s14 = inlined_call_operand.vmem [shape: f32[1,64], index: 14, kind: input, shape index: {}]
  %s15 = inlined_call_operand.vmem [shape: f32[1,64], index: 15, kind: input, shape index: {}]
  %s16 = inlined_call_operand.vmem [shape: f32[1,64], index: 16, kind: input, shape index: {}]
  %s17 = inlined_call_operand.vmem [shape: bf16[64,128], index: 17, kind: input, shape index: {}]
  %s18 = inlined_call_operand.vmem [shape: f32[1,128], index: 18, kind: input, shape index: {}]
  %s19 = inlined_call_operand.hbm [shape: f32[2,128], index: 19, kind: output, shape index: {0}]
  %s20 = inlined_call_operand.vmem [shape: f32[2,2,4,5,5], index: 20, kind: output, shape index: {1}]
  %21 = xla_tuple %s19, %s20
  %s22 = sld [smem:[#allocation0]]
  $region94: #{event_lens_forward.3} parent=0
    _
  %s24 = ssub.s32 1, %s22
  %s25 = scalar_select 0, %s24, %s22
  $region1: #{event_lens_forward.3} parent=0
    #allocation3 [shape = 'u8[1024]{0}', space=vmem, size = 0x400, scoped, tag = 'output window, operand 0, single buffered']
    #allocation4 [shape = 's32[1]{0}', space=sflag, size = 0x4, scoped, tag = 'scoped memory for event_lens_forward.3']
    %26 = vsyncpa [#allocation4], 0
    // Predicated region
    $region2: #{event_lens_forward.3} parent=1 // pred_check
      _
    $region3: #{event_lens_forward.3} parent=1 // pred_check_branch
      %28 = sbr.rel (0) target = $region5
    $region4: #{event_lens_forward.3} parent=1 // pred_region
      _
    $region5: #{event_lens_forward.3} parent=1 // pred_fallthru
      _
    // Predicated region
    $region6: #{event_lens_forward.3} parent=1 // pred_check
      _
    $region7: #{event_lens_forward.3} parent=1 // pred_check_branch
      %30 = sbr.rel (0) target = $region9
    $region8: #{event_lens_forward.3} parent=1 // pred_region
      _
    $region9: #{event_lens_forward.3} parent=1 // pred_fallthru
      _
    // Predicated region
    $region10: #{event_lens_forward.3} parent=1 // pred_check
      _
    $region11: #{event_lens_forward.3} parent=1 // pred_check_branch
      %32 = sbr.rel (0) target = $region13
    $region12: #{event_lens_forward.3} parent=1 // pred_region
      _
    $region13: #{event_lens_forward.3} parent=1 // pred_fallthru
      _
    // Predicated region
    $region14: #{event_lens_forward.3} parent=1 // pred_check
      _
    $region15: #{event_lens_forward.3} parent=1 // pred_check_branch
      %34 = sbr.rel (0) target = $region17
    $region16: #{event_lens_forward.3} parent=1 // pred_region
      _
    $region17: #{event_lens_forward.3} parent=1 // pred_fallthru
      _
    // Predicated region
    $region18: #{event_lens_forward.3} parent=1 // pred_check
      _
    $region19: #{event_lens_forward.3} parent=1 // pred_check_branch
      %36 = sbr.rel (0) target = $region21
    $region20: #{event_lens_forward.3} parent=1 // pred_region
      _
    $region21: #{event_lens_forward.3} parent=1 // pred_fallthru
      _
    // Predicated region
    $region22: #{event_lens_forward.3} parent=1 // pred_check
      _
    $region23: #{event_lens_forward.3} parent=1 // pred_check_branch
      %38 = sbr.rel (0) target = $region25
    $region24: #{event_lens_forward.3} parent=1 // pred_region
      _
    $region25: #{event_lens_forward.3} parent=1 // pred_fallthru
      _
    // Predicated region
    $region26: #{event_lens_forward.3} parent=1 // pred_check
      _
    $region27: #{event_lens_forward.3} parent=1 // pred_check_branch
      %40 = sbr.rel (0) target = $region29
    $region28: #{event_lens_forward.3} parent=1 // pred_region
      _
    $region29: #{event_lens_forward.3} parent=1 // pred_fallthru
      _
    // Predicated region
    $region30: #{event_lens_forward.3} parent=1 // pred_check
      _
    $region31: #{event_lens_forward.3} parent=1 // pred_check_branch
      %42 = sbr.rel (0) target = $region33
    $region32: #{event_lens_forward.3} parent=1 // pred_region
      _
    $region33: #{event_lens_forward.3} parent=1 // pred_fallthru
      _
    // Predicated region
    $region34: #{event_lens_forward.3} parent=1 // pred_check
      _
    $region35: #{event_lens_forward.3} parent=1 // pred_check_branch
      %44 = sbr.rel (0) target = $region37
    $region36: #{event_lens_forward.3} parent=1 // pred_region
      _
    $region37: #{event_lens_forward.3} parent=1 // pred_fallthru
      _
    // Predicated region
    $region38: #{event_lens_forward.3} parent=1 // pred_check
      _
    $region39: #{event_lens_forward.3} parent=1 // pred_check_branch
      %46 = sbr.rel (0) target = $region41
    $region40: #{event_lens_forward.3} parent=1 // pred_region
      _
    $region41: #{event_lens_forward.3} parent=1 // pred_fallthru
      _
    // Predicated region
    $region42: #{event_lens_forward.3} parent=1 // pred_check
      _
    $region43: #{event_lens_forward.3} parent=1 // pred_check_branch
      %48 = sbr.rel (0) target = $region45
    $region44: #{event_lens_forward.3} parent=1 // pred_region
      _
    $region45: #{event_lens_forward.3} parent=1 // pred_fallthru
      _
    // Predicated region
    $region46: #{event_lens_forward.3} parent=1 // pred_check
      _
    $region47: #{event_lens_forward.3} parent=1 // pred_check_branch
      %50 = sbr.rel (0) target = $region49
    $region48: #{event_lens_forward.3} parent=1 // pred_region
      _
    $region49: #{event_lens_forward.3} parent=1 // pred_fallthru
      _
    // Predicated region
    $region50: #{event_lens_forward.3} parent=1 // pred_check
      _
    $region51: #{event_lens_forward.3} parent=1 // pred_check_branch
      %52 = sbr.rel (0) target = $region53
    $region52: #{event_lens_forward.3} parent=1 // pred_region
      _
    $region53: #{event_lens_forward.3} parent=1 // pred_fallthru
      _
    // Predicated region
    $region54: #{event_lens_forward.3} parent=1 // pred_check
      _
    $region55: #{event_lens_forward.3} parent=1 // pred_check_branch
      %54 = sbr.rel (0) target = $region57
    $region56: #{event_lens_forward.3} parent=1 // pred_region
      _
    $region57: #{event_lens_forward.3} parent=1 // pred_fallthru
      _
    // Predicated region
    $region58: #{event_lens_forward.3} parent=1 // pred_check
      _
    $region59: #{event_lens_forward.3} parent=1 // pred_check_branch
      %56 = sbr.rel (0) target = $region61
    $region60: #{event_lens_forward.3} parent=1 // pred_region
      _
    $region61: #{event_lens_forward.3} parent=1 // pred_fallthru
      _
    // Predicated region
    $region62: #{event_lens_forward.3} parent=1 // pred_check
      _
    $region63: #{event_lens_forward.3} parent=1 // pred_check_branch
      %58 = sbr.rel (0) target = $region65
    $region64: #{event_lens_forward.3} parent=1 // pred_region
      _
    $region65: #{event_lens_forward.3} parent=1 // pred_fallthru
      _
    // Predicated region
    $region66: #{event_lens_forward.3} parent=1 // pred_check
      _
    $region67: #{event_lens_forward.3} parent=1 // pred_check_branch
      %60 = sbr.rel (0) target = $region69
    $region68: #{event_lens_forward.3} parent=1 // pred_region
      _
    $region69: #{event_lens_forward.3} parent=1 // pred_fallthru
      _
    // Predicated region
    $region70: #{event_lens_forward.3} parent=1 // pred_check
      _
    $region71: #{event_lens_forward.3} parent=1 // pred_check_branch
      %62 = sbr.rel (0) target = $region73
    $region72: #{event_lens_forward.3} parent=1 // pred_region
      _
    $region73: #{event_lens_forward.3} parent=1 // pred_fallthru
      _
    // Predicated region
    $region74: #{event_lens_forward.3} parent=1 // pred_check
      _
    $region75: #{event_lens_forward.3} parent=1 // pred_check_branch
      %64 = sbr.rel (0) target = $region77
    $region76: #{event_lens_forward.3} parent=1 // pred_region
      _
    $region77: #{event_lens_forward.3} parent=1 // pred_fallthru
      _
    %v66 = vld [vmem:[%s2] sm:$0x1f]
    %v67 = vld [vmem:[%s1] sm:$0x1]
    %v68 = vadd.f32 %v67, %v66
    %vm69 = vcmask 516096
    %70 = vst.msk [vmem:[#allocation2] sm:$0x1] %vm69, %v68
    %v71 = vld [vmem:[%s0] sm:$0xf]
    %v73 = vrot.slane %v66, 1
    %v75 = vadd.f32 %v71, %v73
    %vm76 = vcmask 519168
    %77 = vst.msk [vmem:[#allocation2 + $0x1] sm:$0xf] %vm76, %v75
    %78 = vst.msk [vmem:[#allocation2 + $0x5] sm:$0x1] %vm69, %v68
    %s79 = scalar_lea.vmem %s0, 4
    %v80 = vld [vmem:[%s79] sm:$0xf]
    %v81 = vadd.f32 %v80, %v73
    %82 = vst.msk [vmem:[#allocation2 + $0x6] sm:$0xf] %vm76, %v81
    %v83 = vld [vmem:[#allocation2] sm:$0xff]
    %v84 = vld [vmem:[#allocation2 + $0x8] sm:$0x3]
    %v85 = vld [vmem:[%s3] sm:$0xff]
    %v86 = vld [vmem:[%s3 + $0x8] sm:$0xff]
    %v87 = vld [vmem:[%s3 + $0x10] sm:$0xff]
    %v88 = vld [vmem:[%s3 + $0x18] sm:$0xff]
    %v89 = vld [vmem:[%s3 + $0x20] sm:$0xff]
    %v90 = vld [vmem:[%s3 + $0x28] sm:$0xff]
    %v91 = vld [vmem:[%s3 + $0x30] sm:$0xff]
    %v92 = vld [vmem:[%s3 + $0x38] sm:$0xff]
    %v93 = vld [vmem:[%s4] sm:$0x3]
    %v94 = vld [vmem:[%s5] sm:$0xf]
    %v95 = vld [vmem:[%s5 + $0x4] sm:$0xf]
    %v96 = vld [vmem:[%s5 + $0x8] sm:$0xf]
    %v97 = vld [vmem:[%s5 + $0xc] sm:$0xf]
    %v98 = vld [vmem:[%s5 + $0x10] sm:$0xf]
    %v99 = vld [vmem:[%s5 + $0x14] sm:$0xf]
    %v100 = vld [vmem:[%s5 + $0x18] sm:$0xf]
    %v101 = vld [vmem:[%s5 + $0x1c] sm:$0xf]
    %v102 = vld [vmem:[%s6] sm:$0x1]
    %v103 = vld [vmem:[%s7] sm:$0xf]
    %v104 = vld [vmem:[%s7 + $0x4] sm:$0xf]
    %v105 = vld [vmem:[%s7 + $0x8] sm:$0xf]
    %v106 = vld [vmem:[%s7 + $0xc] sm:$0xf]
    %v107 = vld [vmem:[%s7 + $0x10] sm:$0xf]
    %v108 = vld [vmem:[%s7 + $0x14] sm:$0xf]
    %v109 = vld [vmem:[%s7 + $0x18] sm:$0xf]
    %v110 = vld [vmem:[%s7 + $0x1c] sm:$0xf]
    %v111 = vld [vmem:[%s8] sm:$0x1]
    %v112 = vld [vmem:[%s9] sm:$0xf]
    %v113 = vld [vmem:[%s9 + $0x4] sm:$0xf]
    %v114 = vld [vmem:[%s9 + $0x8] sm:$0xf]
    %v115 = vld [vmem:[%s9 + $0xc] sm:$0xf]
    %v116 = vld [vmem:[%s9 + $0x10] sm:$0xf]
    %v117 = vld [vmem:[%s9 + $0x14] sm:$0xf]
    %v118 = vld [vmem:[%s9 + $0x18] sm:$0xf]
    %v119 = vld [vmem:[%s9 + $0x1c] sm:$0xf]
    %v120 = vld [vmem:[%s9 + $0x20] sm:$0xf]
    %v121 = vld [vmem:[%s9 + $0x24] sm:$0xf]
    %v122 = vld [vmem:[%s9 + $0x28] sm:$0xf]
    %v123 = vld [vmem:[%s9 + $0x2c] sm:$0xf]
    %v124 = vld [vmem:[%s9 + $0x30] sm:$0xf]
    %v125 = vld [vmem:[%s9 + $0x34] sm:$0xf]
    %v126 = vld [vmem:[%s9 + $0x38] sm:$0xf]
    %v127 = vld [vmem:[%s9 + $0x3c] sm:$0xf]
    %v128 = vld [vmem:[%s10] sm:$0x1]
    %v129 = vld [vmem:[%s11] sm:$0x1]
    %v130 = vld [vmem:[%s12] sm:$0x1]
    %v131 = vld [vmem:[%s13] sm:$0x1]
    %v132 = vld [vmem:[%s14] sm:$0x1]
    %v133 = vpack.c.bf16 %v84, %v83
    %v135 = vlaneseq
    %v136 = vshrl.u32 %v135, 7
    %v137 = vsub.s32 0, %v136
    %v138 = vrot.slane %v93, %v137
    %v139 = vlaneseq
    %v140 = vshrl.u32 %v139, 7
    %v141 = vsub.s32 1, %v140
    %v142 = vrot.slane %v93, %v141
    %v153 = vunpack.c.l.b16 %v85
    %v154 = vunpack.c.h.b16 %v85
    %v155 = vunpack.c.l.b16 %v86
    %v156 = vunpack.c.h.b16 %v86
    %v157 = vunpack.c.l.b16 %v87
    %v158 = vunpack.c.h.b16 %v87
    %v159 = vunpack.c.l.b16 %v88
    %v160 = vunpack.c.h.b16 %v88
    %v161 = vunpack.c.l.b16 %v89
    %v162 = vunpack.c.h.b16 %v89
    %v163 = vunpack.c.l.b16 %v90
    %v164 = vunpack.c.h.b16 %v90
    %v165 = vunpack.c.l.b16 %v91
    %v166 = vunpack.c.h.b16 %v91
    %v167 = vunpack.c.l.b16 %v92
    %v168 = vunpack.c.h.b16 %v92
    %v169 = vpack.c.b16 %v155, %v153
    %v170 = vpack.c.b16 %v156, %v154
    %v171 = vpack.c.b16 %v159, %v157
    %v172 = vpack.c.b16 %v160, %v158
    %v173 = vpack.c.b16 %v163, %v161
    %v174 = vpack.c.b16 %v164, %v162
    %v175 = vpack.c.b16 %v167, %v165
    %v176 = vpack.c.b16 %v168, %v166
    %vm185 = vcmask 523264
    %v187 = vsel %vm185, %v133, 0
    %189 = vmatprep.subr.bf16.mxu0 %v170
    %190 = vmatpush1.bf16.msra.mxu0 %v169
    %191 = vmatprep.subr.bf16.mxu0 %v172
    %192 = vmatpush1.bf16.msra.mxu0 %v171
    %193 = vmatprep.subr.bf16.mxu0 %v174
    %194 = vmatpush1.bf16.msra.mxu0 %v173
    %195 = vmatprep.subr.bf16.mxu0 %v176
    %196 = vmatpush1.bf16.msra.mxu0 %v175
    %197 = vmatprep.subr.bf16.mxu0 0
    %198 = vmatpush1.bf16.msra.mxu0 0
    %199 = vmatprep.subr.bf16.mxu0 0
    %200 = vmatpush1.bf16.msra.mxu0 0
    %201 = vmatprep.subr.bf16.mxu0 0
    %202 = vmatpush1.bf16.msra.mxu0 0
    %203 = vmatprep.subr.bf16.mxu0 0
    %204 = vmatpush1.bf16.msra.mxu0 0
    %205 = vmatprep.subr.bf16.mxu0 0
    %206 = vmatpush1.bf16.msra.mxu0 0
    %207 = vmatprep.subr.bf16.mxu0 0
    %208 = vmatpush1.bf16.msra.mxu0 0
    %209 = vmatprep.subr.bf16.mxu0 0
    %210 = vmatpush1.bf16.msra.mxu0 0
    %211 = vmatprep.subr.bf16.mxu0 0
    %212 = vmatpush1.bf16.msra.mxu0 0
    %213 = vmatprep.subr.bf16.mxu0 0
    %214 = vmatpush1.bf16.msra.mxu0 0
    %215 = vmatprep.subr.bf16.mxu0 0
    %216 = vmatpush1.bf16.msra.mxu0 0
    %217 = vmatprep.subr.bf16.mxu0 0
    %218 = vmatpush1.bf16.msra.mxu0 0
    %219 = vmatprep.subr.bf16.mxu0 0
    %220 = vmatpush1.bf16.msra.mxu0 0
    %221 = vmatprep.mubr.bf16.mxu0 0
    %222 = vmatmul.mubr.bf16.gmra.mrb[0].mxu0 %v187
    %v223 = vpop.f32.mrb[0].mxu0
    %v224 = vadd.f32 %v138, %v223
    %v225 = vpop.f32.mrb[0].mxu0
    %v226 = vadd.f32 %v142, %v225
    %v227 = vpop.f32.mrb[0].mxu0
    %v228 = vadd.f32 %v138, %v227
    %v229 = vpop.f32.mrb[0].mxu0
    %v230 = vadd.f32 %v142, %v229
    %231 = vdwg.mxu0
    %v232 = vpack.c.bf16 %v228, %v224
    %v233 = vpack.c.bf16 %v230, %v226
    %235 = vrot.lane.b32.xlu0 %v232, 64
    %v236 = vpop.permute.xlu0 %235
    %vm237 = vcmask 130048
    %v239 = vsel %vm237, %v232, 0
    %v242 = vsel %vm237, %v236, 0
    %244 = vmatprep.subr.bf16.mxu0 0
    %245 = vmatpush1.bf16.xpose.msra.mxu0 %v242
    %246 = vmatprep.subr.bf16.mxu0 0
    %247 = vmatpush1.bf16.xpose.msra.mxu0 0
    %248 = vmatprep.subr.bf16.mxu0 0
    %249 = vmatpush1.bf16.xpose.msra.mxu0 0
    %250 = vmatprep.subr.bf16.mxu0 0
    %251 = vmatpush1.bf16.xpose.msra.mxu0 0
    %252 = vmatprep.subr.bf16.mxu0 0
    %253 = vmatpush1.bf16.xpose.msra.mxu0 0
    %254 = vmatprep.subr.bf16.mxu0 0
    %255 = vmatpush1.bf16.xpose.msra.mxu0 0
    %256 = vmatprep.subr.bf16.mxu0 0
    %257 = vmatpush1.bf16.xpose.msra.mxu0 0
    %258 = vmatprep.subr.bf16.mxu0 0
    %259 = vmatpush1.bf16.xpose.msra.mxu0 0
    %260 = vmatprep.subr.bf16.mxu0 0
    %261 = vmatpush1.bf16.xpose.msra.mxu0 0
    %262 = vmatprep.subr.bf16.mxu0 0
    %263 = vmatpush1.bf16.xpose.msra.mxu0 0
    %264 = vmatprep.subr.bf16.mxu0 0
    %265 = vmatpush1.bf16.xpose.msra.mxu0 0
    %266 = vmatprep.subr.bf16.mxu0 0
    %267 = vmatpush1.bf16.xpose.msra.mxu0 0
    %268 = vmatprep.subr.bf16.mxu0 0
    %269 = vmatpush1.bf16.xpose.msra.mxu0 0
    %270 = vmatprep.subr.bf16.mxu0 0
    %271 = vmatpush1.bf16.xpose.msra.mxu0 0
    %272 = vmatprep.subr.bf16.mxu0 0
    %273 = vmatpush1.bf16.xpose.msra.mxu0 0
    %274 = vmatprep.subr.bf16.mxu0 0
    %275 = vmatpush1.bf16.xpose.msra.mxu0 0
    %276 = vmatprep.mubr.bf16.mxu0 0
    %277 = vmatmul.mubr.bf16.gmra.mrb[0].mxu0 %v239
    %v278 = vpop.f32.mrb[0].mxu0
    %v279 = vadd.f32 0.0, %v278
    %v280 = vpop.f32.mrb[0].mxu0
    %v281 = vpop.f32.mrb[0].mxu0
    %v282 = vpop.f32.mrb[0].mxu0
    %283 = vdwg.mxu0
    %vm284 = vcmask 36864
    %v285 = vsel %vm284, %v279, -inf
    %286 = vmax.xlane.f32.xlu0 %v285
    %v287 = vpop.xlane.xlu0 %286
    %v288 = vsub.f32 %v279, %v287
    %v289 = vmul.f32 %v288, 1.442695
    %v290 = vpow.pop %v289
    %v291 = vsel %vm284, %v290, 0.0
    %292 = vadd.xlane.f32.xlu0 %v291
    %v293 = vpop.xlane.xlu0 %292
    %v294 = vrcp.pop %v293
    %v295 = vmul.f32 %v290, %v294
    %296 = vst.msk [vmem:[%s20] sm:$0x1f] %vm284, %v295
    %v297 = vpack.c.bf16 %v295, %v295
    %vm298 = vcmask 39936
    %v300 = vsel %vm298, %v297, 0
    %vm302 = vcmask 1041408
    %vm303 = vcmask 1042432
    %v304 = vsel %vm302, 4294967295, 65535
    %v305 = vsel %vm303, %v304, 0
    %v307 = vand.u32 %v233, %v305
    %309 = vmatprep.subr.bf16.mxu0 0
    %310 = vmatpush1.bf16.msra.mxu0 %v307
    %311 = vmatprep.subr.bf16.mxu0 0
    %312 = vmatpush1.bf16.msra.mxu0 0
    %313 = vmatprep.subr.bf16.mxu0 0
    %314 = vmatpush1.bf16.msra.mxu0 0
    %315 = vmatprep.subr.bf16.mxu0 0
    %316 = vmatpush1.bf16.msra.mxu0 0
    %317 = vmatprep.subr.bf16.mxu0 0
    %318 = vmatpush1.bf16.msra.mxu0 0
    %319 = vmatprep.subr.bf16.mxu0 0
    %320 = vmatpush1.bf16.msra.mxu0 0
    %321 = vmatprep.subr.bf16.mxu0 0
    %322 = vmatpush1.bf16.msra.mxu0 0
    %323 = vmatprep.subr.bf16.mxu0 0
    %324 = vmatpush1.bf16.msra.mxu0 0
    %325 = vmatprep.subr.bf16.mxu0 0
    %326 = vmatpush1.bf16.msra.mxu0 0
    %327 = vmatprep.subr.bf16.mxu0 0
    %328 = vmatpush1.bf16.msra.mxu0 0
    %329 = vmatprep.subr.bf16.mxu0 0
    %330 = vmatpush1.bf16.msra.mxu0 0
    %331 = vmatprep.subr.bf16.mxu0 0
    %332 = vmatpush1.bf16.msra.mxu0 0
    %333 = vmatprep.subr.bf16.mxu0 0
    %334 = vmatpush1.bf16.msra.mxu0 0
    %335 = vmatprep.subr.bf16.mxu0 0
    %336 = vmatpush1.bf16.msra.mxu0 0
    %337 = vmatprep.subr.bf16.mxu0 0
    %338 = vmatpush1.bf16.msra.mxu0 0
    %339 = vmatprep.subr.bf16.mxu0 0
    %340 = vmatpush1.bf16.msra.mxu0 0
    %341 = vmatprep.mubr.bf16.mxu0 0
    %342 = vmatmul.mubr.bf16.gmra.mrb[0].mxu0 %v300
    %v343 = vpop.f32.mrb[0].mxu0
    %v344 = vadd.f32 0.0, %v343
    %v345 = vpop.f32.mrb[0].mxu0
    %v346 = vpop.f32.mrb[0].mxu0
    %v347 = vpop.f32.mrb[0].mxu0
    %348 = vdwg.mxu0
    %vm349 = vcmask 126976
    %350 = vst.msk [vmem:[#allocation2] sm:$0x1f] %vm349, %v344
    %351 = vrot.lane.b32.xlu0 %v232, 112
    %v352 = vpop.permute.xlu0 %351
    %353 = vrot.lane.b32.xlu0 %v232, 48
    %v354 = vpop.permute.xlu0 %353
    %v356 = vsel %vm237, %v352, 0
    %v359 = vsel %vm237, %v354, 0
    %361 = vmatprep.subr.bf16.mxu0 0
    %362 = vmatpush1.bf16.xpose.msra.mxu0 %v359
    %363 = vmatprep.subr.bf16.mxu0 0
    %364 = vmatpush1.bf16.xpose.msra.mxu0 0
    %365 = vmatprep.subr.bf16.mxu0 0
    %366 = vmatpush1.bf16.xpose.msra.mxu0 0
    %367 = vmatprep.subr.bf16.mxu0 0
    %368 = vmatpush1.bf16.xpose.msra.mxu0 0
    %369 = vmatprep.subr.bf16.mxu0 0
    %370 = vmatpush1.bf16.xpose.msra.mxu0 0
    %371 = vmatprep.subr.bf16.mxu0 0
    %372 = vmatpush1.bf16.xpose.msra.mxu0 0
    %373 = vmatprep.subr.bf16.mxu0 0
    %374 = vmatpush1.bf16.xpose.msra.mxu0 0
    %375 = vmatprep.subr.bf16.mxu0 0
    %376 = vmatpush1.bf16.xpose.msra.mxu0 0
    %377 = vmatprep.subr.bf16.mxu0 0
    %378 = vmatpush1.bf16.xpose.msra.mxu0 0
    %379 = vmatprep.subr.bf16.mxu0 0
    %380 = vmatpush1.bf16.xpose.msra.mxu0 0
    %381 = vmatprep.subr.bf16.mxu0 0
    %382 = vmatpush1.bf16.xpose.msra.mxu0 0
    %383 = vmatprep.subr.bf16.mxu0 0
    %384 = vmatpush1.bf16.xpose.msra.mxu0 0
    %385 = vmatprep.subr.bf16.mxu0 0
    %386 = vmatpush1.bf16.xpose.msra.mxu0 0
    %387 = vmatprep.subr.bf16.mxu0 0
    %388 = vmatpush1.bf16.xpose.msra.mxu0 0
    %389 = vmatprep.subr.bf16.mxu0 0
    %390 = vmatpush1.bf16.xpose.msra.mxu0 0
    %391 = vmatprep.subr.bf16.mxu0 0
    %392 = vmatpush1.bf16.xpose.msra.mxu0 0
    %393 = vmatprep.mubr.bf16.mxu0 0
    %394 = vmatmul.mubr.bf16.gmra.mrb[0].mxu0 %v356
    %v395 = vpop.f32.mrb[0].mxu0
    %v396 = vadd.f32 0.0, %v395
    %v397 = vpop.f32.mrb[0].mxu0
    %v398 = vpop.f32.mrb[0].mxu0
    %v399 = vpop.f32.mrb[0].mxu0
    %400 = vdwg.mxu0
    %v401 = vsel %vm284, %v396, -inf
    %402 = vmax.xlane.f32.xlu0 %v401
    %v403 = vpop.xlane.xlu0 %402
    %v404 = vsub.f32 %v396, %v403
    %v405 = vmul.f32 %v404, 1.442695
    %v406 = vpow.pop %v405
    %v407 = vsel %vm284, %v406, 0.0
    %408 = vadd.xlane.f32.xlu0 %v407
    %v409 = vpop.xlane.xlu0 %408
    %v410 = vrcp.pop %v409
    %v411 = vmul.f32 %v406, %v410
    %s412 = scalar_lea.vmem %s20, 8
    %413 = vst.msk [vmem:[%s412] sm:$0x1f] %vm284, %v411
    %v414 = vpack.c.bf16 %v411, %v411
    %416 = vrot.lane.b32.xlu0 %v233, 112
    %v417 = vpop.permute.xlu0 %416
    %v419 = vsel %vm298, %v414, 0
    %v422 = vand.u32 %v417, %v305
    %424 = vmatprep.subr.bf16.mxu0 0
    %425 = vmatpush1.bf16.msra.mxu0 %v422
    %426 = vmatprep.subr.bf16.mxu0 0
    %427 = vmatpush1.bf16.msra.mxu0 0
    %428 = vmatprep.subr.bf16.mxu0 0
    %429 = vmatpush1.bf16.msra.mxu0 0
    %430 = vmatprep.subr.bf16.mxu0 0
    %431 = vmatpush1.bf16.msra.mxu0 0
    %432 = vmatprep.subr.bf16.mxu0 0
    %433 = vmatpush1.bf16.msra.mxu0 0
    %434 = vmatprep.subr.bf16.mxu0 0
    %435 = vmatpush1.bf16.msra.mxu0 0
    %436 = vmatprep.subr.bf16.mxu0 0
    %437 = vmatpush1.bf16.msra.mxu0 0
    %438 = vmatprep.subr.bf16.mxu0 0
    %439 = vmatpush1.bf16.msra.mxu0 0
    %440 = vmatprep.subr.bf16.mxu0 0
    %441 = vmatpush1.bf16.msra.mxu0 0
    %442 = vmatprep.subr.bf16.mxu0 0
    %443 = vmatpush1.bf16.msra.mxu0 0
    %444 = vmatprep.subr.bf16.mxu0 0
    %445 = vmatpush1.bf16.msra.mxu0 0
    %446 = vmatprep.subr.bf16.mxu0 0
    %447 = vmatpush1.bf16.msra.mxu0 0
    %448 = vmatprep.subr.bf16.mxu0 0
    %449 = vmatpush1.bf16.msra.mxu0 0
    %450 = vmatprep.subr.bf16.mxu0 0
    %451 = vmatpush1.bf16.msra.mxu0 0
    %452 = vmatprep.subr.bf16.mxu0 0
    %453 = vmatpush1.bf16.msra.mxu0 0
    %454 = vmatprep.subr.bf16.mxu0 0
    %455 = vmatpush1.bf16.msra.mxu0 0
    %456 = vmatprep.mubr.bf16.mxu0 0
    %457 = vmatmul.mubr.bf16.gmra.mrb[0].mxu0 %v419
    %v458 = vpop.f32.mrb[0].mxu0
    %v459 = vadd.f32 0.0, %v458
    %v460 = vpop.f32.mrb[0].mxu0
    %v461 = vpop.f32.mrb[0].mxu0
    %v462 = vpop.f32.mrb[0].mxu0
    %463 = vdwg.mxu0
    %465 = vrot.lane.b32.xlu0 %v459, 16
    %v466 = vpop.permute.xlu0 %465
    %vm468 = vcmask 258176
    %469 = vst.msk [vmem:[#allocation2] sm:$0x1f] %vm468, %v466
    %470 = vrot.lane.b32.xlu0 %v232, 96
    %v471 = vpop.permute.xlu0 %470
    %472 = vrot.lane.b32.xlu0 %v232, 32
    %v473 = vpop.permute.xlu0 %472
    %v475 = vsel %vm237, %v471, 0
    %v478 = vsel %vm237, %v473, 0
    %480 = vmatprep.subr.bf16.mxu0 0
    %481 = vmatpush1.bf16.xpose.msra.mxu0 %v478
    %482 = vmatprep.subr.bf16.mxu0 0
    %483 = vmatpush1.bf16.xpose.msra.mxu0 0
    %484 = vmatprep.subr.bf16.mxu0 0
    %485 = vmatpush1.bf16.xpose.msra.mxu0 0
    %486 = vmatprep.subr.bf16.mxu0 0
    %487 = vmatpush1.bf16.xpose.msra.mxu0 0
    %488 = vmatprep.subr.bf16.mxu0 0
    %489 = vmatpush1.bf16.xpose.msra.mxu0 0
    %490 = vmatprep.subr.bf16.mxu0 0
    %491 = vmatpush1.bf16.xpose.msra.mxu0 0
    %492 = vmatprep.subr.bf16.mxu0 0
    %493 = vmatpush1.bf16.xpose.msra.mxu0 0
    %494 = vmatprep.subr.bf16.mxu0 0
    %495 = vmatpush1.bf16.xpose.msra.mxu0 0
    %496 = vmatprep.subr.bf16.mxu0 0
    %497 = vmatpush1.bf16.xpose.msra.mxu0 0
    %498 = vmatprep.subr.bf16.mxu0 0
    %499 = vmatpush1.bf16.xpose.msra.mxu0 0
    %500 = vmatprep.subr.bf16.mxu0 0
    %501 = vmatpush1.bf16.xpose.msra.mxu0 0
    %502 = vmatprep.subr.bf16.mxu0 0
    %503 = vmatpush1.bf16.xpose.msra.mxu0 0
    %504 = vmatprep.subr.bf16.mxu0 0
    %505 = vmatpush1.bf16.xpose.msra.mxu0 0
    %506 = vmatprep.subr.bf16.mxu0 0
    %507 = vmatpush1.bf16.xpose.msra.mxu0 0
    %508 = vmatprep.subr.bf16.mxu0 0
    %509 = vmatpush1.bf16.xpose.msra.mxu0 0
    %510 = vmatprep.subr.bf16.mxu0 0
    %511 = vmatpush1.bf16.xpose.msra.mxu0 0
    %512 = vmatprep.mubr.bf16.mxu0 0
    %513 = vmatmul.mubr.bf16.gmra.mrb[0].mxu0 %v475
    %v514 = vpop.f32.mrb[0].mxu0
    %v515 = vadd.f32 0.0, %v514
    %v516 = vpop.f32.mrb[0].mxu0
    %v517 = vpop.f32.mrb[0].mxu0
    %v518 = vpop.f32.mrb[0].mxu0
    %519 = vdwg.mxu0
    %v520 = vsel %vm284, %v515, -inf
    %521 = vmax.xlane.f32.xlu0 %v520
    %v522 = vpop.xlane.xlu0 %521
    %v523 = vsub.f32 %v515, %v522
    %v524 = vmul.f32 %v523, 1.442695
    %v525 = vpow.pop %v524
    %v526 = vsel %vm284, %v525, 0.0
    %527 = vadd.xlane.f32.xlu0 %v526
    %v528 = vpop.xlane.xlu0 %527
    %v529 = vrcp.pop %v528
    %v530 = vmul.f32 %v525, %v529
    %s531 = scalar_lea.vmem %s20, 16
    %532 = vst.msk [vmem:[%s531] sm:$0x1f] %vm284, %v530
    %v533 = vpack.c.bf16 %v530, %v530
    %534 = vrot.lane.b32.xlu0 %v233, 96
    %v535 = vpop.permute.xlu0 %534
    %v537 = vsel %vm298, %v533, 0
    %v540 = vand.u32 %v535, %v305
    %542 = vmatprep.subr.bf16.mxu0 0
    %543 = vmatpush1.bf16.msra.mxu0 %v540
    %544 = vmatprep.subr.bf16.mxu0 0
    %545 = vmatpush1.bf16.msra.mxu0 0
    %546 = vmatprep.subr.bf16.mxu0 0
    %547 = vmatpush1.bf16.msra.mxu0 0
    %548 = vmatprep.subr.bf16.mxu0 0
    %549 = vmatpush1.bf16.msra.mxu0 0
    %550 = vmatprep.subr.bf16.mxu0 0
    %551 = vmatpush1.bf16.msra.mxu0 0
    %552 = vmatprep.subr.bf16.mxu0 0
    %553 = vmatpush1.bf16.msra.mxu0 0
    %554 = vmatprep.subr.bf16.mxu0 0
    %555 = vmatpush1.bf16.msra.mxu0 0
    %556 = vmatprep.subr.bf16.mxu0 0
    %557 = vmatpush1.bf16.msra.mxu0 0
    %558 = vmatprep.subr.bf16.mxu0 0
    %559 = vmatpush1.bf16.msra.mxu0 0
    %560 = vmatprep.subr.bf16.mxu0 0
    %561 = vmatpush1.bf16.msra.mxu0 0
    %562 = vmatprep.subr.bf16.mxu0 0
    %563 = vmatpush1.bf16.msra.mxu0 0
    %564 = vmatprep.subr.bf16.mxu0 0
    %565 = vmatpush1.bf16.msra.mxu0 0
    %566 = vmatprep.subr.bf16.mxu0 0
    %567 = vmatpush1.bf16.msra.mxu0 0
    %568 = vmatprep.subr.bf16.mxu0 0
    %569 = vmatpush1.bf16.msra.mxu0 0
    %570 = vmatprep.subr.bf16.mxu0 0
    %571 = vmatpush1.bf16.msra.mxu0 0
    %572 = vmatprep.subr.bf16.mxu0 0
    %573 = vmatpush1.bf16.msra.mxu0 0
    %574 = vmatprep.mubr.bf16.mxu0 0
    %575 = vmatmul.mubr.bf16.gmra.mrb[0].mxu0 %v537
    %v576 = vpop.f32.mrb[0].mxu0
    %v577 = vadd.f32 0.0, %v576
    %v578 = vpop.f32.mrb[0].mxu0
    %v579 = vpop.f32.mrb[0].mxu0
    %v580 = vpop.f32.mrb[0].mxu0
    %581 = vdwg.mxu0
    %583 = vrot.lane.b32.xlu0 %v577, 32
    %v584 = vpop.permute.xlu0 %583
    %vm586 = vcmask 389376
    %587 = vst.msk [vmem:[#allocation2] sm:$0x1f] %vm586, %v584
    %588 = vrot.lane.b32.xlu0 %v232, 80
    %v589 = vpop.permute.xlu0 %588
    %590 = vrot.lane.b32.xlu0 %v232, 16
    %v591 = vpop.permute.xlu0 %590
    %v593 = vsel %vm237, %v589, 0
    %v596 = vsel %vm237, %v591, 0
    %598 = vmatprep.subr.bf16.mxu0 0
    %599 = vmatpush1.bf16.xpose.msra.mxu0 %v596
    %600 = vmatprep.subr.bf16.mxu0 0
    %601 = vmatpush1.bf16.xpose.msra.mxu0 0
    %602 = vmatprep.subr.bf16.mxu0 0
    %603 = vmatpush1.bf16.xpose.msra.mxu0 0
    %604 = vmatprep.subr.bf16.mxu0 0
    %605 = vmatpush1.bf16.xpose.msra.mxu0 0
    %606 = vmatprep.subr.bf16.mxu0 0
    %607 = vmatpush1.bf16.xpose.msra.mxu0 0
    %608 = vmatprep.subr.bf16.mxu0 0
    %609 = vmatpush1.bf16.xpose.msra.mxu0 0
    %610 = vmatprep.subr.bf16.mxu0 0
    %611 = vmatpush1.bf16.xpose.msra.mxu0 0
    %612 = vmatprep.subr.bf16.mxu0 0
    %613 = vmatpush1.bf16.xpose.msra.mxu0 0
    %614 = vmatprep.subr.bf16.mxu0 0
    %615 = vmatpush1.bf16.xpose.msra.mxu0 0
    %616 = vmatprep.subr.bf16.mxu0 0
    %617 = vmatpush1.bf16.xpose.msra.mxu0 0
    %618 = vmatprep.subr.bf16.mxu0 0
    %619 = vmatpush1.bf16.xpose.msra.mxu0 0
    %620 = vmatprep.subr.bf16.mxu0 0
    %621 = vmatpush1.bf16.xpose.msra.mxu0 0
    %622 = vmatprep.subr.bf16.mxu0 0
    %623 = vmatpush1.bf16.xpose.msra.mxu0 0
    %624 = vmatprep.subr.bf16.mxu0 0
    %625 = vmatpush1.bf16.xpose.msra.mxu0 0
    %626 = vmatprep.subr.bf16.mxu0 0
    %627 = vmatpush1.bf16.xpose.msra.mxu0 0
    %628 = vmatprep.subr.bf16.mxu0 0
    %629 = vmatpush1.bf16.xpose.msra.mxu0 0
    %630 = vmatprep.mubr.bf16.mxu0 0
    %631 = vmatmul.mubr.bf16.gmra.mrb[0].mxu0 %v593
    %v632 = vpop.f32.mrb[0].mxu0
    %v633 = vadd.f32 0.0, %v632
    %v634 = vpop.f32.mrb[0].mxu0
    %v635 = vpop.f32.mrb[0].mxu0
    %v636 = vpop.f32.mrb[0].mxu0
    %637 = vdwg.mxu0
    %v638 = vsel %vm284, %v633, -inf
    %639 = vmax.xlane.f32.xlu0 %v638
    %v640 = vpop.xlane.xlu0 %639
    %v641 = vsub.f32 %v633, %v640
    %v642 = vmul.f32 %v641, 1.442695
    %v643 = vpow.pop %v642
    %v644 = vsel %vm284, %v643, 0.0
    %645 = vadd.xlane.f32.xlu0 %v644
    %v646 = vpop.xlane.xlu0 %645
    %v647 = vrcp.pop %v646
    %v648 = vmul.f32 %v643, %v647
    %s649 = scalar_lea.vmem %s20, 24
    %650 = vst.msk [vmem:[%s649] sm:$0x1f] %vm284, %v648
    %v651 = vpack.c.bf16 %v648, %v648
    %652 = vrot.lane.b32.xlu0 %v233, 80
    %v653 = vpop.permute.xlu0 %652
    %v655 = vsel %vm298, %v651, 0
    %v658 = vand.u32 %v653, %v305
    %660 = vmatprep.subr.bf16.mxu0 0
    %661 = vmatpush1.bf16.msra.mxu0 %v658
    %662 = vmatprep.subr.bf16.mxu0 0
    %663 = vmatpush1.bf16.msra.mxu0 0
    %664 = vmatprep.subr.bf16.mxu0 0
    %665 = vmatpush1.bf16.msra.mxu0 0
    %666 = vmatprep.subr.bf16.mxu0 0
    %667 = vmatpush1.bf16.msra.mxu0 0
    %668 = vmatprep.subr.bf16.mxu0 0
    %669 = vmatpush1.bf16.msra.mxu0 0
    %670 = vmatprep.subr.bf16.mxu0 0
    %671 = vmatpush1.bf16.msra.mxu0 0
    %672 = vmatprep.subr.bf16.mxu0 0
    %673 = vmatpush1.bf16.msra.mxu0 0
    %674 = vmatprep.subr.bf16.mxu0 0
    %675 = vmatpush1.bf16.msra.mxu0 0
    %676 = vmatprep.subr.bf16.mxu0 0
    %677 = vmatpush1.bf16.msra.mxu0 0
    %678 = vmatprep.subr.bf16.mxu0 0
    %679 = vmatpush1.bf16.msra.mxu0 0
    %680 = vmatprep.subr.bf16.mxu0 0
    %681 = vmatpush1.bf16.msra.mxu0 0
    %682 = vmatprep.subr.bf16.mxu0 0
    %683 = vmatpush1.bf16.msra.mxu0 0
    %684 = vmatprep.subr.bf16.mxu0 0
    %685 = vmatpush1.bf16.msra.mxu0 0
    %686 = vmatprep.subr.bf16.mxu0 0
    %687 = vmatpush1.bf16.msra.mxu0 0
    %688 = vmatprep.subr.bf16.mxu0 0
    %689 = vmatpush1.bf16.msra.mxu0 0
    %690 = vmatprep.subr.bf16.mxu0 0
    %691 = vmatpush1.bf16.msra.mxu0 0
    %692 = vmatprep.mubr.bf16.mxu0 0
    %693 = vmatmul.mubr.bf16.gmra.mrb[0].mxu0 %v655
    %v694 = vpop.f32.mrb[0].mxu0
    %v695 = vadd.f32 0.0, %v694
    %v696 = vpop.f32.mrb[0].mxu0
    %v697 = vpop.f32.mrb[0].mxu0
    %v698 = vpop.f32.mrb[0].mxu0
    %699 = vdwg.mxu0
    %701 = vrot.lane.b32.xlu0 %v695, 48
    %v702 = vpop.permute.xlu0 %701
    %vm704 = vcmask 520576
    %705 = vst.msk [vmem:[#allocation2] sm:$0x1f] %vm704, %v702
    %v706 = vshrl.u32 %v232, 16
    %v708 = vrot.slane %v706, 2
    %v709 = vshll.u32 %v232, 16
    %v711 = vrot.slane %v709, 3
    %v712 = vor.u32 %v708, %v711
    %713 = vrot.lane.b32.xlu0 %v712, 64
    %v714 = vpop.permute.xlu0 %713
    %v716 = vsel %vm237, %v712, 0
    %v719 = vsel %vm237, %v714, 0
    %721 = vmatprep.subr.bf16.mxu0 0
    %722 = vmatpush1.bf16.xpose.msra.mxu0 %v719
    %723 = vmatprep.subr.bf16.mxu0 0
    %724 = vmatpush1.bf16.xpose.msra.mxu0 0
    %725 = vmatprep.subr.bf16.mxu0 0
    %726 = vmatpush1.bf16.xpose.msra.mxu0 0
    %727 = vmatprep.subr.bf16.mxu0 0
    %728 = vmatpush1.bf16.xpose.msra.mxu0 0
    %729 = vmatprep.subr.bf16.mxu0 0
    %730 = vmatpush1.bf16.xpose.msra.mxu0 0
    %731 = vmatprep.subr.bf16.mxu0 0
    %732 = vmatpush1.bf16.xpose.msra.mxu0 0
    %733 = vmatprep.subr.bf16.mxu0 0
    %734 = vmatpush1.bf16.xpose.msra.mxu0 0
    %735 = vmatprep.subr.bf16.mxu0 0
    %736 = vmatpush1.bf16.xpose.msra.mxu0 0
    %737 = vmatprep.subr.bf16.mxu0 0
    %738 = vmatpush1.bf16.xpose.msra.mxu0 0
    %739 = vmatprep.subr.bf16.mxu0 0
    %740 = vmatpush1.bf16.xpose.msra.mxu0 0
    %741 = vmatprep.subr.bf16.mxu0 0
    %742 = vmatpush1.bf16.xpose.msra.mxu0 0
    %743 = vmatprep.subr.bf16.mxu0 0
    %744 = vmatpush1.bf16.xpose.msra.mxu0 0
    %745 = vmatprep.subr.bf16.mxu0 0
    %746 = vmatpush1.bf16.xpose.msra.mxu0 0
    %747 = vmatprep.subr.bf16.mxu0 0
    %748 = vmatpush1.bf16.xpose.msra.mxu0 0
    %749 = vmatprep.subr.bf16.mxu0 0
    %750 = vmatpush1.bf16.xpose.msra.mxu0 0
    %751 = vmatprep.subr.bf16.mxu0 0
    %752 = vmatpush1.bf16.xpose.msra.mxu0 0
    %753 = vmatprep.mubr.bf16.mxu0 0
    %754 = vmatmul.mubr.bf16.gmra.mrb[0].mxu0 %v716
    %v755 = vpop.f32.mrb[0].mxu0
    %v756 = vadd.f32 0.0, %v755
    %v757 = vpop.f32.mrb[0].mxu0
    %v758 = vpop.f32.mrb[0].mxu0
    %v759 = vpop.f32.mrb[0].mxu0
    %760 = vdwg.mxu0
    %v761 = vsel %vm284, %v756, -inf
    %762 = vmax.xlane.f32.xlu0 %v761
    %v763 = vpop.xlane.xlu0 %762
    %v764 = vsub.f32 %v756, %v763
    %v765 = vmul.f32 %v764, 1.442695
    %v766 = vpow.pop %v765
    %v767 = vsel %vm284, %v766, 0.0
    %768 = vadd.xlane.f32.xlu0 %v767
    %v769 = vpop.xlane.xlu0 %768
    %v770 = vrcp.pop %v769
    %v771 = vmul.f32 %v766, %v770
    %s772 = scalar_lea.vmem %s20, 32
    %773 = vst.msk [vmem:[%s772] sm:$0x1f] %vm284, %v771
    %v774 = vpack.c.bf16 %v771, %v771
    %v775 = vshrl.u32 %v233, 16
    %v777 = vrot.slane %v775, 2
    %v778 = vshll.u32 %v233, 16
    %v780 = vrot.slane %v778, 3
    %v781 = vor.u32 %v777, %v780
    %v783 = vsel %vm298, %v774, 0
    %v786 = vand.u32 %v781, %v305
    %788 = vmatprep.subr.bf16.mxu0 0
    %789 = vmatpush1.bf16.msra.mxu0 %v786
    %790 = vmatprep.subr.bf16.mxu0 0
    %791 = vmatpush1.bf16.msra.mxu0 0
    %792 = vmatprep.subr.bf16.mxu0 0
    %793 = vmatpush1.bf16.msra.mxu0 0
    %794 = vmatprep.subr.bf16.mxu0 0
    %795 = vmatpush1.bf16.msra.mxu0 0
    %796 = vmatprep.subr.bf16.mxu0 0
    %797 = vmatpush1.bf16.msra.mxu0 0
    %798 = vmatprep.subr.bf16.mxu0 0
    %799 = vmatpush1.bf16.msra.mxu0 0
    %800 = vmatprep.subr.bf16.mxu0 0
    %801 = vmatpush1.bf16.msra.mxu0 0
    %802 = vmatprep.subr.bf16.mxu0 0
    %803 = vmatpush1.bf16.msra.mxu0 0
    %804 = vmatprep.subr.bf16.mxu0 0
    %805 = vmatpush1.bf16.msra.mxu0 0
    %806 = vmatprep.subr.bf16.mxu0 0
    %807 = vmatpush1.bf16.msra.mxu0 0
    %808 = vmatprep.subr.bf16.mxu0 0
    %809 = vmatpush1.bf16.msra.mxu0 0
    %810 = vmatprep.subr.bf16.mxu0 0
    %811 = vmatpush1.bf16.msra.mxu0 0
    %812 = vmatprep.subr.bf16.mxu0 0
    %813 = vmatpush1.bf16.msra.mxu0 0
    %814 = vmatprep.subr.bf16.mxu0 0
    %815 = vmatpush1.bf16.msra.mxu0 0
    %816 = vmatprep.subr.bf16.mxu0 0
    %817 = vmatpush1.bf16.msra.mxu0 0
    %818 = vmatprep.subr.bf16.mxu0 0
    %819 = vmatpush1.bf16.msra.mxu0 0
    %820 = vmatprep.mubr.bf16.mxu0 0
    %821 = vmatmul.mubr.bf16.gmra.mrb[0].mxu0 %v783
    %v822 = vpop.f32.mrb[0].mxu0
    %v823 = vadd.f32 0.0, %v822
    %v824 = vpop.f32.mrb[0].mxu0
    %v825 = vpop.f32.mrb[0].mxu0
    %v826 = vpop.f32.mrb[0].mxu0
    %827 = vdwg.mxu0
    %828 = vst.msk [vmem:[#allocation2 + $0x5] sm:$0x1f] %vm349, %v823
    %829 = vrot.lane.b32.xlu0 %v712, 112
    %v830 = vpop.permute.xlu0 %829
    %831 = vrot.lane.b32.xlu0 %v712, 48
    %v832 = vpop.permute.xlu0 %831
    %v834 = vsel %vm237, %v830, 0
    %v837 = vsel %vm237, %v832, 0
    %839 = vmatprep.subr.bf16.mxu0 0
    %840 = vmatpush1.bf16.xpose.msra.mxu0 %v837
    %841 = vmatprep.subr.bf16.mxu0 0
    %842 = vmatpush1.bf16.xpose.msra.mxu0 0
    %843 = vmatprep.subr.bf16.mxu0 0
    %844 = vmatpush1.bf16.xpose.msra.mxu0 0
    %845 = vmatprep.subr.bf16.mxu0 0
    %846 = vmatpush1.bf16.xpose.msra.mxu0 0
    %847 = vmatprep.subr.bf16.mxu0 0
    %848 = vmatpush1.bf16.xpose.msra.mxu0 0
    %849 = vmatprep.subr.bf16.mxu0 0
    %850 = vmatpush1.bf16.xpose.msra.mxu0 0
    %851 = vmatprep.subr.bf16.mxu0 0
    %852 = vmatpush1.bf16.xpose.msra.mxu0 0
    %853 = vmatprep.subr.bf16.mxu0 0
    %854 = vmatpush1.bf16.xpose.msra.mxu0 0
    %855 = vmatprep.subr.bf16.mxu0 0
    %856 = vmatpush1.bf16.xpose.msra.mxu0 0
    %857 = vmatprep.subr.bf16.mxu0 0
    %858 = vmatpush1.bf16.xpose.msra.mxu0 0
    %859 = vmatprep.subr.bf16.mxu0 0
    %860 = vmatpush1.bf16.xpose.msra.mxu0 0
    %861 = vmatprep.subr.bf16.mxu0 0
    %862 = vmatpush1.bf16.xpose.msra.mxu0 0
    %863 = vmatprep.subr.bf16.mxu0 0
    %864 = vmatpush1.bf16.xpose.msra.mxu0 0
    %865 = vmatprep.subr.bf16.mxu0 0
    %866 = vmatpush1.bf16.xpose.msra.mxu0 0
    %867 = vmatprep.subr.bf16.mxu0 0
    %868 = vmatpush1.bf16.xpose.msra.mxu0 0
    %869 = vmatprep.subr.bf16.mxu0 0
    %870 = vmatpush1.bf16.xpose.msra.mxu0 0
    %871 = vmatprep.mubr.bf16.mxu0 0
    %872 = vmatmul.mubr.bf16.gmra.mrb[0].mxu0 %v834
    %v873 = vpop.f32.mrb[0].mxu0
    %v874 = vadd.f32 0.0, %v873
    %v875 = vpop.f32.mrb[0].mxu0
    %v876 = vpop.f32.mrb[0].mxu0
    %v877 = vpop.f32.mrb[0].mxu0
    %878 = vdwg.mxu0
    %v879 = vsel %vm284, %v874, -inf
    %880 = vmax.xlane.f32.xlu0 %v879
    %v881 = vpop.xlane.xlu0 %880
    %v882 = vsub.f32 %v874, %v881
    %v883 = vmul.f32 %v882, 1.442695
    %v884 = vpow.pop %v883
    %v885 = vsel %vm284, %v884, 0.0
    %886 = vadd.xlane.f32.xlu0 %v885
    %v887 = vpop.xlane.xlu0 %886
    %v888 = vrcp.pop %v887
    %v889 = vmul.f32 %v884, %v888
    %s890 = scalar_lea.vmem %s20, 40
    %891 = vst.msk [vmem:[%s890] sm:$0x1f] %vm284, %v889
    %v892 = vpack.c.bf16 %v889, %v889
    %893 = vrot.lane.b32.xlu0 %v781, 112
    %v894 = vpop.permute.xlu0 %893
    %v896 = vsel %vm298, %v892, 0
    %v899 = vand.u32 %v894, %v305
    %901 = vmatprep.subr.bf16.mxu0 0
    %902 = vmatpush1.bf16.msra.mxu0 %v899
    %903 = vmatprep.subr.bf16.mxu0 0
    %904 = vmatpush1.bf16.msra.mxu0 0
    %905 = vmatprep.subr.bf16.mxu0 0
    %906 = vmatpush1.bf16.msra.mxu0 0
    %907 = vmatprep.subr.bf16.mxu0 0
    %908 = vmatpush1.bf16.msra.mxu0 0
    %909 = vmatprep.subr.bf16.mxu0 0
    %910 = vmatpush1.bf16.msra.mxu0 0
    %911 = vmatprep.subr.bf16.mxu0 0
    %912 = vmatpush1.bf16.msra.mxu0 0
    %913 = vmatprep.subr.bf16.mxu0 0
    %914 = vmatpush1.bf16.msra.mxu0 0
    %915 = vmatprep.subr.bf16.mxu0 0
    %916 = vmatpush1.bf16.msra.mxu0 0
    %917 = vmatprep.subr.bf16.mxu0 0
    %918 = vmatpush1.bf16.msra.mxu0 0
    %919 = vmatprep.subr.bf16.mxu0 0
    %920 = vmatpush1.bf16.msra.mxu0 0
    %921 = vmatprep.subr.bf16.mxu0 0
    %922 = vmatpush1.bf16.msra.mxu0 0
    %923 = vmatprep.subr.bf16.mxu0 0
    %924 = vmatpush1.bf16.msra.mxu0 0
    %925 = vmatprep.subr.bf16.mxu0 0
    %926 = vmatpush1.bf16.msra.mxu0 0
    %927 = vmatprep.subr.bf16.mxu0 0
    %928 = vmatpush1.bf16.msra.mxu0 0
    %929 = vmatprep.subr.bf16.mxu0 0
    %930 = vmatpush1.bf16.msra.mxu0 0
    %931 = vmatprep.subr.bf16.mxu0 0
    %932 = vmatpush1.bf16.msra.mxu0 0
    %933 = vmatprep.mubr.bf16.mxu0 0
    %934 = vmatmul.mubr.bf16.gmra.mrb[0].mxu0 %v896
    %v935 = vpop.f32.mrb[0].mxu0
    %v936 = vadd.f32 0.0, %v935
    %v937 = vpop.f32.mrb[0].mxu0
    %v938 = vpop.f32.mrb[0].mxu0
    %v939 = vpop.f32.mrb[0].mxu0
    %940 = vdwg.mxu0
    %942 = vrot.lane.b32.xlu0 %v936, 16
    %v943 = vpop.permute.xlu0 %942
    %945 = vst.msk [vmem:[#allocation2 + $0x5] sm:$0x1f] %vm468, %v943
    %946 = vrot.lane.b32.xlu0 %v712, 96
    %v947 = vpop.permute.xlu0 %946
    %948 = vrot.lane.b32.xlu0 %v712, 32
    %v949 = vpop.permute.xlu0 %948
    %v951 = vsel %vm237, %v947, 0
    %v954 = vsel %vm237, %v949, 0
    %956 = vmatprep.subr.bf16.mxu0 0
    %957 = vmatpush1.bf16.xpose.msra.mxu0 %v954
    %958 = vmatprep.subr.bf16.mxu0 0
    %959 = vmatpush1.bf16.xpose.msra.mxu0 0
    %960 = vmatprep.subr.bf16.mxu0 0
    %961 = vmatpush1.bf16.xpose.msra.mxu0 0
    %962 = vmatprep.subr.bf16.mxu0 0
    %963 = vmatpush1.bf16.xpose.msra.mxu0 0
    %964 = vmatprep.subr.bf16.mxu0 0
    %965 = vmatpush1.bf16.xpose.msra.mxu0 0
    %966 = vmatprep.subr.bf16.mxu0 0
    %967 = vmatpush1.bf16.xpose.msra.mxu0 0
    %968 = vmatprep.subr.bf16.mxu0 0
    %969 = vmatpush1.bf16.xpose.msra.mxu0 0
    %970 = vmatprep.subr.bf16.mxu0 0
    %971 = vmatpush1.bf16.xpose.msra.mxu0 0
    %972 = vmatprep.subr.bf16.mxu0 0
    %973 = vmatpush1.bf16.xpose.msra.mxu0 0
    %974 = vmatprep.subr.bf16.mxu0 0
    %975 = vmatpush1.bf16.xpose.msra.mxu0 0
    %976 = vmatprep.subr.bf16.mxu0 0
    %977 = vmatpush1.bf16.xpose.msra.mxu0 0
    %978 = vmatprep.subr.bf16.mxu0 0
    %979 = vmatpush1.bf16.xpose.msra.mxu0 0
    %980 = vmatprep.subr.bf16.mxu0 0
    %981 = vmatpush1.bf16.xpose.msra.mxu0 0
    %982 = vmatprep.subr.bf16.mxu0 0
    %983 = vmatpush1.bf16.xpose.msra.mxu0 0
    %984 = vmatprep.subr.bf16.mxu0 0
    %985 = vmatpush1.bf16.xpose.msra.mxu0 0
    %986 = vmatprep.subr.bf16.mxu0 0
    %987 = vmatpush1.bf16.xpose.msra.mxu0 0
    %988 = vmatprep.mubr.bf16.mxu0 0
    %989 = vmatmul.mubr.bf16.gmra.mrb[0].mxu0 %v951
    %v990 = vpop.f32.mrb[0].mxu0
    %v991 = vadd.f32 0.0, %v990
    %v992 = vpop.f32.mrb[0].mxu0
    %v993 = vpop.f32.mrb[0].mxu0
    %v994 = vpop.f32.mrb[0].mxu0
    %995 = vdwg.mxu0
    %v996 = vsel %vm284, %v991, -inf
    %997 = vmax.xlane.f32.xlu0 %v996
    %v998 = vpop.xlane.xlu0 %997
    %v999 = vsub.f32 %v991, %v998
    %v1000 = vmul.f32 %v999, 1.442695
    %v1001 = vpow.pop %v1000
    %v1002 = vsel %vm284, %v1001, 0.0
    %1003 = vadd.xlane.f32.xlu0 %v1002
    %v1004 = vpop.xlane.xlu0 %1003
    %v1005 = vrcp.pop %v1004
    %v1006 = vmul.f32 %v1001, %v1005
    %s1007 = scalar_lea.vmem %s20, 48
    %1008 = vst.msk [vmem:[%s1007] sm:$0x1f] %vm284, %v1006
    %v1009 = vpack.c.bf16 %v1006, %v1006
    %1010 = vrot.lane.b32.xlu0 %v781, 96
    %v1011 = vpop.permute.xlu0 %1010
    %v1013 = vsel %vm298, %v1009, 0
    %v1016 = vand.u32 %v1011, %v305
    %1018 = vmatprep.subr.bf16.mxu0 0
    %1019 = vmatpush1.bf16.msra.mxu0 %v1016
    %1020 = vmatprep.subr.bf16.mxu0 0
    %1021 = vmatpush1.bf16.msra.mxu0 0
    %1022 = vmatprep.subr.bf16.mxu0 0
    %1023 = vmatpush1.bf16.msra.mxu0 0
    %1024 = vmatprep.subr.bf16.mxu0 0
    %1025 = vmatpush1.bf16.msra.mxu0 0
    %1026 = vmatprep.subr.bf16.mxu0 0
    %1027 = vmatpush1.bf16.msra.mxu0 0
    %1028 = vmatprep.subr.bf16.mxu0 0
    %1029 = vmatpush1.bf16.msra.mxu0 0
    %1030 = vmatprep.subr.bf16.mxu0 0
    %1031 = vmatpush1.bf16.msra.mxu0 0
    %1032 = vmatprep.subr.bf16.mxu0 0
    %1033 = vmatpush1.bf16.msra.mxu0 0
    %1034 = vmatprep.subr.bf16.mxu0 0
    %1035 = vmatpush1.bf16.msra.mxu0 0
    %1036 = vmatprep.subr.bf16.mxu0 0
    %1037 = vmatpush1.bf16.msra.mxu0 0
    %1038 = vmatprep.subr.bf16.mxu0 0
    %1039 = vmatpush1.bf16.msra.mxu0 0
    %1040 = vmatprep.subr.bf16.mxu0 0
    %1041 = vmatpush1.bf16.msra.mxu0 0
    %1042 = vmatprep.subr.bf16.mxu0 0
    %1043 = vmatpush1.bf16.msra.mxu0 0
    %1044 = vmatprep.subr.bf16.mxu0 0
    %1045 = vmatpush1.bf16.msra.mxu0 0
    %1046 = vmatprep.subr.bf16.mxu0 0
    %1047 = vmatpush1.bf16.msra.mxu0 0
    %1048 = vmatprep.subr.bf16.mxu0 0
    %1049 = vmatpush1.bf16.msra.mxu0 0
    %1050 = vmatprep.mubr.bf16.mxu0 0
    %1051 = vmatmul.mubr.bf16.gmra.mrb[0].mxu0 %v1013
    %v1052 = vpop.f32.mrb[0].mxu0
    %v1053 = vadd.f32 0.0, %v1052
    %v1054 = vpop.f32.mrb[0].mxu0
    %v1055 = vpop.f32.mrb[0].mxu0
    %v1056 = vpop.f32.mrb[0].mxu0
    %1057 = vdwg.mxu0
    %1059 = vrot.lane.b32.xlu0 %v1053, 32
    %v1060 = vpop.permute.xlu0 %1059
    %1062 = vst.msk [vmem:[#allocation2 + $0x5] sm:$0x1f] %vm586, %v1060
    %1063 = vrot.lane.b32.xlu0 %v712, 80
    %v1064 = vpop.permute.xlu0 %1063
    %1065 = vrot.lane.b32.xlu0 %v712, 16
    %v1066 = vpop.permute.xlu0 %1065
    %v1068 = vsel %vm237, %v1064, 0
    %v1071 = vsel %vm237, %v1066, 0
    %1073 = vmatprep.subr.bf16.mxu0 0
    %1074 = vmatpush1.bf16.xpose.msra.mxu0 %v1071
    %1075 = vmatprep.subr.bf16.mxu0 0
    %1076 = vmatpush1.bf16.xpose.msra.mxu0 0
    %1077 = vmatprep.subr.bf16.mxu0 0
    %1078 = vmatpush1.bf16.xpose.msra.mxu0 0
    %1079 = vmatprep.subr.bf16.mxu0 0
    %1080 = vmatpush1.bf16.xpose.msra.mxu0 0
    %1081 = vmatprep.subr.bf16.mxu0 0
    %1082 = vmatpush1.bf16.xpose.msra.mxu0 0
    %1083 = vmatprep.subr.bf16.mxu0 0
    %1084 = vmatpush1.bf16.xpose.msra.mxu0 0
    %1085 = vmatprep.subr.bf16.mxu0 0
    %1086 = vmatpush1.bf16.xpose.msra.mxu0 0
    %1087 = vmatprep.subr.bf16.mxu0 0
    %1088 = vmatpush1.bf16.xpose.msra.mxu0 0
    %1089 = vmatprep.subr.bf16.mxu0 0
    %1090 = vmatpush1.bf16.xpose.msra.mxu0 0
    %1091 = vmatprep.subr.bf16.mxu0 0
    %1092 = vmatpush1.bf16.xpose.msra.mxu0 0
    %1093 = vmatprep.subr.bf16.mxu0 0
    %1094 = vmatpush1.bf16.xpose.msra.mxu0 0
    %1095 = vmatprep.subr.bf16.mxu0 0
    %1096 = vmatpush1.bf16.xpose.msra.mxu0 0
    %1097 = vmatprep.subr.bf16.mxu0 0
    %1098 = vmatpush1.bf16.xpose.msra.mxu0 0
    %1099 = vmatprep.subr.bf16.mxu0 0
    %1100 = vmatpush1.bf16.xpose.msra.mxu0 0
    %1101 = vmatprep.subr.bf16.mxu0 0
    %1102 = vmatpush1.bf16.xpose.msra.mxu0 0
    %1103 = vmatprep.subr.bf16.mxu0 0
    %1104 = vmatpush1.bf16.xpose.msra.mxu0 0
    %1105 = vmatprep.mubr.bf16.mxu0 0
    %1106 = vmatmul.mubr.bf16.gmra.mrb[0].mxu0 %v1068
    %v1107 = vpop.f32.mrb[0].mxu0
    %v1108 = vadd.f32 0.0, %v1107
    %v1109 = vpop.f32.mrb[0].mxu0
    %v1110 = vpop.f32.mrb[0].mxu0
    %v1111 = vpop.f32.mrb[0].mxu0
    %1112 = vdwg.mxu0
    %v1113 = vsel %vm284, %v1108, -inf
    %1114 = vmax.xlane.f32.xlu0 %v1113
    %v1115 = vpop.xlane.xlu0 %1114
    %v1116 = vsub.f32 %v1108, %v1115
    %v1117 = vmul.f32 %v1116, 1.442695
    %v1118 = vpow.pop %v1117
    %v1119 = vsel %vm284, %v1118, 0.0
    %1120 = vadd.xlane.f32.xlu0 %v1119
    %v1121 = vpop.xlane.xlu0 %1120
    %v1122 = vrcp.pop %v1121
    %v1123 = vmul.f32 %v1118, %v1122
    %s1124 = scalar_lea.vmem %s20, 56
    %1125 = vst.msk [vmem:[%s1124] sm:$0x1f] %vm284, %v1123
    %v1126 = vpack.c.bf16 %v1123, %v1123
    %1127 = vrot.lane.b32.xlu0 %v781, 80
    %v1128 = vpop.permute.xlu0 %1127
    %v1130 = vsel %vm298, %v1126, 0
    %v1133 = vand.u32 %v1128, %v305
    %1135 = vmatprep.subr.bf16.mxu0 0
    %1136 = vmatpush1.bf16.msra.mxu0 %v1133
    %1137 = vmatprep.subr.bf16.mxu0 0
    %1138 = vmatpush1.bf16.msra.mxu0 0
    %1139 = vmatprep.subr.bf16.mxu0 0
    %1140 = vmatpush1.bf16.msra.mxu0 0
    %1141 = vmatprep.subr.bf16.mxu0 0
    %1142 = vmatpush1.bf16.msra.mxu0 0
    %1143 = vmatprep.subr.bf16.mxu0 0
    %1144 = vmatpush1.bf16.msra.mxu0 0
    %1145 = vmatprep.subr.bf16.mxu0 0
    %1146 = vmatpush1.bf16.msra.mxu0 0
    %1147 = vmatprep.subr.bf16.mxu0 0
    %1148 = vmatpush1.bf16.msra.mxu0 0
    %1149 = vmatprep.subr.bf16.mxu0 0
    %1150 = vmatpush1.bf16.msra.mxu0 0
    %1151 = vmatprep.subr.bf16.mxu0 0
    %1152 = vmatpush1.bf16.msra.mxu0 0
    %1153 = vmatprep.subr.bf16.mxu0 0
    %1154 = vmatpush1.bf16.msra.mxu0 0
    %1155 = vmatprep.subr.bf16.mxu0 0
    %1156 = vmatpush1.bf16.msra.mxu0 0
    %1157 = vmatprep.subr.bf16.mxu0 0
    %1158 = vmatpush1.bf16.msra.mxu0 0
    %1159 = vmatprep.subr.bf16.mxu0 0
    %1160 = vmatpush1.bf16.msra.mxu0 0
    %1161 = vmatprep.subr.bf16.mxu0 0
    %1162 = vmatpush1.bf16.msra.mxu0 0
    %1163 = vmatprep.subr.bf16.mxu0 0
    %1164 = vmatpush1.bf16.msra.mxu0 0
    %1165 = vmatprep.subr.bf16.mxu0 0
    %1166 = vmatpush1.bf16.msra.mxu0 0
    %1167 = vmatprep.mubr.bf16.mxu0 0
    %1168 = vmatmul.mubr.bf16.gmra.mrb[0].mxu0 %v1130
    %v1169 = vpop.f32.mrb[0].mxu0
    %v1170 = vadd.f32 0.0, %v1169
    %v1171 = vpop.f32.mrb[0].mxu0
    %v1172 = vpop.f32.mrb[0].mxu0
    %v1173 = vpop.f32.mrb[0].mxu0
    %1174 = vdwg.mxu0
    %1176 = vrot.lane.b32.xlu0 %v1170, 48
    %v1177 = vpop.permute.xlu0 %1176
    %1179 = vst.msk [vmem:[#allocation2 + $0x5] sm:$0x1f] %vm704, %v1177
    %v1180 = vld [vmem:[#allocation2] sm:$0xff]
    %v1181 = vld [vmem:[#allocation2 + $0x8] sm:$0x3]
    %v1182 = vpack.c.bf16 %v1181, %v1180
    %v1184 = vlaneseq
    %v1185 = vshrl.u32 %v1184, 7
    %v1186 = vsub.s32 0, %v1185
    %v1187 = vrot.slane %v102, %v1186
    %v1197 = vunpack.c.l.b16 %v94
    %v1198 = vunpack.c.l.b16 %v95
    %v1199 = vunpack.c.l.b16 %v96
    %v1200 = vunpack.c.l.b16 %v97
    %v1201 = vunpack.c.l.b16 %v98
    %v1202 = vunpack.c.l.b16 %v99
    %v1203 = vunpack.c.l.b16 %v100
    %v1204 = vunpack.c.l.b16 %v101
    %v1205 = vpack.c.b16 %v1198, %v1197
    %v1206 = vpack.c.b16 %v1200, %v1199
    %v1207 = vpack.c.b16 %v1202, %v1201
    %v1208 = vpack.c.b16 %v1204, %v1203
    %v1214 = vsel %vm185, %v1182, 0
    %1216 = vmatprep.subr.bf16.mxu0 0
    %1217 = vmatpush1.bf16.msra.mxu0 %v1205
    %1218 = vmatprep.subr.bf16.mxu0 0
    %1219 = vmatpush1.bf16.msra.mxu0 %v1206
    %1220 = vmatprep.subr.bf16.mxu0 0
    %1221 = vmatpush1.bf16.msra.mxu0 %v1207
    %1222 = vmatprep.subr.bf16.mxu0 0
    %1223 = vmatpush1.bf16.msra.mxu0 %v1208
    %1224 = vmatprep.subr.bf16.mxu0 0
    %1225 = vmatpush1.bf16.msra.mxu0 0
    %1226 = vmatprep.subr.bf16.mxu0 0
    %1227 = vmatpush1.bf16.msra.mxu0 0
    %1228 = vmatprep.subr.bf16.mxu0 0
    %1229 = vmatpush1.bf16.msra.mxu0 0
    %1230 = vmatprep.subr.bf16.mxu0 0
    %1231 = vmatpush1.bf16.msra.mxu0 0
    %1232 = vmatprep.subr.bf16.mxu0 0
    %1233 = vmatpush1.bf16.msra.mxu0 0
    %1234 = vmatprep.subr.bf16.mxu0 0
    %1235 = vmatpush1.bf16.msra.mxu0 0
    %1236 = vmatprep.subr.bf16.mxu0 0
    %1237 = vmatpush1.bf16.msra.mxu0 0
    %1238 = vmatprep.subr.bf16.mxu0 0
    %1239 = vmatpush1.bf16.msra.mxu0 0
    %1240 = vmatprep.subr.bf16.mxu0 0
    %1241 = vmatpush1.bf16.msra.mxu0 0
    %1242 = vmatprep.subr.bf16.mxu0 0
    %1243 = vmatpush1.bf16.msra.mxu0 0
    %1244 = vmatprep.subr.bf16.mxu0 0
    %1245 = vmatpush1.bf16.msra.mxu0 0
    %1246 = vmatprep.subr.bf16.mxu0 0
    %1247 = vmatpush1.bf16.msra.mxu0 0
    %1248 = vmatprep.mubr.bf16.mxu0 0
    %1249 = vmatmul.mubr.bf16.gmra.mrb[0].mxu0 %v1214
    %v1250 = vpop.f32.mrb[0].mxu0
    %v1251 = vadd.f32 %v1187, %v1250
    %v1252 = vpop.f32.mrb[0].mxu0
    %v1253 = vpop.f32.mrb[0].mxu0
    %v1254 = vadd.f32 %v1187, %v1253
    %v1255 = vpop.f32.mrb[0].mxu0
    %1256 = vdwg.mxu0
    %v1257 = vadd.f32 %v83, %v1251
    %v1258 = vadd.f32 %v84, %v1254
    %v1259 = vsel %vm185, %v1257, 0.0
    %1260 = vadd.xlane.f32.xlu0 %v1259
    %v1261 = vpop.xlane.xlu0 %1260
    %vm1262 = vcmask 517120
    %v1263 = vsel %vm1262, %v1258, 0.0
    %1264 = vadd.xlane.f32.xlu0 %v1263
    %v1265 = vpop.xlane.xlu0 %1264
    %v1266 = vrcp.pop 64.0
    %v1267 = vmul.f32 %v1261, %v1266
    %v1268 = vmul.f32 %v1265, %v1266
    %v1269 = vsub.f32 %v1257, %v1267
    %v1270 = vsub.f32 %v1258, %v1268
    %v1271 = vmul.f32 %v1269, %v1269
    %v1272 = vmul.f32 %v1270, %v1270
    %v1273 = vsel %vm185, %v1271, 0.0
    %1274 = vadd.xlane.f32.xlu0 %v1273
    %v1275 = vpop.xlane.xlu0 %1274
    %v1276 = vsel %vm1262, %v1272, 0.0
    %1277 = vadd.xlane.f32.xlu0 %v1276
    %v1278 = vpop.xlane.xlu0 %1277
    %v1279 = vmul.f32 %v1275, %v1266
    %v1280 = vmul.f32 %v1278, %v1266
    %v1281 = vadd.f32 %v1279, 1e-05
    %v1282 = vadd.f32 %v1280, 1e-05
    %v1283 = vrsqrt.pop %v1281
    %v1284 = vrsqrt.pop %v1282
    %v1285 = vmul.f32 %v1269, %v1283
    %v1286 = vmul.f32 %v1270, %v1284
    %v1288 = vlaneseq
    %v1289 = vshrl.u32 %v1288, 7
    %v1290 = vsub.s32 0, %v1289
    %v1291 = vrot.slane %v129, %v1290
    %v1293 = vmul.f32 %v1285, %v1291
    %v1294 = vmul.f32 %v1286, %v1291
    %v1296 = vlaneseq
    %v1297 = vshrl.u32 %v1296, 7
    %v1298 = vsub.s32 0, %v1297
    %v1299 = vrot.slane %v130, %v1298
    %v1301 = vadd.f32 %v1293, %v1299
    %v1302 = vadd.f32 %v1294, %v1299
    %v1303 = vpack.c.bf16 %v1302, %v1301
    %v1305 = vlaneseq
    %v1306 = vshrl.u32 %v1305, 7
    %v1307 = vsub.s32 0, %v1306
    %v1308 = vrot.slane %v111, %v1307
    %v1318 = vunpack.c.l.b16 %v103
    %v1319 = vunpack.c.l.b16 %v104
    %v1320 = vunpack.c.l.b16 %v105
    %v1321 = vunpack.c.l.b16 %v106
    %v1322 = vunpack.c.l.b16 %v107
    %v1323 = vunpack.c.l.b16 %v108
    %v1324 = vunpack.c.l.b16 %v109
    %v1325 = vunpack.c.l.b16 %v110
    %v1326 = vpack.c.b16 %v1319, %v1318
    %v1327 = vpack.c.b16 %v1321, %v1320
    %v1328 = vpack.c.b16 %v1323, %v1322
    %v1329 = vpack.c.b16 %v1325, %v1324
    %v1335 = vsel %vm185, %v1303, 0
    %1337 = vmatprep.subr.bf16.mxu0 0
    %1338 = vmatpush1.bf16.msra.mxu0 %v1326
    %1339 = vmatprep.subr.bf16.mxu0 0
    %1340 = vmatpush1.bf16.msra.mxu0 %v1327
    %1341 = vmatprep.subr.bf16.mxu0 0
    %1342 = vmatpush1.bf16.msra.mxu0 %v1328
    %1343 = vmatprep.subr.bf16.mxu0 0
    %1344 = vmatpush1.bf16.msra.mxu0 %v1329
    %1345 = vmatprep.subr.bf16.mxu0 0
    %1346 = vmatpush1.bf16.msra.mxu0 0
    %1347 = vmatprep.subr.bf16.mxu0 0
    %1348 = vmatpush1.bf16.msra.mxu0 0
    %1349 = vmatprep.subr.bf16.mxu0 0
    %1350 = vmatpush1.bf16.msra.mxu0 0
    %1351 = vmatprep.subr.bf16.mxu0 0
    %1352 = vmatpush1.bf16.msra.mxu0 0
    %1353 = vmatprep.subr.bf16.mxu0 0
    %1354 = vmatpush1.bf16.msra.mxu0 0
    %1355 = vmatprep.subr.bf16.mxu0 0
    %1356 = vmatpush1.bf16.msra.mxu0 0
    %1357 = vmatprep.subr.bf16.mxu0 0
    %1358 = vmatpush1.bf16.msra.mxu0 0
    %1359 = vmatprep.subr.bf16.mxu0 0
    %1360 = vmatpush1.bf16.msra.mxu0 0
    %1361 = vmatprep.subr.bf16.mxu0 0
    %1362 = vmatpush1.bf16.msra.mxu0 0
    %1363 = vmatprep.subr.bf16.mxu0 0
    %1364 = vmatpush1.bf16.msra.mxu0 0
    %1365 = vmatprep.subr.bf16.mxu0 0
    %1366 = vmatpush1.bf16.msra.mxu0 0
    %1367 = vmatprep.subr.bf16.mxu0 0
    %1368 = vmatpush1.bf16.msra.mxu0 0
    %1369 = vmatprep.mubr.bf16.mxu0 0
    %1370 = vmatmul.mubr.bf16.gmra.mrb[0].mxu0 %v1335
    %v1371 = vpop.f32.mrb[0].mxu0
    %v1372 = vadd.f32 %v1308, %v1371
    %v1373 = vpop.f32.mrb[0].mxu0
    %v1374 = vpop.f32.mrb[0].mxu0
    %v1375 = vadd.f32 %v1308, %v1374
    %v1376 = vpop.f32.mrb[0].mxu0
    %1377 = vdwg.mxu0
    %v1378 = vmax.f32 %v1372, 0.0
    %v1379 = vmax.f32 %v1375, 0.0
    %v1380 = vpack.c.bf16 %v1379, %v1378
    %v1382 = vlaneseq
    %v1383 = vshrl.u32 %v1382, 7
    %v1384 = vsub.s32 0, %v1383
    %v1385 = vrot.slane %v128, %v1384
    %v1403 = vunpack.c.l.b16 %v112
    %v1404 = vunpack.c.l.b16 %v113
    %v1405 = vunpack.c.l.b16 %v114
    %v1406 = vunpack.c.l.b16 %v115
    %v1407 = vunpack.c.l.b16 %v116
    %v1408 = vunpack.c.l.b16 %v117
    %v1409 = vunpack.c.l.b16 %v118
    %v1410 = vunpack.c.l.b16 %v119
    %v1411 = vunpack.c.l.b16 %v120
    %v1412 = vunpack.c.l.b16 %v121
    %v1413 = vunpack.c.l.b16 %v122
    %v1414 = vunpack.c.l.b16 %v123
    %v1415 = vunpack.c.l.b16 %v124
    %v1416 = vunpack.c.l.b16 %v125
    %v1417 = vunpack.c.l.b16 %v126
    %v1418 = vunpack.c.l.b16 %v127
    %v1419 = vpack.c.b16 %v1404, %v1403
    %v1420 = vpack.c.b16 %v1406, %v1405
    %v1421 = vpack.c.b16 %v1408, %v1407
    %v1422 = vpack.c.b16 %v1410, %v1409
    %v1423 = vpack.c.b16 %v1412, %v1411
    %v1424 = vpack.c.b16 %v1414, %v1413
    %v1425 = vpack.c.b16 %v1416, %v1415
    %v1426 = vpack.c.b16 %v1418, %v1417
    %1435 = vmatprep.subr.bf16.mxu0 0
    %1436 = vmatpush1.bf16.msra.mxu0 %v1419
    %1437 = vmatprep.subr.bf16.mxu0 0
    %1438 = vmatpush1.bf16.msra.mxu0 %v1420
    %1439 = vmatprep.subr.bf16.mxu0 0
    %1440 = vmatpush1.bf16.msra.mxu0 %v1421
    %1441 = vmatprep.subr.bf16.mxu0 0
    %1442 = vmatpush1.bf16.msra.mxu0 %v1422
    %1443 = vmatprep.subr.bf16.mxu0 0
    %1444 = vmatpush1.bf16.msra.mxu0 %v1423
    %1445 = vmatprep.subr.bf16.mxu0 0
    %1446 = vmatpush1.bf16.msra.mxu0 %v1424
    %1447 = vmatprep.subr.bf16.mxu0 0
    %1448 = vmatpush1.bf16.msra.mxu0 %v1425
    %1449 = vmatprep.subr.bf16.mxu0 0
    %1450 = vmatpush1.bf16.msra.mxu0 %v1426
    %1451 = vmatprep.subr.bf16.mxu0 0
    %1452 = vmatpush1.bf16.msra.mxu0 0
    %1453 = vmatprep.subr.bf16.mxu0 0
    %1454 = vmatpush1.bf16.msra.mxu0 0
    %1455 = vmatprep.subr.bf16.mxu0 0
    %1456 = vmatpush1.bf16.msra.mxu0 0
    %1457 = vmatprep.subr.bf16.mxu0 0
    %1458 = vmatpush1.bf16.msra.mxu0 0
    %1459 = vmatprep.subr.bf16.mxu0 0
    %1460 = vmatpush1.bf16.msra.mxu0 0
    %1461 = vmatprep.subr.bf16.mxu0 0
    %1462 = vmatpush1.bf16.msra.mxu0 0
    %1463 = vmatprep.subr.bf16.mxu0 0
    %1464 = vmatpush1.bf16.msra.mxu0 0
    %1465 = vmatprep.subr.bf16.mxu0 0
    %1466 = vmatpush1.bf16.msra.mxu0 0
    %1467 = vmatprep.mubr.bf16.mxu0 0
    %1468 = vmatmul.mubr.bf16.gmra.mrb[0].mxu0 %v1380
    %v1469 = vpop.f32.mrb[0].mxu0
    %v1470 = vadd.f32 %v1385, %v1469
    %v1471 = vpop.f32.mrb[0].mxu0
    %v1472 = vpop.f32.mrb[0].mxu0
    %v1473 = vadd.f32 %v1385, %v1472
    %v1474 = vpop.f32.mrb[0].mxu0
    %1475 = vdwg.mxu0
    %v1476 = vadd.f32 %v1301, %v1470
    %v1477 = vadd.f32 %v1302, %v1473
    %v1478 = vsel %vm185, %v1476, 0.0
    %1479 = vadd.xlane.f32.xlu0 %v1478
    %v1480 = vpop.xlane.xlu0 %1479
    %v1481 = vsel %vm1262, %v1477, 0.0
    %1482 = vadd.xlane.f32.xlu0 %v1481
    %v1483 = vpop.xlane.xlu0 %1482
    %v1484 = vmul.f32 %v1480, %v1266
    %v1485 = vmul.f32 %v1483, %v1266
    %v1486 = vsub.f32 %v1476, %v1484
    %v1487 = vsub.f32 %v1477, %v1485
    %v1488 = vmul.f32 %v1486, %v1486
    %v1489 = vmul.f32 %v1487, %v1487
    %v1490 = vsel %vm185, %v1488, 0.0
    %1491 = vadd.xlane.f32.xlu0 %v1490
    %v1492 = vpop.xlane.xlu0 %1491
    %v1493 = vsel %vm1262, %v1489, 0.0
    %1494 = vadd.xlane.f32.xlu0 %v1493
    %v1495 = vpop.xlane.xlu0 %1494
    %v1496 = vmul.f32 %v1492, %v1266
    %v1497 = vmul.f32 %v1495, %v1266
    %v1498 = vadd.f32 %v1496, 1e-05
    %v1499 = vadd.f32 %v1497, 1e-05
    %v1500 = vrsqrt.pop %v1498
    %v1501 = vrsqrt.pop %v1499
    %v1502 = vmul.f32 %v1486, %v1500
    %v1503 = vmul.f32 %v1487, %v1501
    %v1505 = vlaneseq
    %v1506 = vshrl.u32 %v1505, 7
    %v1507 = vsub.s32 0, %v1506
    %v1508 = vrot.slane %v131, %v1507
    %v1510 = vmul.f32 %v1502, %v1508
    %v1511 = vmul.f32 %v1503, %v1508
    %v1513 = vlaneseq
    %v1514 = vshrl.u32 %v1513, 7
    %v1515 = vsub.s32 0, %v1514
    %v1516 = vrot.slane %v132, %v1515
    %v1518 = vadd.f32 %v1510, %v1516
    %v1519 = vadd.f32 %v1511, %v1516
    %v1520 = vpack.c.bf16 %v1519, %v1518
    %v1522 = vsel %vm185, %v1520, 0
    %1524 = vmatprep.subr.bf16.mxu0 %v170
    %1525 = vmatpush1.bf16.msra.mxu0 %v169
    %1526 = vmatprep.subr.bf16.mxu0 %v172
    %1527 = vmatpush1.bf16.msra.mxu0 %v171
    %1528 = vmatprep.subr.bf16.mxu0 %v174
    %1529 = vmatpush1.bf16.msra.mxu0 %v173
    %1530 = vmatprep.subr.bf16.mxu0 %v176
    %1531 = vmatpush1.bf16.msra.mxu0 %v175
    %1532 = vmatprep.subr.bf16.mxu0 0
    %1533 = vmatpush1.bf16.msra.mxu0 0
    %1534 = vmatprep.subr.bf16.mxu0 0
    %1535 = vmatpush1.bf16.msra.mxu0 0
    %1536 = vmatprep.subr.bf16.mxu0 0
    %1537 = vmatpush1.bf16.msra.mxu0 0
    %1538 = vmatprep.subr.bf16.mxu0 0
    %1539 = vmatpush1.bf16.msra.mxu0 0
    %1540 = vmatprep.subr.bf16.mxu0 0
    %1541 = vmatpush1.bf16.msra.mxu0 0
    %1542 = vmatprep.subr.bf16.mxu0 0
    %1543 = vmatpush1.bf16.msra.mxu0 0
    %1544 = vmatprep.subr.bf16.mxu0 0
    %1545 = vmatpush1.bf16.msra.mxu0 0
    %1546 = vmatprep.subr.bf16.mxu0 0
    %1547 = vmatpush1.bf16.msra.mxu0 0
    %1548 = vmatprep.subr.bf16.mxu0 0
    %1549 = vmatpush1.bf16.msra.mxu0 0
    %1550 = vmatprep.subr.bf16.mxu0 0
    %1551 = vmatpush1.bf16.msra.mxu0 0
    %1552 = vmatprep.subr.bf16.mxu0 0
    %1553 = vmatpush1.bf16.msra.mxu0 0
    %1554 = vmatprep.subr.bf16.mxu0 0
    %1555 = vmatpush1.bf16.msra.mxu0 0
    %1556 = vmatprep.mubr.bf16.mxu0 0
    %1557 = vmatmul.mubr.bf16.gmra.mrb[0].mxu0 %v1522
    %v1558 = vpop.f32.mrb[0].mxu0
    %v1559 = vadd.f32 %v138, %v1558
    %v1560 = vpop.f32.mrb[0].mxu0
    %v1561 = vadd.f32 %v142, %v1560
    %v1562 = vpop.f32.mrb[0].mxu0
    %v1563 = vadd.f32 %v138, %v1562
    %v1564 = vpop.f32.mrb[0].mxu0
    %v1565 = vadd.f32 %v142, %v1564
    %1566 = vdwg.mxu0
    %v1567 = vpack.c.bf16 %v1563, %v1559
    %v1568 = vpack.c.bf16 %v1565, %v1561
    %1570 = vrot.lane.b32.xlu0 %v1567, 64
    %v1571 = vpop.permute.xlu0 %1570
    %v1573 = vsel %vm237, %v1567, 0
    %v1576 = vsel %vm237, %v1571, 0
    %1578 = vmatprep.subr.bf16.mxu0 0
    %1579 = vmatpush1.bf16.xpose.msra.mxu0 %v1576
    %1580 = vmatprep.subr.bf16.mxu0 0
    %1581 = vmatpush1.bf16.xpose.msra.mxu0 0
    %1582 = vmatprep.subr.bf16.mxu0 0
    %1583 = vmatpush1.bf16.xpose.msra.mxu0 0
    %1584 = vmatprep.subr.bf16.mxu0 0
    %1585 = vmatpush1.bf16.xpose.msra.mxu0 0
    %1586 = vmatprep.subr.bf16.mxu0 0
    %1587 = vmatpush1.bf16.xpose.msra.mxu0 0
    %1588 = vmatprep.subr.bf16.mxu0 0
    %1589 = vmatpush1.bf16.xpose.msra.mxu0 0
    %1590 = vmatprep.subr.bf16.mxu0 0
    %1591 = vmatpush1.bf16.xpose.msra.mxu0 0
    %1592 = vmatprep.subr.bf16.mxu0 0
    %1593 = vmatpush1.bf16.xpose.msra.mxu0 0
    %1594 = vmatprep.subr.bf16.mxu0 0
    %1595 = vmatpush1.bf16.xpose.msra.mxu0 0
    %1596 = vmatprep.subr.bf16.mxu0 0
    %1597 = vmatpush1.bf16.xpose.msra.mxu0 0
    %1598 = vmatprep.subr.bf16.mxu0 0
    %1599 = vmatpush1.bf16.xpose.msra.mxu0 0
    %1600 = vmatprep.subr.bf16.mxu0 0
    %1601 = vmatpush1.bf16.xpose.msra.mxu0 0
    %1602 = vmatprep.subr.bf16.mxu0 0
    %1603 = vmatpush1.bf16.xpose.msra.mxu0 0
    %1604 = vmatprep.subr.bf16.mxu0 0
    %1605 = vmatpush1.bf16.xpose.msra.mxu0 0
    %1606 = vmatprep.subr.bf16.mxu0 0
    %1607 = vmatpush1.bf16.xpose.msra.mxu0 0
    %1608 = vmatprep.subr.bf16.mxu0 0
    %1609 = vmatpush1.bf16.xpose.msra.mxu0 0
    %1610 = vmatprep.mubr.bf16.mxu0 0
    %1611 = vmatmul.mubr.bf16.gmra.mrb[0].mxu0 %v1573
    %v1612 = vpop.f32.mrb[0].mxu0
    %v1613 = vadd.f32 0.0, %v1612
    %v1614 = vpop.f32.mrb[0].mxu0
    %v1615 = vpop.f32.mrb[0].mxu0
    %v1616 = vpop.f32.mrb[0].mxu0
    %1617 = vdwg.mxu0
    %v1618 = vsel %vm284, %v1613, -inf
    %1619 = vmax.xlane.f32.xlu0 %v1618
    %v1620 = vpop.xlane.xlu0 %1619
    %v1621 = vsub.f32 %v1613, %v1620
    %v1622 = vmul.f32 %v1621, 1.442695
    %v1623 = vpow.pop %v1622
    %v1624 = vsel %vm284, %v1623, 0.0
    %1625 = vadd.xlane.f32.xlu0 %v1624
    %v1626 = vpop.xlane.xlu0 %1625
    %v1627 = vrcp.pop %v1626
    %v1628 = vmul.f32 %v1623, %v1627
    %s1629 = scalar_lea.vmem %s20, 64
    %1630 = vst.msk [vmem:[%s1629] sm:$0x1f] %vm284, %v1628
    %v1631 = vpack.c.bf16 %v1628, %v1628
    %v1633 = vsel %vm298, %v1631, 0
    %v1636 = vand.u32 %v1568, %v305
    %1638 = vmatprep.subr.bf16.mxu0 0
    %1639 = vmatpush1.bf16.msra.mxu0 %v1636
    %1640 = vmatprep.subr.bf16.mxu0 0
    %1641 = vmatpush1.bf16.msra.mxu0 0
    %1642 = vmatprep.subr.bf16.mxu0 0
    %1643 = vmatpush1.bf16.msra.mxu0 0
    %1644 = vmatprep.subr.bf16.mxu0 0
    %1645 = vmatpush1.bf16.msra.mxu0 0
    %1646 = vmatprep.subr.bf16.mxu0 0
    %1647 = vmatpush1.bf16.msra.mxu0 0
    %1648 = vmatprep.subr.bf16.mxu0 0
    %1649 = vmatpush1.bf16.msra.mxu0 0
    %1650 = vmatprep.subr.bf16.mxu0 0
    %1651 = vmatpush1.bf16.msra.mxu0 0
    %1652 = vmatprep.subr.bf16.mxu0 0
    %1653 = vmatpush1.bf16.msra.mxu0 0
    %1654 = vmatprep.subr.bf16.mxu0 0
    %1655 = vmatpush1.bf16.msra.mxu0 0
    %1656 = vmatprep.subr.bf16.mxu0 0
    %1657 = vmatpush1.bf16.msra.mxu0 0
    %1658 = vmatprep.subr.bf16.mxu0 0
    %1659 = vmatpush1.bf16.msra.mxu0 0
    %1660 = vmatprep.subr.bf16.mxu0 0
    %1661 = vmatpush1.bf16.msra.mxu0 0
    %1662 = vmatprep.subr.bf16.mxu0 0
    %1663 = vmatpush1.bf16.msra.mxu0 0
    %1664 = vmatprep.subr.bf16.mxu0 0
    %1665 = vmatpush1.bf16.msra.mxu0 0
    %1666 = vmatprep.subr.bf16.mxu0 0
    %1667 = vmatpush1.bf16.msra.mxu0 0
    %1668 = vmatprep.subr.bf16.mxu0 0
    %1669 = vmatpush1.bf16.msra.mxu0 0
    %1670 = vmatprep.mubr.bf16.mxu0 0
    %1671 = vmatmul.mubr.bf16.gmra.mrb[0].mxu0 %v1633
    %v1672 = vpop.f32.mrb[0].mxu0
    %v1673 = vadd.f32 0.0, %v1672
    %v1674 = vpop.f32.mrb[0].mxu0
    %v1675 = vpop.f32.mrb[0].mxu0
    %v1676 = vpop.f32.mrb[0].mxu0
    %1677 = vdwg.mxu0
    %1678 = vst.msk [vmem:[#allocation2] sm:$0x1f] %vm349, %v1673
    %1679 = vrot.lane.b32.xlu0 %v1567, 112
    %v1680 = vpop.permute.xlu0 %1679
    %1681 = vrot.lane.b32.xlu0 %v1567, 48
    %v1682 = vpop.permute.xlu0 %1681
    %v1684 = vsel %vm237, %v1680, 0
    %v1687 = vsel %vm237, %v1682, 0
    %1689 = vmatprep.subr.bf16.mxu0 0
    %1690 = vmatpush1.bf16.xpose.msra.mxu0 %v1687
    %1691 = vmatprep.subr.bf16.mxu0 0
    %1692 = vmatpush1.bf16.xpose.msra.mxu0 0
    %1693 = vmatprep.subr.bf16.mxu0 0
    %1694 = vmatpush1.bf16.xpose.msra.mxu0 0
    %1695 = vmatprep.subr.bf16.mxu0 0
    %1696 = vmatpush1.bf16.xpose.msra.mxu0 0
    %1697 = vmatprep.subr.bf16.mxu0 0
    %1698 = vmatpush1.bf16.xpose.msra.mxu0 0
    %1699 = vmatprep.subr.bf16.mxu0 0
    %1700 = vmatpush1.bf16.xpose.msra.mxu0 0
    %1701 = vmatprep.subr.bf16.mxu0 0
    %1702 = vmatpush1.bf16.xpose.msra.mxu0 0
    %1703 = vmatprep.subr.bf16.mxu0 0
    %1704 = vmatpush1.bf16.xpose.msra.mxu0 0
    %1705 = vmatprep.subr.bf16.mxu0 0
    %1706 = vmatpush1.bf16.xpose.msra.mxu0 0
    %1707 = vmatprep.subr.bf16.mxu0 0
    %1708 = vmatpush1.bf16.xpose.msra.mxu0 0
    %1709 = vmatprep.subr.bf16.mxu0 0
    %1710 = vmatpush1.bf16.xpose.msra.mxu0 0
    %1711 = vmatprep.subr.bf16.mxu0 0
    %1712 = vmatpush1.bf16.xpose.msra.mxu0 0
    %1713 = vmatprep.subr.bf16.mxu0 0
    %1714 = vmatpush1.bf16.xpose.msra.mxu0 0
    %1715 = vmatprep.subr.bf16.mxu0 0
    %1716 = vmatpush1.bf16.xpose.msra.mxu0 0
    %1717 = vmatprep.subr.bf16.mxu0 0
    %1718 = vmatpush1.bf16.xpose.msra.mxu0 0
    %1719 = vmatprep.subr.bf16.mxu0 0
    %1720 = vmatpush1.bf16.xpose.msra.mxu0 0
    %1721 = vmatprep.mubr.bf16.mxu0 0
    %1722 = vmatmul.mubr.bf16.gmra.mrb[0].mxu0 %v1684
    %v1723 = vpop.f32.mrb[0].mxu0
    %v1724 = vadd.f32 0.0, %v1723
    %v1725 = vpop.f32.mrb[0].mxu0
    %v1726 = vpop.f32.mrb[0].mxu0
    %v1727 = vpop.f32.mrb[0].mxu0
    %1728 = vdwg.mxu0
    %v1729 = vsel %vm284, %v1724, -inf
    %1730 = vmax.xlane.f32.xlu0 %v1729
    %v1731 = vpop.xlane.xlu0 %1730
    %v1732 = vsub.f32 %v1724, %v1731
    %v1733 = vmul.f32 %v1732, 1.442695
    %v1734 = vpow.pop %v1733
    %v1735 = vsel %vm284, %v1734, 0.0
    %1736 = vadd.xlane.f32.xlu0 %v1735
    %v1737 = vpop.xlane.xlu0 %1736
    %v1738 = vrcp.pop %v1737
    %v1739 = vmul.f32 %v1734, %v1738
    %s1740 = scalar_lea.vmem %s20, 72
    %1741 = vst.msk [vmem:[%s1740] sm:$0x1f] %vm284, %v1739
    %v1742 = vpack.c.bf16 %v1739, %v1739
    %1744 = vrot.lane.b32.xlu0 %v1568, 112
    %v1745 = vpop.permute.xlu0 %1744
    %v1747 = vsel %vm298, %v1742, 0
    %v1750 = vand.u32 %v1745, %v305
    %1752 = vmatprep.subr.bf16.mxu0 0
    %1753 = vmatpush1.bf16.msra.mxu0 %v1750
    %1754 = vmatprep.subr.bf16.mxu0 0
    %1755 = vmatpush1.bf16.msra.mxu0 0
    %1756 = vmatprep.subr.bf16.mxu0 0
    %1757 = vmatpush1.bf16.msra.mxu0 0
    %1758 = vmatprep.subr.bf16.mxu0 0
    %1759 = vmatpush1.bf16.msra.mxu0 0
    %1760 = vmatprep.subr.bf16.mxu0 0
    %1761 = vmatpush1.bf16.msra.mxu0 0
    %1762 = vmatprep.subr.bf16.mxu0 0
    %1763 = vmatpush1.bf16.msra.mxu0 0
    %1764 = vmatprep.subr.bf16.mxu0 0
    %1765 = vmatpush1.bf16.msra.mxu0 0
    %1766 = vmatprep.subr.bf16.mxu0 0
    %1767 = vmatpush1.bf16.msra.mxu0 0
    %1768 = vmatprep.subr.bf16.mxu0 0
    %1769 = vmatpush1.bf16.msra.mxu0 0
    %1770 = vmatprep.subr.bf16.mxu0 0
    %1771 = vmatpush1.bf16.msra.mxu0 0
    %1772 = vmatprep.subr.bf16.mxu0 0
    %1773 = vmatpush1.bf16.msra.mxu0 0
    %1774 = vmatprep.subr.bf16.mxu0 0
    %1775 = vmatpush1.bf16.msra.mxu0 0
    %1776 = vmatprep.subr.bf16.mxu0 0
    %1777 = vmatpush1.bf16.msra.mxu0 0
    %1778 = vmatprep.subr.bf16.mxu0 0
    %1779 = vmatpush1.bf16.msra.mxu0 0
    %1780 = vmatprep.subr.bf16.mxu0 0
    %1781 = vmatpush1.bf16.msra.mxu0 0
    %1782 = vmatprep.subr.bf16.mxu0 0
    %1783 = vmatpush1.bf16.msra.mxu0 0
    %1784 = vmatprep.mubr.bf16.mxu0 0
    %1785 = vmatmul.mubr.bf16.gmra.mrb[0].mxu0 %v1747
    %v1786 = vpop.f32.mrb[0].mxu0
    %v1787 = vadd.f32 0.0, %v1786
    %v1788 = vpop.f32.mrb[0].mxu0
    %v1789 = vpop.f32.mrb[0].mxu0
    %v1790 = vpop.f32.mrb[0].mxu0
    %1791 = vdwg.mxu0
    %1793 = vrot.lane.b32.xlu0 %v1787, 16
    %v1794 = vpop.permute.xlu0 %1793
    %1796 = vst.msk [vmem:[#allocation2] sm:$0x1f] %vm468, %v1794
    %1797 = vrot.lane.b32.xlu0 %v1567, 96
    %v1798 = vpop.permute.xlu0 %1797
    %1799 = vrot.lane.b32.xlu0 %v1567, 32
    %v1800 = vpop.permute.xlu0 %1799
    %v1802 = vsel %vm237, %v1798, 0
    %v1805 = vsel %vm237, %v1800, 0
    %1807 = vmatprep.subr.bf16.mxu0 0
    %1808 = vmatpush1.bf16.xpose.msra.mxu0 %v1805
    %1809 = vmatprep.subr.bf16.mxu0 0
    %1810 = vmatpush1.bf16.xpose.msra.mxu0 0
    %1811 = vmatprep.subr.bf16.mxu0 0
    %1812 = vmatpush1.bf16.xpose.msra.mxu0 0
    %1813 = vmatprep.subr.bf16.mxu0 0
    %1814 = vmatpush1.bf16.xpose.msra.mxu0 0
    %1815 = vmatprep.subr.bf16.mxu0 0
    %1816 = vmatpush1.bf16.xpose.msra.mxu0 0
    %1817 = vmatprep.subr.bf16.mxu0 0
    %1818 = vmatpush1.bf16.xpose.msra.mxu0 0
    %1819 = vmatprep.subr.bf16.mxu0 0
    %1820 = vmatpush1.bf16.xpose.msra.mxu0 0
    %1821 = vmatprep.subr.bf16.mxu0 0
    %1822 = vmatpush1.bf16.xpose.msra.mxu0 0
    %1823 = vmatprep.subr.bf16.mxu0 0
    %1824 = vmatpush1.bf16.xpose.msra.mxu0 0
    %1825 = vmatprep.subr.bf16.mxu0 0
    %1826 = vmatpush1.bf16.xpose.msra.mxu0 0
    %1827 = vmatprep.subr.bf16.mxu0 0
    %1828 = vmatpush1.bf16.xpose.msra.mxu0 0
    %1829 = vmatprep.subr.bf16.mxu0 0
    %1830 = vmatpush1.bf16.xpose.msra.mxu0 0
    %1831 = vmatprep.subr.bf16.mxu0 0
    %1832 = vmatpush1.bf16.xpose.msra.mxu0 0
    %1833 = vmatprep.subr.bf16.mxu0 0
    %1834 = vmatpush1.bf16.xpose.msra.mxu0 0
    %1835 = vmatprep.subr.bf16.mxu0 0
    %1836 = vmatpush1.bf16.xpose.msra.mxu0 0
    %1837 = vmatprep.subr.bf16.mxu0 0
    %1838 = vmatpush1.bf16.xpose.msra.mxu0 0
    %1839 = vmatprep.mubr.bf16.mxu0 0
    %1840 = vmatmul.mubr.bf16.gmra.mrb[0].mxu0 %v1802
    %v1841 = vpop.f32.mrb[0].mxu0
    %v1842 = vadd.f32 0.0, %v1841
    %v1843 = vpop.f32.mrb[0].mxu0
    %v1844 = vpop.f32.mrb[0].mxu0
    %v1845 = vpop.f32.mrb[0].mxu0
    %1846 = vdwg.mxu0
    %v1847 = vsel %vm284, %v1842, -inf
    %1848 = vmax.xlane.f32.xlu0 %v1847
    %v1849 = vpop.xlane.xlu0 %1848
    %v1850 = vsub.f32 %v1842, %v1849
    %v1851 = vmul.f32 %v1850, 1.442695
    %v1852 = vpow.pop %v1851
    %v1853 = vsel %vm284, %v1852, 0.0
    %1854 = vadd.xlane.f32.xlu0 %v1853
    %v1855 = vpop.xlane.xlu0 %1854
    %v1856 = vrcp.pop %v1855
    %v1857 = vmul.f32 %v1852, %v1856
    %s1858 = scalar_lea.vmem %s20, 80
    %1859 = vst.msk [vmem:[%s1858] sm:$0x1f] %vm284, %v1857
    %v1860 = vpack.c.bf16 %v1857, %v1857
    %1861 = vrot.lane.b32.xlu0 %v1568, 96
    %v1862 = vpop.permute.xlu0 %1861
    %v1864 = vsel %vm298, %v1860, 0
    %v1867 = vand.u32 %v1862, %v305
    %1869 = vmatprep.subr.bf16.mxu0 0
    %1870 = vmatpush1.bf16.msra.mxu0 %v1867
    %1871 = vmatprep.subr.bf16.mxu0 0
    %1872 = vmatpush1.bf16.msra.mxu0 0
    %1873 = vmatprep.subr.bf16.mxu0 0
    %1874 = vmatpush1.bf16.msra.mxu0 0
    %1875 = vmatprep.subr.bf16.mxu0 0
    %1876 = vmatpush1.bf16.msra.mxu0 0
    %1877 = vmatprep.subr.bf16.mxu0 0
    %1878 = vmatpush1.bf16.msra.mxu0 0
    %1879 = vmatprep.subr.bf16.mxu0 0
    %1880 = vmatpush1.bf16.msra.mxu0 0
    %1881 = vmatprep.subr.bf16.mxu0 0
    %1882 = vmatpush1.bf16.msra.mxu0 0
    %1883 = vmatprep.subr.bf16.mxu0 0
    %1884 = vmatpush1.bf16.msra.mxu0 0
    %1885 = vmatprep.subr.bf16.mxu0 0
    %1886 = vmatpush1.bf16.msra.mxu0 0
    %1887 = vmatprep.subr.bf16.mxu0 0
    %1888 = vmatpush1.bf16.msra.mxu0 0
    %1889 = vmatprep.subr.bf16.mxu0 0
    %1890 = vmatpush1.bf16.msra.mxu0 0
    %1891 = vmatprep.subr.bf16.mxu0 0
    %1892 = vmatpush1.bf16.msra.mxu0 0
    %1893 = vmatprep.subr.bf16.mxu0 0
    %1894 = vmatpush1.bf16.msra.mxu0 0
    %1895 = vmatprep.subr.bf16.mxu0 0
    %1896 = vmatpush1.bf16.msra.mxu0 0
    %1897 = vmatprep.subr.bf16.mxu0 0
    %1898 = vmatpush1.bf16.msra.mxu0 0
    %1899 = vmatprep.subr.bf16.mxu0 0
    %1900 = vmatpush1.bf16.msra.mxu0 0
    %1901 = vmatprep.mubr.bf16.mxu0 0
    %1902 = vmatmul.mubr.bf16.gmra.mrb[0].mxu0 %v1864
    %v1903 = vpop.f32.mrb[0].mxu0
    %v1904 = vadd.f32 0.0, %v1903
    %v1905 = vpop.f32.mrb[0].mxu0
    %v1906 = vpop.f32.mrb[0].mxu0
    %v1907 = vpop.f32.mrb[0].mxu0
    %1908 = vdwg.mxu0
    %1910 = vrot.lane.b32.xlu0 %v1904, 32
    %v1911 = vpop.permute.xlu0 %1910
    %1913 = vst.msk [vmem:[#allocation2] sm:$0x1f] %vm586, %v1911
    %1914 = vrot.lane.b32.xlu0 %v1567, 80
    %v1915 = vpop.permute.xlu0 %1914
    %1916 = vrot.lane.b32.xlu0 %v1567, 16
    %v1917 = vpop.permute.xlu0 %1916
    %v1919 = vsel %vm237, %v1915, 0
    %v1922 = vsel %vm237, %v1917, 0
    %1924 = vmatprep.subr.bf16.mxu0 0
    %1925 = vmatpush1.bf16.xpose.msra.mxu0 %v1922
    %1926 = vmatprep.subr.bf16.mxu0 0
    %1927 = vmatpush1.bf16.xpose.msra.mxu0 0
    %1928 = vmatprep.subr.bf16.mxu0 0
    %1929 = vmatpush1.bf16.xpose.msra.mxu0 0
    %1930 = vmatprep.subr.bf16.mxu0 0
    %1931 = vmatpush1.bf16.xpose.msra.mxu0 0
    %1932 = vmatprep.subr.bf16.mxu0 0
    %1933 = vmatpush1.bf16.xpose.msra.mxu0 0
    %1934 = vmatprep.subr.bf16.mxu0 0
    %1935 = vmatpush1.bf16.xpose.msra.mxu0 0
    %1936 = vmatprep.subr.bf16.mxu0 0
    %1937 = vmatpush1.bf16.xpose.msra.mxu0 0
    %1938 = vmatprep.subr.bf16.mxu0 0
    %1939 = vmatpush1.bf16.xpose.msra.mxu0 0
    %1940 = vmatprep.subr.bf16.mxu0 0
    %1941 = vmatpush1.bf16.xpose.msra.mxu0 0
    %1942 = vmatprep.subr.bf16.mxu0 0
    %1943 = vmatpush1.bf16.xpose.msra.mxu0 0
    %1944 = vmatprep.subr.bf16.mxu0 0
    %1945 = vmatpush1.bf16.xpose.msra.mxu0 0
    %1946 = vmatprep.subr.bf16.mxu0 0
    %1947 = vmatpush1.bf16.xpose.msra.mxu0 0
    %1948 = vmatprep.subr.bf16.mxu0 0
    %1949 = vmatpush1.bf16.xpose.msra.mxu0 0
    %1950 = vmatprep.subr.bf16.mxu0 0
    %1951 = vmatpush1.bf16.xpose.msra.mxu0 0
    %1952 = vmatprep.subr.bf16.mxu0 0
    %1953 = vmatpush1.bf16.xpose.msra.mxu0 0
    %1954 = vmatprep.subr.bf16.mxu0 0
    %1955 = vmatpush1.bf16.xpose.msra.mxu0 0
    %1956 = vmatprep.mubr.bf16.mxu0 0
    %1957 = vmatmul.mubr.bf16.gmra.mrb[0].mxu0 %v1919
    %v1958 = vpop.f32.mrb[0].mxu0
    %v1959 = vadd.f32 0.0, %v1958
    %v1960 = vpop.f32.mrb[0].mxu0
    %v1961 = vpop.f32.mrb[0].mxu0
    %v1962 = vpop.f32.mrb[0].mxu0
    %1963 = vdwg.mxu0
    %v1964 = vsel %vm284, %v1959, -inf
    %1965 = vmax.xlane.f32.xlu0 %v1964
    %v1966 = vpop.xlane.xlu0 %1965
    %v1967 = vsub.f32 %v1959, %v1966
    %v1968 = vmul.f32 %v1967, 1.442695
    %v1969 = vpow.pop %v1968
    %v1970 = vsel %vm284, %v1969, 0.0
    %1971 = vadd.xlane.f32.xlu0 %v1970
    %v1972 = vpop.xlane.xlu0 %1971
    %v1973 = vrcp.pop %v1972
    %v1974 = vmul.f32 %v1969, %v1973
    %s1975 = scalar_lea.vmem %s20, 88
    %1976 = vst.msk [vmem:[%s1975] sm:$0x1f] %vm284, %v1974
    %v1977 = vpack.c.bf16 %v1974, %v1974
    %1978 = vrot.lane.b32.xlu0 %v1568, 80
    %v1979 = vpop.permute.xlu0 %1978
    %v1981 = vsel %vm298, %v1977, 0
    %v1984 = vand.u32 %v1979, %v305
    %1986 = vmatprep.subr.bf16.mxu0 0
    %1987 = vmatpush1.bf16.msra.mxu0 %v1984
    %1988 = vmatprep.subr.bf16.mxu0 0
    %1989 = vmatpush1.bf16.msra.mxu0 0
    %1990 = vmatprep.subr.bf16.mxu0 0
    %1991 = vmatpush1.bf16.msra.mxu0 0
    %1992 = vmatprep.subr.bf16.mxu0 0
    %1993 = vmatpush1.bf16.msra.mxu0 0
    %1994 = vmatprep.subr.bf16.mxu0 0
    %1995 = vmatpush1.bf16.msra.mxu0 0
    %1996 = vmatprep.subr.bf16.mxu0 0
    %1997 = vmatpush1.bf16.msra.mxu0 0
    %1998 = vmatprep.subr.bf16.mxu0 0
    %1999 = vmatpush1.bf16.msra.mxu0 0
    %2000 = vmatprep.subr.bf16.mxu0 0
    %2001 = vmatpush1.bf16.msra.mxu0 0
    %2002 = vmatprep.subr.bf16.mxu0 0
    %2003 = vmatpush1.bf16.msra.mxu0 0
    %2004 = vmatprep.subr.bf16.mxu0 0
    %2005 = vmatpush1.bf16.msra.mxu0 0
    %2006 = vmatprep.subr.bf16.mxu0 0
    %2007 = vmatpush1.bf16.msra.mxu0 0
    %2008 = vmatprep.subr.bf16.mxu0 0
    %2009 = vmatpush1.bf16.msra.mxu0 0
    %2010 = vmatprep.subr.bf16.mxu0 0
    %2011 = vmatpush1.bf16.msra.mxu0 0
    %2012 = vmatprep.subr.bf16.mxu0 0
    %2013 = vmatpush1.bf16.msra.mxu0 0
    %2014 = vmatprep.subr.bf16.mxu0 0
    %2015 = vmatpush1.bf16.msra.mxu0 0
    %2016 = vmatprep.subr.bf16.mxu0 0
    %2017 = vmatpush1.bf16.msra.mxu0 0
    %2018 = vmatprep.mubr.bf16.mxu0 0
    %2019 = vmatmul.mubr.bf16.gmra.mrb[0].mxu0 %v1981
    %v2020 = vpop.f32.mrb[0].mxu0
    %v2021 = vadd.f32 0.0, %v2020
    %v2022 = vpop.f32.mrb[0].mxu0
    %v2023 = vpop.f32.mrb[0].mxu0
    %v2024 = vpop.f32.mrb[0].mxu0
    %2025 = vdwg.mxu0
    %2027 = vrot.lane.b32.xlu0 %v2021, 48
    %v2028 = vpop.permute.xlu0 %2027
    %2030 = vst.msk [vmem:[#allocation2] sm:$0x1f] %vm704, %v2028
    %v2031 = vshrl.u32 %v1567, 16
    %v2033 = vrot.slane %v2031, 2
    %v2034 = vshll.u32 %v1567, 16
    %v2036 = vrot.slane %v2034, 3
    %v2037 = vor.u32 %v2033, %v2036
    %2038 = vrot.lane.b32.xlu0 %v2037, 64
    %v2039 = vpop.permute.xlu0 %2038
    %v2041 = vsel %vm237, %v2037, 0
    %v2044 = vsel %vm237, %v2039, 0
    %2046 = vmatprep.subr.bf16.mxu0 0
    %2047 = vmatpush1.bf16.xpose.msra.mxu0 %v2044
    %2048 = vmatprep.subr.bf16.mxu0 0
    %2049 = vmatpush1.bf16.xpose.msra.mxu0 0
    %2050 = vmatprep.subr.bf16.mxu0 0
    %2051 = vmatpush1.bf16.xpose.msra.mxu0 0
    %2052 = vmatprep.subr.bf16.mxu0 0
    %2053 = vmatpush1.bf16.xpose.msra.mxu0 0
    %2054 = vmatprep.subr.bf16.mxu0 0
    %2055 = vmatpush1.bf16.xpose.msra.mxu0 0
    %2056 = vmatprep.subr.bf16.mxu0 0
    %2057 = vmatpush1.bf16.xpose.msra.mxu0 0
    %2058 = vmatprep.subr.bf16.mxu0 0
    %2059 = vmatpush1.bf16.xpose.msra.mxu0 0
    %2060 = vmatprep.subr.bf16.mxu0 0
    %2061 = vmatpush1.bf16.xpose.msra.mxu0 0
    %2062 = vmatprep.subr.bf16.mxu0 0
    %2063 = vmatpush1.bf16.xpose.msra.mxu0 0
    %2064 = vmatprep.subr.bf16.mxu0 0
    %2065 = vmatpush1.bf16.xpose.msra.mxu0 0
    %2066 = vmatprep.subr.bf16.mxu0 0
    %2067 = vmatpush1.bf16.xpose.msra.mxu0 0
    %2068 = vmatprep.subr.bf16.mxu0 0
    %2069 = vmatpush1.bf16.xpose.msra.mxu0 0
    %2070 = vmatprep.subr.bf16.mxu0 0
    %2071 = vmatpush1.bf16.xpose.msra.mxu0 0
    %2072 = vmatprep.subr.bf16.mxu0 0
    %2073 = vmatpush1.bf16.xpose.msra.mxu0 0
    %2074 = vmatprep.subr.bf16.mxu0 0
    %2075 = vmatpush1.bf16.xpose.msra.mxu0 0
    %2076 = vmatprep.subr.bf16.mxu0 0
    %2077 = vmatpush1.bf16.xpose.msra.mxu0 0
    %2078 = vmatprep.mubr.bf16.mxu0 0
    %2079 = vmatmul.mubr.bf16.gmra.mrb[0].mxu0 %v2041
    %v2080 = vpop.f32.mrb[0].mxu0
    %v2081 = vadd.f32 0.0, %v2080
    %v2082 = vpop.f32.mrb[0].mxu0
    %v2083 = vpop.f32.mrb[0].mxu0
    %v2084 = vpop.f32.mrb[0].mxu0
    %2085 = vdwg.mxu0
    %v2086 = vsel %vm284, %v2081, -inf
    %2087 = vmax.xlane.f32.xlu0 %v2086
    %v2088 = vpop.xlane.xlu0 %2087
    %v2089 = vsub.f32 %v2081, %v2088
    %v2090 = vmul.f32 %v2089, 1.442695
    %v2091 = vpow.pop %v2090
    %v2092 = vsel %vm284, %v2091, 0.0
    %2093 = vadd.xlane.f32.xlu0 %v2092
    %v2094 = vpop.xlane.xlu0 %2093
    %v2095 = vrcp.pop %v2094
    %v2096 = vmul.f32 %v2091, %v2095
    %s2097 = scalar_lea.vmem %s20, 96
    %2098 = vst.msk [vmem:[%s2097] sm:$0x1f] %vm284, %v2096
    %v2099 = vpack.c.bf16 %v2096, %v2096
    %v2100 = vshrl.u32 %v1568, 16
    %v2102 = vrot.slane %v2100, 2
    %v2103 = vshll.u32 %v1568, 16
    %v2105 = vrot.slane %v2103, 3
    %v2106 = vor.u32 %v2102, %v2105
    %v2108 = vsel %vm298, %v2099, 0
    %v2111 = vand.u32 %v2106, %v305
    %2113 = vmatprep.subr.bf16.mxu0 0
    %2114 = vmatpush1.bf16.msra.mxu0 %v2111
    %2115 = vmatprep.subr.bf16.mxu0 0
    %2116 = vmatpush1.bf16.msra.mxu0 0
    %2117 = vmatprep.subr.bf16.mxu0 0
    %2118 = vmatpush1.bf16.msra.mxu0 0
    %2119 = vmatprep.subr.bf16.mxu0 0
    %2120 = vmatpush1.bf16.msra.mxu0 0
    %2121 = vmatprep.subr.bf16.mxu0 0
    %2122 = vmatpush1.bf16.msra.mxu0 0
    %2123 = vmatprep.subr.bf16.mxu0 0
    %2124 = vmatpush1.bf16.msra.mxu0 0
    %2125 = vmatprep.subr.bf16.mxu0 0
    %2126 = vmatpush1.bf16.msra.mxu0 0
    %2127 = vmatprep.subr.bf16.mxu0 0
    %2128 = vmatpush1.bf16.msra.mxu0 0
    %2129 = vmatprep.subr.bf16.mxu0 0
    %2130 = vmatpush1.bf16.msra.mxu0 0
    %2131 = vmatprep.subr.bf16.mxu0 0
    %2132 = vmatpush1.bf16.msra.mxu0 0
    %2133 = vmatprep.subr.bf16.mxu0 0
    %2134 = vmatpush1.bf16.msra.mxu0 0
    %2135 = vmatprep.subr.bf16.mxu0 0
    %2136 = vmatpush1.bf16.msra.mxu0 0
    %2137 = vmatprep.subr.bf16.mxu0 0
    %2138 = vmatpush1.bf16.msra.mxu0 0
    %2139 = vmatprep.subr.bf16.mxu0 0
    %2140 = vmatpush1.bf16.msra.mxu0 0
    %2141 = vmatprep.subr.bf16.mxu0 0
    %2142 = vmatpush1.bf16.msra.mxu0 0
    %2143 = vmatprep.subr.bf16.mxu0 0
    %2144 = vmatpush1.bf16.msra.mxu0 0
    %2145 = vmatprep.mubr.bf16.mxu0 0
    %2146 = vmatmul.mubr.bf16.gmra.mrb[0].mxu0 %v2108
    %v2147 = vpop.f32.mrb[0].mxu0
    %v2148 = vadd.f32 0.0, %v2147
    %v2149 = vpop.f32.mrb[0].mxu0
    %v2150 = vpop.f32.mrb[0].mxu0
    %v2151 = vpop.f32.mrb[0].mxu0
    %2152 = vdwg.mxu0
    %2153 = vst.msk [vmem:[#allocation2 + $0x5] sm:$0x1f] %vm349, %v2148
    %2154 = vrot.lane.b32.xlu0 %v2037, 112
    %v2155 = vpop.permute.xlu0 %2154
    %2156 = vrot.lane.b32.xlu0 %v2037, 48
    %v2157 = vpop.permute.xlu0 %2156
    %v2159 = vsel %vm237, %v2155, 0
    %v2162 = vsel %vm237, %v2157, 0
    %2164 = vmatprep.subr.bf16.mxu0 0
    %2165 = vmatpush1.bf16.xpose.msra.mxu0 %v2162
    %2166 = vmatprep.subr.bf16.mxu0 0
    %2167 = vmatpush1.bf16.xpose.msra.mxu0 0
    %2168 = vmatprep.subr.bf16.mxu0 0
    %2169 = vmatpush1.bf16.xpose.msra.mxu0 0
    %2170 = vmatprep.subr.bf16.mxu0 0
    %2171 = vmatpush1.bf16.xpose.msra.mxu0 0
    %2172 = vmatprep.subr.bf16.mxu0 0
    %2173 = vmatpush1.bf16.xpose.msra.mxu0 0
    %2174 = vmatprep.subr.bf16.mxu0 0
    %2175 = vmatpush1.bf16.xpose.msra.mxu0 0
    %2176 = vmatprep.subr.bf16.mxu0 0
    %2177 = vmatpush1.bf16.xpose.msra.mxu0 0
    %2178 = vmatprep.subr.bf16.mxu0 0
    %2179 = vmatpush1.bf16.xpose.msra.mxu0 0
    %2180 = vmatprep.subr.bf16.mxu0 0
    %2181 = vmatpush1.bf16.xpose.msra.mxu0 0
    %2182 = vmatprep.subr.bf16.mxu0 0
    %2183 = vmatpush1.bf16.xpose.msra.mxu0 0
    %2184 = vmatprep.subr.bf16.mxu0 0
    %2185 = vmatpush1.bf16.xpose.msra.mxu0 0
    %2186 = vmatprep.subr.bf16.mxu0 0
    %2187 = vmatpush1.bf16.xpose.msra.mxu0 0
    %2188 = vmatprep.subr.bf16.mxu0 0
    %2189 = vmatpush1.bf16.xpose.msra.mxu0 0
    %2190 = vmatprep.subr.bf16.mxu0 0
    %2191 = vmatpush1.bf16.xpose.msra.mxu0 0
    %2192 = vmatprep.subr.bf16.mxu0 0
    %2193 = vmatpush1.bf16.xpose.msra.mxu0 0
    %2194 = vmatprep.subr.bf16.mxu0 0
    %2195 = vmatpush1.bf16.xpose.msra.mxu0 0
    %2196 = vmatprep.mubr.bf16.mxu0 0
    %2197 = vmatmul.mubr.bf16.gmra.mrb[0].mxu0 %v2159
    %v2198 = vpop.f32.mrb[0].mxu0
    %v2199 = vadd.f32 0.0, %v2198
    %v2200 = vpop.f32.mrb[0].mxu0
    %v2201 = vpop.f32.mrb[0].mxu0
    %v2202 = vpop.f32.mrb[0].mxu0
    %2203 = vdwg.mxu0
    %v2204 = vsel %vm284, %v2199, -inf
    %2205 = vmax.xlane.f32.xlu0 %v2204
    %v2206 = vpop.xlane.xlu0 %2205
    %v2207 = vsub.f32 %v2199, %v2206
    %v2208 = vmul.f32 %v2207, 1.442695
    %v2209 = vpow.pop %v2208
    %v2210 = vsel %vm284, %v2209, 0.0
    %2211 = vadd.xlane.f32.xlu0 %v2210
    %v2212 = vpop.xlane.xlu0 %2211
    %v2213 = vrcp.pop %v2212
    %v2214 = vmul.f32 %v2209, %v2213
    %s2215 = scalar_lea.vmem %s20, 104
    %2216 = vst.msk [vmem:[%s2215] sm:$0x1f] %vm284, %v2214
    %v2217 = vpack.c.bf16 %v2214, %v2214
    %2218 = vrot.lane.b32.xlu0 %v2106, 112
    %v2219 = vpop.permute.xlu0 %2218
    %v2221 = vsel %vm298, %v2217, 0
    %v2224 = vand.u32 %v2219, %v305
    %2226 = vmatprep.subr.bf16.mxu0 0
    %2227 = vmatpush1.bf16.msra.mxu0 %v2224
    %2228 = vmatprep.subr.bf16.mxu0 0
    %2229 = vmatpush1.bf16.msra.mxu0 0
    %2230 = vmatprep.subr.bf16.mxu0 0
    %2231 = vmatpush1.bf16.msra.mxu0 0
    %2232 = vmatprep.subr.bf16.mxu0 0
    %2233 = vmatpush1.bf16.msra.mxu0 0
    %2234 = vmatprep.subr.bf16.mxu0 0
    %2235 = vmatpush1.bf16.msra.mxu0 0
    %2236 = vmatprep.subr.bf16.mxu0 0
    %2237 = vmatpush1.bf16.msra.mxu0 0
    %2238 = vmatprep.subr.bf16.mxu0 0
    %2239 = vmatpush1.bf16.msra.mxu0 0
    %2240 = vmatprep.subr.bf16.mxu0 0
    %2241 = vmatpush1.bf16.msra.mxu0 0
    %2242 = vmatprep.subr.bf16.mxu0 0
    %2243 = vmatpush1.bf16.msra.mxu0 0
    %2244 = vmatprep.subr.bf16.mxu0 0
    %2245 = vmatpush1.bf16.msra.mxu0 0
    %2246 = vmatprep.subr.bf16.mxu0 0
    %2247 = vmatpush1.bf16.msra.mxu0 0
    %2248 = vmatprep.subr.bf16.mxu0 0
    %2249 = vmatpush1.bf16.msra.mxu0 0
    %2250 = vmatprep.subr.bf16.mxu0 0
    %2251 = vmatpush1.bf16.msra.mxu0 0
    %2252 = vmatprep.subr.bf16.mxu0 0
    %2253 = vmatpush1.bf16.msra.mxu0 0
    %2254 = vmatprep.subr.bf16.mxu0 0
    %2255 = vmatpush1.bf16.msra.mxu0 0
    %2256 = vmatprep.subr.bf16.mxu0 0
    %2257 = vmatpush1.bf16.msra.mxu0 0
    %2258 = vmatprep.mubr.bf16.mxu0 0
    %2259 = vmatmul.mubr.bf16.gmra.mrb[0].mxu0 %v2221
    %v2260 = vpop.f32.mrb[0].mxu0
    %v2261 = vadd.f32 0.0, %v2260
    %v2262 = vpop.f32.mrb[0].mxu0
    %v2263 = vpop.f32.mrb[0].mxu0
    %v2264 = vpop.f32.mrb[0].mxu0
    %2265 = vdwg.mxu0
    %2267 = vrot.lane.b32.xlu0 %v2261, 16
    %v2268 = vpop.permute.xlu0 %2267
    %2270 = vst.msk [vmem:[#allocation2 + $0x5] sm:$0x1f] %vm468, %v2268
    %2271 = vrot.lane.b32.xlu0 %v2037, 96
    %v2272 = vpop.permute.xlu0 %2271
    %2273 = vrot.lane.b32.xlu0 %v2037, 32
    %v2274 = vpop.permute.xlu0 %2273
    %v2276 = vsel %vm237, %v2272, 0
    %v2279 = vsel %vm237, %v2274, 0
    %2281 = vmatprep.subr.bf16.mxu0 0
    %2282 = vmatpush1.bf16.xpose.msra.mxu0 %v2279
    %2283 = vmatprep.subr.bf16.mxu0 0
    %2284 = vmatpush1.bf16.xpose.msra.mxu0 0
    %2285 = vmatprep.subr.bf16.mxu0 0
    %2286 = vmatpush1.bf16.xpose.msra.mxu0 0
    %2287 = vmatprep.subr.bf16.mxu0 0
    %2288 = vmatpush1.bf16.xpose.msra.mxu0 0
    %2289 = vmatprep.subr.bf16.mxu0 0
    %2290 = vmatpush1.bf16.xpose.msra.mxu0 0
    %2291 = vmatprep.subr.bf16.mxu0 0
    %2292 = vmatpush1.bf16.xpose.msra.mxu0 0
    %2293 = vmatprep.subr.bf16.mxu0 0
    %2294 = vmatpush1.bf16.xpose.msra.mxu0 0
    %2295 = vmatprep.subr.bf16.mxu0 0
    %2296 = vmatpush1.bf16.xpose.msra.mxu0 0
    %2297 = vmatprep.subr.bf16.mxu0 0
    %2298 = vmatpush1.bf16.xpose.msra.mxu0 0
    %2299 = vmatprep.subr.bf16.mxu0 0
    %2300 = vmatpush1.bf16.xpose.msra.mxu0 0
    %2301 = vmatprep.subr.bf16.mxu0 0
    %2302 = vmatpush1.bf16.xpose.msra.mxu0 0
    %2303 = vmatprep.subr.bf16.mxu0 0
    %2304 = vmatpush1.bf16.xpose.msra.mxu0 0
    %2305 = vmatprep.subr.bf16.mxu0 0
    %2306 = vmatpush1.bf16.xpose.msra.mxu0 0
    %2307 = vmatprep.subr.bf16.mxu0 0
    %2308 = vmatpush1.bf16.xpose.msra.mxu0 0
    %2309 = vmatprep.subr.bf16.mxu0 0
    %2310 = vmatpush1.bf16.xpose.msra.mxu0 0
    %2311 = vmatprep.subr.bf16.mxu0 0
    %2312 = vmatpush1.bf16.xpose.msra.mxu0 0
    %2313 = vmatprep.mubr.bf16.mxu0 0
    %2314 = vmatmul.mubr.bf16.gmra.mrb[0].mxu0 %v2276
    %v2315 = vpop.f32.mrb[0].mxu0
    %v2316 = vadd.f32 0.0, %v2315
    %v2317 = vpop.f32.mrb[0].mxu0
    %v2318 = vpop.f32.mrb[0].mxu0
    %v2319 = vpop.f32.mrb[0].mxu0
    %2320 = vdwg.mxu0
    %v2321 = vsel %vm284, %v2316, -inf
    %2322 = vmax.xlane.f32.xlu0 %v2321
    %v2323 = vpop.xlane.xlu0 %2322
    %v2324 = vsub.f32 %v2316, %v2323
    %v2325 = vmul.f32 %v2324, 1.442695
    %v2326 = vpow.pop %v2325
    %v2327 = vsel %vm284, %v2326, 0.0
    %2328 = vadd.xlane.f32.xlu0 %v2327
    %v2329 = vpop.xlane.xlu0 %2328
    %v2330 = vrcp.pop %v2329
    %v2331 = vmul.f32 %v2326, %v2330
    %s2332 = scalar_lea.vmem %s20, 112
    %2333 = vst.msk [vmem:[%s2332] sm:$0x1f] %vm284, %v2331
    %v2334 = vpack.c.bf16 %v2331, %v2331
    %2335 = vrot.lane.b32.xlu0 %v2106, 96
    %v2336 = vpop.permute.xlu0 %2335
    %v2338 = vsel %vm298, %v2334, 0
    %v2341 = vand.u32 %v2336, %v305
    %2343 = vmatprep.subr.bf16.mxu0 0
    %2344 = vmatpush1.bf16.msra.mxu0 %v2341
    %2345 = vmatprep.subr.bf16.mxu0 0
    %2346 = vmatpush1.bf16.msra.mxu0 0
    %2347 = vmatprep.subr.bf16.mxu0 0
    %2348 = vmatpush1.bf16.msra.mxu0 0
    %2349 = vmatprep.subr.bf16.mxu0 0
    %2350 = vmatpush1.bf16.msra.mxu0 0
    %2351 = vmatprep.subr.bf16.mxu0 0
    %2352 = vmatpush1.bf16.msra.mxu0 0
    %2353 = vmatprep.subr.bf16.mxu0 0
    %2354 = vmatpush1.bf16.msra.mxu0 0
    %2355 = vmatprep.subr.bf16.mxu0 0
    %2356 = vmatpush1.bf16.msra.mxu0 0
    %2357 = vmatprep.subr.bf16.mxu0 0
    %2358 = vmatpush1.bf16.msra.mxu0 0
    %2359 = vmatprep.subr.bf16.mxu0 0
    %2360 = vmatpush1.bf16.msra.mxu0 0
    %2361 = vmatprep.subr.bf16.mxu0 0
    %2362 = vmatpush1.bf16.msra.mxu0 0
    %2363 = vmatprep.subr.bf16.mxu0 0
    %2364 = vmatpush1.bf16.msra.mxu0 0
    %2365 = vmatprep.subr.bf16.mxu0 0
    %2366 = vmatpush1.bf16.msra.mxu0 0
    %2367 = vmatprep.subr.bf16.mxu0 0
    %2368 = vmatpush1.bf16.msra.mxu0 0
    %2369 = vmatprep.subr.bf16.mxu0 0
    %2370 = vmatpush1.bf16.msra.mxu0 0
    %2371 = vmatprep.subr.bf16.mxu0 0
    %2372 = vmatpush1.bf16.msra.mxu0 0
    %2373 = vmatprep.subr.bf16.mxu0 0
    %2374 = vmatpush1.bf16.msra.mxu0 0
    %2375 = vmatprep.mubr.bf16.mxu0 0
    %2376 = vmatmul.mubr.bf16.gmra.mrb[0].mxu0 %v2338
    %v2377 = vpop.f32.mrb[0].mxu0
    %v2378 = vadd.f32 0.0, %v2377
    %v2379 = vpop.f32.mrb[0].mxu0
    %v2380 = vpop.f32.mrb[0].mxu0
    %v2381 = vpop.f32.mrb[0].mxu0
    %2382 = vdwg.mxu0
    %2384 = vrot.lane.b32.xlu0 %v2378, 32
    %v2385 = vpop.permute.xlu0 %2384
    %2387 = vst.msk [vmem:[#allocation2 + $0x5] sm:$0x1f] %vm586, %v2385
    %2388 = vrot.lane.b32.xlu0 %v2037, 80
    %v2389 = vpop.permute.xlu0 %2388
    %2390 = vrot.lane.b32.xlu0 %v2037, 16
    %v2391 = vpop.permute.xlu0 %2390
    %v2393 = vsel %vm237, %v2389, 0
    %v2396 = vsel %vm237, %v2391, 0
    %2398 = vmatprep.subr.bf16.mxu0 0
    %2399 = vmatpush1.bf16.xpose.msra.mxu0 %v2396
    %2400 = vmatprep.subr.bf16.mxu0 0
    %2401 = vmatpush1.bf16.xpose.msra.mxu0 0
    %2402 = vmatprep.subr.bf16.mxu0 0
    %2403 = vmatpush1.bf16.xpose.msra.mxu0 0
    %2404 = vmatprep.subr.bf16.mxu0 0
    %2405 = vmatpush1.bf16.xpose.msra.mxu0 0
    %2406 = vmatprep.subr.bf16.mxu0 0
    %2407 = vmatpush1.bf16.xpose.msra.mxu0 0
    %2408 = vmatprep.subr.bf16.mxu0 0
    %2409 = vmatpush1.bf16.xpose.msra.mxu0 0
    %2410 = vmatprep.subr.bf16.mxu0 0
    %2411 = vmatpush1.bf16.xpose.msra.mxu0 0
    %2412 = vmatprep.subr.bf16.mxu0 0
    %2413 = vmatpush1.bf16.xpose.msra.mxu0 0
    %2414 = vmatprep.subr.bf16.mxu0 0
    %2415 = vmatpush1.bf16.xpose.msra.mxu0 0
    %2416 = vmatprep.subr.bf16.mxu0 0
    %2417 = vmatpush1.bf16.xpose.msra.mxu0 0
    %2418 = vmatprep.subr.bf16.mxu0 0
    %2419 = vmatpush1.bf16.xpose.msra.mxu0 0
    %2420 = vmatprep.subr.bf16.mxu0 0
    %2421 = vmatpush1.bf16.xpose.msra.mxu0 0
    %2422 = vmatprep.subr.bf16.mxu0 0
    %2423 = vmatpush1.bf16.xpose.msra.mxu0 0
    %2424 = vmatprep.subr.bf16.mxu0 0
    %2425 = vmatpush1.bf16.xpose.msra.mxu0 0
    %2426 = vmatprep.subr.bf16.mxu0 0
    %2427 = vmatpush1.bf16.xpose.msra.mxu0 0
    %2428 = vmatprep.subr.bf16.mxu0 0
    %2429 = vmatpush1.bf16.xpose.msra.mxu0 0
    %2430 = vmatprep.mubr.bf16.mxu0 0
    %2431 = vmatmul.mubr.bf16.gmra.mrb[0].mxu0 %v2393
    %v2432 = vpop.f32.mrb[0].mxu0
    %v2433 = vadd.f32 0.0, %v2432
    %v2434 = vpop.f32.mrb[0].mxu0
    %v2435 = vpop.f32.mrb[0].mxu0
    %v2436 = vpop.f32.mrb[0].mxu0
    %2437 = vdwg.mxu0
    %v2438 = vsel %vm284, %v2433, -inf
    %2439 = vmax.xlane.f32.xlu0 %v2438
    %v2440 = vpop.xlane.xlu0 %2439
    %v2441 = vsub.f32 %v2433, %v2440
    %v2442 = vmul.f32 %v2441, 1.442695
    %v2443 = vpow.pop %v2442
    %v2444 = vsel %vm284, %v2443, 0.0
    %2445 = vadd.xlane.f32.xlu0 %v2444
    %v2446 = vpop.xlane.xlu0 %2445
    %v2447 = vrcp.pop %v2446
    %v2448 = vmul.f32 %v2443, %v2447
    %s2449 = scalar_lea.vmem %s20, 120
    %2450 = vst.msk [vmem:[%s2449] sm:$0x1f] %vm284, %v2448
    %v2451 = vpack.c.bf16 %v2448, %v2448
    %2452 = vrot.lane.b32.xlu0 %v2106, 80
    %v2453 = vpop.permute.xlu0 %2452
    %v2455 = vsel %vm298, %v2451, 0
    %v2458 = vand.u32 %v2453, %v305
    %2460 = vmatprep.subr.bf16.mxu0 0
    %2461 = vmatpush1.bf16.msra.mxu0 %v2458
    %2462 = vmatprep.subr.bf16.mxu0 0
    %2463 = vmatpush1.bf16.msra.mxu0 0
    %2464 = vmatprep.subr.bf16.mxu0 0
    %2465 = vmatpush1.bf16.msra.mxu0 0
    %2466 = vmatprep.subr.bf16.mxu0 0
    %2467 = vmatpush1.bf16.msra.mxu0 0
    %2468 = vmatprep.subr.bf16.mxu0 0
    %2469 = vmatpush1.bf16.msra.mxu0 0
    %2470 = vmatprep.subr.bf16.mxu0 0
    %2471 = vmatpush1.bf16.msra.mxu0 0
    %2472 = vmatprep.subr.bf16.mxu0 0
    %2473 = vmatpush1.bf16.msra.mxu0 0
    %2474 = vmatprep.subr.bf16.mxu0 0
    %2475 = vmatpush1.bf16.msra.mxu0 0
    %2476 = vmatprep.subr.bf16.mxu0 0
    %2477 = vmatpush1.bf16.msra.mxu0 0
    %2478 = vmatprep.subr.bf16.mxu0 0
    %2479 = vmatpush1.bf16.msra.mxu0 0
    %2480 = vmatprep.subr.bf16.mxu0 0
    %2481 = vmatpush1.bf16.msra.mxu0 0
    %2482 = vmatprep.subr.bf16.mxu0 0
    %2483 = vmatpush1.bf16.msra.mxu0 0
    %2484 = vmatprep.subr.bf16.mxu0 0
    %2485 = vmatpush1.bf16.msra.mxu0 0
    %2486 = vmatprep.subr.bf16.mxu0 0
    %2487 = vmatpush1.bf16.msra.mxu0 0
    %2488 = vmatprep.subr.bf16.mxu0 0
    %2489 = vmatpush1.bf16.msra.mxu0 0
    %2490 = vmatprep.subr.bf16.mxu0 0
    %2491 = vmatpush1.bf16.msra.mxu0 0
    %2492 = vmatprep.mubr.bf16.mxu0 0
    %2493 = vmatmul.mubr.bf16.gmra.mrb[0].mxu0 %v2455
    %v2494 = vpop.f32.mrb[0].mxu0
    %v2495 = vadd.f32 0.0, %v2494
    %v2496 = vpop.f32.mrb[0].mxu0
    %v2497 = vpop.f32.mrb[0].mxu0
    %v2498 = vpop.f32.mrb[0].mxu0
    %2499 = vdwg.mxu0
    %2501 = vrot.lane.b32.xlu0 %v2495, 48
    %v2502 = vpop.permute.xlu0 %2501
    %2504 = vst.msk [vmem:[#allocation2 + $0x5] sm:$0x1f] %vm704, %v2502
    %v2505 = vld [vmem:[#allocation2] sm:$0xff]
    %v2506 = vld [vmem:[#allocation2 + $0x8] sm:$0x3]
    %v2507 = vpack.c.bf16 %v2506, %v2505
    %v2509 = vsel %vm185, %v2507, 0
    %2511 = vmatprep.subr.bf16.mxu0 0
    %2512 = vmatpush1.bf16.msra.mxu0 %v1205
    %2513 = vmatprep.subr.bf16.mxu0 0
    %2514 = vmatpush1.bf16.msra.mxu0 %v1206
    %2515 = vmatprep.subr.bf16.mxu0 0
    %2516 = vmatpush1.bf16.msra.mxu0 %v1207
    %2517 = vmatprep.subr.bf16.mxu0 0
    %2518 = vmatpush1.bf16.msra.mxu0 %v1208
    %2519 = vmatprep.subr.bf16.mxu0 0
    %2520 = vmatpush1.bf16.msra.mxu0 0
    %2521 = vmatprep.subr.bf16.mxu0 0
    %2522 = vmatpush1.bf16.msra.mxu0 0
    %2523 = vmatprep.subr.bf16.mxu0 0
    %2524 = vmatpush1.bf16.msra.mxu0 0
    %2525 = vmatprep.subr.bf16.mxu0 0
    %2526 = vmatpush1.bf16.msra.mxu0 0
    %2527 = vmatprep.subr.bf16.mxu0 0
    %2528 = vmatpush1.bf16.msra.mxu0 0
    %2529 = vmatprep.subr.bf16.mxu0 0
    %2530 = vmatpush1.bf16.msra.mxu0 0
    %2531 = vmatprep.subr.bf16.mxu0 0
    %2532 = vmatpush1.bf16.msra.mxu0 0
    %2533 = vmatprep.subr.bf16.mxu0 0
    %2534 = vmatpush1.bf16.msra.mxu0 0
    %2535 = vmatprep.subr.bf16.mxu0 0
    %2536 = vmatpush1.bf16.msra.mxu0 0
    %2537 = vmatprep.subr.bf16.mxu0 0
    %2538 = vmatpush1.bf16.msra.mxu0 0
    %2539 = vmatprep.subr.bf16.mxu0 0
    %2540 = vmatpush1.bf16.msra.mxu0 0
    %2541 = vmatprep.subr.bf16.mxu0 0
    %2542 = vmatpush1.bf16.msra.mxu0 0
    %2543 = vmatprep.mubr.bf16.mxu0 0
    %2544 = vmatmul.mubr.bf16.gmra.mrb[0].mxu0 %v2509
    %v2545 = vpop.f32.mrb[0].mxu0
    %v2546 = vadd.f32 %v1187, %v2545
    %v2547 = vpop.f32.mrb[0].mxu0
    %v2548 = vpop.f32.mrb[0].mxu0
    %v2549 = vadd.f32 %v1187, %v2548
    %v2550 = vpop.f32.mrb[0].mxu0
    %2551 = vdwg.mxu0
    %v2552 = vadd.f32 %v1518, %v2546
    %v2553 = vadd.f32 %v1519, %v2549
    %v2554 = vsel %vm185, %v2552, 0.0
    %2555 = vadd.xlane.f32.xlu0 %v2554
    %v2556 = vpop.xlane.xlu0 %2555
    %v2557 = vsel %vm1262, %v2553, 0.0
    %2558 = vadd.xlane.f32.xlu0 %v2557
    %v2559 = vpop.xlane.xlu0 %2558
    %v2560 = vmul.f32 %v2556, %v1266
    %v2561 = vmul.f32 %v2559, %v1266
    %v2562 = vsub.f32 %v2552, %v2560
    %v2563 = vsub.f32 %v2553, %v2561
    %v2564 = vmul.f32 %v2562, %v2562
    %v2565 = vmul.f32 %v2563, %v2563
    %v2566 = vsel %vm185, %v2564, 0.0
    %2567 = vadd.xlane.f32.xlu0 %v2566
    %v2568 = vpop.xlane.xlu0 %2567
    %v2569 = vsel %vm1262, %v2565, 0.0
    %2570 = vadd.xlane.f32.xlu0 %v2569
    %v2571 = vpop.xlane.xlu0 %2570
    %v2572 = vmul.f32 %v2568, %v1266
    %v2573 = vmul.f32 %v2571, %v1266
    %v2574 = vadd.f32 %v2572, 1e-05
    %v2575 = vadd.f32 %v2573, 1e-05
    %v2576 = vrsqrt.pop %v2574
    %v2577 = vrsqrt.pop %v2575
    %v2578 = vmul.f32 %v2562, %v2576
    %v2579 = vmul.f32 %v2563, %v2577
    %v2580 = vmul.f32 %v2578, %v1291
    %v2581 = vmul.f32 %v2579, %v1291
    %v2582 = vadd.f32 %v2580, %v1299
    %v2583 = vadd.f32 %v2581, %v1299
    %v2584 = vpack.c.bf16 %v2583, %v2582
    %v2586 = vsel %vm185, %v2584, 0
    %2588 = vmatprep.subr.bf16.mxu0 0
    %2589 = vmatpush1.bf16.msra.mxu0 %v1326
    %2590 = vmatprep.subr.bf16.mxu0 0
    %2591 = vmatpush1.bf16.msra.mxu0 %v1327
    %2592 = vmatprep.subr.bf16.mxu0 0
    %2593 = vmatpush1.bf16.msra.mxu0 %v1328
    %2594 = vmatprep.subr.bf16.mxu0 0
    %2595 = vmatpush1.bf16.msra.mxu0 %v1329
    %2596 = vmatprep.subr.bf16.mxu0 0
    %2597 = vmatpush1.bf16.msra.mxu0 0
    %2598 = vmatprep.subr.bf16.mxu0 0
    %2599 = vmatpush1.bf16.msra.mxu0 0
    %2600 = vmatprep.subr.bf16.mxu0 0
    %2601 = vmatpush1.bf16.msra.mxu0 0
    %2602 = vmatprep.subr.bf16.mxu0 0
    %2603 = vmatpush1.bf16.msra.mxu0 0
    %2604 = vmatprep.subr.bf16.mxu0 0
    %2605 = vmatpush1.bf16.msra.mxu0 0
    %2606 = vmatprep.subr.bf16.mxu0 0
    %2607 = vmatpush1.bf16.msra.mxu0 0
    %2608 = vmatprep.subr.bf16.mxu0 0
    %2609 = vmatpush1.bf16.msra.mxu0 0
    %2610 = vmatprep.subr.bf16.mxu0 0
    %2611 = vmatpush1.bf16.msra.mxu0 0
    %2612 = vmatprep.subr.bf16.mxu0 0
    %2613 = vmatpush1.bf16.msra.mxu0 0
    %2614 = vmatprep.subr.bf16.mxu0 0
    %2615 = vmatpush1.bf16.msra.mxu0 0
    %2616 = vmatprep.subr.bf16.mxu0 0
    %2617 = vmatpush1.bf16.msra.mxu0 0
    %2618 = vmatprep.subr.bf16.mxu0 0
    %2619 = vmatpush1.bf16.msra.mxu0 0
    %2620 = vmatprep.mubr.bf16.mxu0 0
    %2621 = vmatmul.mubr.bf16.gmra.mrb[0].mxu0 %v2586
    %v2622 = vpop.f32.mrb[0].mxu0
    %v2623 = vadd.f32 %v1308, %v2622
    %v2624 = vpop.f32.mrb[0].mxu0
    %v2625 = vpop.f32.mrb[0].mxu0
    %v2626 = vadd.f32 %v1308, %v2625
    %v2627 = vpop.f32.mrb[0].mxu0
    %2628 = vdwg.mxu0
    %v2629 = vmax.f32 %v2623, 0.0
    %v2630 = vmax.f32 %v2626, 0.0
    %v2631 = vpack.c.bf16 %v2630, %v2629
    %2632 = vmatprep.subr.bf16.mxu0 0
    %2633 = vmatpush1.bf16.msra.mxu0 %v1419
    %2634 = vmatprep.subr.bf16.mxu0 0
    %2635 = vmatpush1.bf16.msra.mxu0 %v1420
    %2636 = vmatprep.subr.bf16.mxu0 0
    %2637 = vmatpush1.bf16.msra.mxu0 %v1421
    %2638 = vmatprep.subr.bf16.mxu0 0
    %2639 = vmatpush1.bf16.msra.mxu0 %v1422
    %2640 = vmatprep.subr.bf16.mxu0 0
    %2641 = vmatpush1.bf16.msra.mxu0 %v1423
    %2642 = vmatprep.subr.bf16.mxu0 0
    %2643 = vmatpush1.bf16.msra.mxu0 %v1424
    %2644 = vmatprep.subr.bf16.mxu0 0
    %2645 = vmatpush1.bf16.msra.mxu0 %v1425
    %2646 = vmatprep.subr.bf16.mxu0 0
    %2647 = vmatpush1.bf16.msra.mxu0 %v1426
    %2648 = vmatprep.subr.bf16.mxu0 0
    %2649 = vmatpush1.bf16.msra.mxu0 0
    %2650 = vmatprep.subr.bf16.mxu0 0
    %2651 = vmatpush1.bf16.msra.mxu0 0
    %2652 = vmatprep.subr.bf16.mxu0 0
    %2653 = vmatpush1.bf16.msra.mxu0 0
    %2654 = vmatprep.subr.bf16.mxu0 0
    %2655 = vmatpush1.bf16.msra.mxu0 0
    %2656 = vmatprep.subr.bf16.mxu0 0
    %2657 = vmatpush1.bf16.msra.mxu0 0
    %2658 = vmatprep.subr.bf16.mxu0 0
    %2659 = vmatpush1.bf16.msra.mxu0 0
    %2660 = vmatprep.subr.bf16.mxu0 0
    %2661 = vmatpush1.bf16.msra.mxu0 0
    %2662 = vmatprep.subr.bf16.mxu0 0
    %2663 = vmatpush1.bf16.msra.mxu0 0
    %2664 = vmatprep.mubr.bf16.mxu0 0
    %2665 = vmatmul.mubr.bf16.gmra.mrb[0].mxu0 %v2631
    %v2666 = vpop.f32.mrb[0].mxu0
    %v2667 = vadd.f32 %v1385, %v2666
    %v2668 = vpop.f32.mrb[0].mxu0
    %v2669 = vpop.f32.mrb[0].mxu0
    %v2670 = vpop.f32.mrb[0].mxu0
    %2671 = vdwg.mxu0
    %v2672 = vadd.f32 %v2582, %v2667
    %v2673 = vsel %vm185, %v2672, 0.0
    %2674 = vadd.xlane.f32.xlu0 %v2673
    %v2675 = vpop.xlane.xlu0 %2674
    %v2676 = vmul.f32 %v2675, %v1266
    %v2677 = vsub.f32 %v2672, %v2676
    %v2678 = vmul.f32 %v2677, %v2677
    %v2679 = vsel %vm185, %v2678, 0.0
    %2680 = vadd.xlane.f32.xlu0 %v2679
    %v2681 = vpop.xlane.xlu0 %2680
    %v2682 = vmul.f32 %v2681, %v1266
    %v2683 = vadd.f32 %v2682, 1e-05
    %v2684 = vrsqrt.pop %v2683
    %v2685 = vmul.f32 %v2677, %v2684
    %v2686 = vmul.f32 %v2685, %v1508
    %v2687 = vadd.f32 %v2686, %v1516
    %v2689 = vrot.slane %v2687, 4
    %vm2691 = vcmask 1040384
    %v2692 = vsel %vm2691, %v2687, %v2689
    %v2693 = vld [vmem:[%s15] sm:$0x1]
    %v2694 = vld [vmem:[%s16] sm:$0x1]
    %v2695 = vsel %vm1262, %v2692, 0.0
    %2696 = vadd.xlane.f32.xlu0 %v2695
    %v2697 = vpop.xlane.xlu0 %2696
    %v2698 = vmul.f32 %v2697, %v1266
    %v2699 = vsub.f32 %v2692, %v2698
    %v2700 = vmul.f32 %v2699, %v2699
    %v2701 = vsel %vm1262, %v2700, 0.0
    %2702 = vadd.xlane.f32.xlu0 %v2701
    %v2703 = vpop.xlane.xlu0 %2702
    %v2704 = vmul.f32 %v2703, %v1266
    %v2705 = vadd.f32 %v2704, 1e-05
    %v2706 = vrsqrt.pop %v2705
    %v2707 = vmul.f32 %v2699, %v2706
    %v2709 = vlaneseq
    %v2710 = vshrl.u32 %v2709, 7
    %v2711 = vsub.s32 0, %v2710
    %v2712 = vrot.slane %v2693, %v2711
    %v2714 = vmul.f32 %v2707, %v2712
    %v2716 = vlaneseq
    %v2717 = vshrl.u32 %v2716, 7
    %v2718 = vsub.s32 0, %v2717
    %v2719 = vrot.slane %v2694, %v2718
    %v2721 = vadd.f32 %v2714, %v2719
    %v2722 = vpack.c.bf16 %v2721, %v2721
    %v2723 = vld [vmem:[%s17] sm:$0xf]
    %v2724 = vld [vmem:[%s17 + $0x4] sm:$0xf]
    %v2725 = vld [vmem:[%s17 + $0x8] sm:$0xf]
    %v2726 = vld [vmem:[%s17 + $0xc] sm:$0xf]
    %v2727 = vld [vmem:[%s17 + $0x10] sm:$0xf]
    %v2728 = vld [vmem:[%s17 + $0x14] sm:$0xf]
    %v2729 = vld [vmem:[%s17 + $0x18] sm:$0xf]
    %v2730 = vld [vmem:[%s17 + $0x1c] sm:$0xf]
    %v2731 = vld [vmem:[%s18] sm:$0x1]
    %v2733 = vlaneseq
    %v2734 = vshrl.u32 %v2733, 7
    %v2735 = vsub.s32 0, %v2734
    %v2736 = vrot.slane %v2731, %v2735
    %v2746 = vunpack.c.l.b16 %v2723
    %v2747 = vunpack.c.l.b16 %v2724
    %v2748 = vunpack.c.l.b16 %v2725
    %v2749 = vunpack.c.l.b16 %v2726
    %v2750 = vunpack.c.l.b16 %v2727
    %v2751 = vunpack.c.l.b16 %v2728
    %v2752 = vunpack.c.l.b16 %v2729
    %v2753 = vunpack.c.l.b16 %v2730
    %v2754 = vpack.c.b16 %v2747, %v2746
    %v2755 = vpack.c.b16 %v2749, %v2748
    %v2756 = vpack.c.b16 %v2751, %v2750
    %v2757 = vpack.c.b16 %v2753, %v2752
    %v2763 = vsel %vm185, %v2722, 0
    %2765 = vmatprep.subr.bf16.mxu0 0
    %2766 = vmatpush1.bf16.msra.mxu0 %v2754
    %2767 = vmatprep.subr.bf16.mxu0 0
    %2768 = vmatpush1.bf16.msra.mxu0 %v2755
    %2769 = vmatprep.subr.bf16.mxu0 0
    %2770 = vmatpush1.bf16.msra.mxu0 %v2756
    %2771 = vmatprep.subr.bf16.mxu0 0
    %2772 = vmatpush1.bf16.msra.mxu0 %v2757
    %2773 = vmatprep.subr.bf16.mxu0 0
    %2774 = vmatpush1.bf16.msra.mxu0 0
    %2775 = vmatprep.subr.bf16.mxu0 0
    %2776 = vmatpush1.bf16.msra.mxu0 0
    %2777 = vmatprep.subr.bf16.mxu0 0
    %2778 = vmatpush1.bf16.msra.mxu0 0
    %2779 = vmatprep.subr.bf16.mxu0 0
    %2780 = vmatpush1.bf16.msra.mxu0 0
    %2781 = vmatprep.subr.bf16.mxu0 0
    %2782 = vmatpush1.bf16.msra.mxu0 0
    %2783 = vmatprep.subr.bf16.mxu0 0
    %2784 = vmatpush1.bf16.msra.mxu0 0
    %2785 = vmatprep.subr.bf16.mxu0 0
    %2786 = vmatpush1.bf16.msra.mxu0 0
    %2787 = vmatprep.subr.bf16.mxu0 0
    %2788 = vmatpush1.bf16.msra.mxu0 0
    %2789 = vmatprep.subr.bf16.mxu0 0
    %2790 = vmatpush1.bf16.msra.mxu0 0
    %2791 = vmatprep.subr.bf16.mxu0 0
    %2792 = vmatpush1.bf16.msra.mxu0 0
    %2793 = vmatprep.subr.bf16.mxu0 0
    %2794 = vmatpush1.bf16.msra.mxu0 0
    %2795 = vmatprep.subr.bf16.mxu0 0
    %2796 = vmatpush1.bf16.msra.mxu0 0
    %2797 = vmatprep.mubr.bf16.mxu0 0
    %2798 = vmatmul.mubr.bf16.gmra.mrb[0].mxu0 %v2763
    %v2799 = vpop.f32.mrb[0].mxu0
    %v2800 = vadd.f32 %v2736, %v2799
    %v2801 = vpop.f32.mrb[0].mxu0
    %v2802 = vpop.f32.mrb[0].mxu0
    %v2803 = vpop.f32.mrb[0].mxu0
    %2804 = vdwg.mxu0
    %2805 = vst [vmem:[#allocation3] sm:$0x3] %v2800
    // Predicated region
    $region78: #{event_lens_forward.3} parent=1 // pred_check
      _
    $region79: #{event_lens_forward.3} parent=1 // pred_check_branch
      %2807 = sbr.rel (0) target = $region81
    $region80: #{event_lens_forward.3} parent=1 // pred_region
      %s2809 = ssub.s32 32, 32
      %2810 = vsyncadd [#allocation4], %s2809
      %s2812 = sshll.u32 [#allocation3], 4
      %s2813 = int_to_ptr.vmem [resolvable:$true] %s2812
      %2815 = dma.vmem_to_hbm [thread:$0]  %s2813, 32, %s19, [#allocation4]
    $region81: #{event_lens_forward.3} parent=1 // pred_fallthru
      _
    // Predicated region
    $region82: #{event_lens_forward.3} parent=1 // pred_check
      _
    $region83: #{event_lens_forward.3} parent=1 // pred_check_branch
      %2817 = sbr.rel (0) target = $region85
    $region84: #{event_lens_forward.3} parent=1 // pred_region
      _
    $region85: #{event_lens_forward.3} parent=1 // pred_fallthru
      _
    // Predicated region
    $region86: #{event_lens_forward.3} parent=1 // pred_check
      _
    $region87: #{event_lens_forward.3} parent=1 // pred_check_branch
      %2819 = sbr.rel (0) target = $region89
    $region88: #{event_lens_forward.3} parent=1 // pred_region
      %2820 = dma.done [#allocation4], 32
    $region89: #{event_lens_forward.3} parent=1 // pred_fallthru
      _
    // Predicated region
    $region90: #{event_lens_forward.3} parent=1 // pred_check
      _
    $region91: #{event_lens_forward.3} parent=1 // pred_check_branch
      %2822 = sbr.rel (0) target = $region93
    $region92: #{event_lens_forward.3} parent=1 // pred_region
      _
    $region93: #{event_lens_forward.3} parent=1 // pred_fallthru
      _
    %2823 = vsyncpa [#allocation4], 1

</llo_original>
